<compile_context>
chip_gen: v7x
topology: tpu7x:2x2x1
jax: 0.10.0
libtpu: 0.0.40
codegen_flags: <defaults>
</compile_context>

<pallas_src>
import jax
import jax.numpy as jnp
from jax import lax
from jax.experimental import pallas as pl
from jax.experimental.pallas import tpu as pltpu

OC, KH, KW = 9, 5, 5
IH, IW = 28, 28                        # input must be 28x28 -> 9*24*24 == 5184
OH, OW = IH - KH + 1, IW - KW + 1      # 24, 24
FC_IN, FC_OUT = OC * OH * OW, 10       # 5184, 10
LANES = OC * OW                        # 216 = channel-dense lane width


def _round_up(n, m):
    return (n + m - 1) // m * m


# ---------------------------------------------------------------------------
# Fused kernel (one grid step = TB images):
#   conv (5 banded MXU matmuls) + bias + ReLU + h-batched MXU FC contraction
#   + log_softmax.  All intermediates stay in VMEM.
# ---------------------------------------------------------------------------
def one_conv_kernel(x_ref, a_ref, cb_ref, fw_ref, fb_ref, o_ref):
    # x_ref : [28, TB, 28]   rows, batch (sublanes), columns (lanes)
    # a_ref : [5, 28, 216]   banded conv matrices, lane = oc*24 + w
    # cb_ref: [1, 216]       conv bias in the same lane layout
    # fw_ref: [24, 10, 216]  fc weight, batched over output row h, lane-dense
    # fb_ref: [1, 10]
    # o_ref : [TB, 10]
    tb = o_ref.shape[0]

    # ---- conv as 5 MXU matmuls: rows are (h, b), K = 28 input columns ----
    acc = None
    for ki in range(KH):
        lhs = x_ref[pl.ds(ki, OH), :, :]           # [24, TB, 28]
        lhs = lhs.reshape(OH * tb, IW)             # layout-free (TB % 8 == 0)
        t = jnp.dot(lhs, a_ref[ki], preferred_element_type=jnp.float32)
        acc = t if acc is None else acc + t        # [24*TB, 216]

    # ---- bias + ReLU (activations never leave VMEM) ----
    act = jnp.maximum(acc + cb_ref[...], 0.0)      # [24*TB, 216]
    act3 = act.reshape(OH, tb, LANES)              # [24, TB, 216] layout-free

    # ---- FC: h-batched MXU contraction of the 216 lane axis ----
    part = lax.dot_general(
        act3, fw_ref[...],
        dimension_numbers=(((2,), (2,)), ((0,), (0,))),
        preferred_element_type=jnp.float32)        # [24, TB, 10]
    logits = jnp.sum(part, axis=0) + fb_ref[...]   # [TB, 10]

    # ---- log_softmax over classes ----
    m = jnp.max(logits, axis=-1, keepdims=True)
    s = logits - m
    lse = jnp.log(jnp.sum(jnp.exp(s), axis=-1, keepdims=True))
    o_ref[...] = s - lse


def one_conv_forward(x_nchw, conv_w, conv_b, fc_w, fc_b, *, tb=32):
    """Pallas implementation of OneConv.forward. x_nchw: [B, 1, 28, 28] f32."""
    B = x_nchw.shape[0]
    # TB must be a multiple of 8 (sublane alignment); don't over-pad tiny demos.
    tb = min(tb, _round_up(max(B, 1), 8))
    b_pad = _round_up(B, tb)

    x = jnp.squeeze(x_nchw, axis=1).astype(jnp.float32)          # [B, 28, 28]
    if b_pad != B:
        x = jnp.pad(x, ((0, b_pad - B), (0, 0), (0, 0)))         # zero-pad tail
    x_t = jnp.transpose(x, (1, 0, 2))                            # [28, B_pad, 28]

    # Banded conv matrices: A[ki, j, oc*24+w] = conv_w[oc, 0, ki, j-w] (0<=j-w<5)
    cw = conv_w[:, 0].astype(jnp.float32)                        # [9, 5, 5]
    j = jnp.arange(IW)[:, None]                                  # [28, 1]
    w = jnp.arange(OW)[None, :]                                  # [1, 24]
    kj = j - w                                                   # [28, 24]
    valid = (kj >= 0) & (kj < KW)
    gathered = cw[:, :, jnp.clip(kj, 0, KW - 1)]                 # [9, 5, 28, 24]
    a = jnp.where(valid[None, None], gathered, 0.0)
    a = a.transpose(1, 2, 0, 3).reshape(KH, IW, LANES)           # [5, 28, 216]

    # Conv bias in the channel-dense lane layout (lane = oc*24 + w).
    cb = jnp.repeat(conv_b.astype(jnp.float32), OW).reshape(1, LANES)   # [1, 216]

    # FC weight: (10, 5184) -> [h, class, oc*24+w]  (lane-dense, h-batched).
    fw = (fc_w.astype(jnp.float32)
              .reshape(FC_OUT, OC, OH, OW)
              .transpose(2, 0, 1, 3)
              .reshape(OH, FC_OUT, LANES))                       # [24, 10, 216]
    fb = fc_b.astype(jnp.float32).reshape(1, FC_OUT)             # [1, 10]

    out = pl.pallas_call(
        one_conv_kernel,
        out_shape=jax.ShapeDtypeStruct((b_pad, FC_OUT), jnp.float32),
        grid=(b_pad // tb,),
        in_specs=[
            pl.BlockSpec((IH, tb, IW), lambda i: (0, i, 0)),         # images
            pl.BlockSpec((KH, IW, LANES), lambda i: (0, 0, 0)),      # conv bands
            pl.BlockSpec((1, LANES), lambda i: (0, 0)),              # conv bias
            pl.BlockSpec((OH, FC_OUT, LANES), lambda i: (0, 0, 0)),  # fc weight
            pl.BlockSpec((1, FC_OUT), lambda i: (0, 0)),             # fc bias
        ],
        out_specs=pl.BlockSpec((tb, FC_OUT), lambda i: (i, 0)),
        compiler_params=pltpu.CompilerParams(
            dimension_semantics=("parallel",)),                      # 2 TCs on v7x
    )(x_t, a, cb, fw, fb)
    return out[:B]


# Pure-JAX reference (silent correctness check).
def reference(x_nchw, conv_w, conv_b, fc_w, fc_b):
    y = lax.conv_general_dilated(
        x_nchw, conv_w, window_strides=(1, 1), padding="VALID",
        dimension_numbers=("NCHW", "OIHW", "NCHW"),
        precision=lax.Precision.HIGHEST)
    y = jnp.maximum(y + conv_b[None, :, None, None], 0.0)
    flat = y.reshape(y.shape[0], -1)
    logits = jnp.dot(flat, fc_w.T, precision=lax.Precision.HIGHEST) + fc_b
    return jax.nn.log_softmax(logits, axis=1)


if __name__ == "__main__":
    key = jax.random.PRNGKey(0)
    kx, kw1, kb1, kw2, kb2 = jax.random.split(key, 5)

    B = 2
    x = jax.random.normal(kx, (B, 1, IH, IW), dtype=jnp.float32)

    # Deterministic synthetic parameters (shapes from the PyTorch module).
    conv_w = 0.1 * jax.random.normal(kw1, (OC, 1, KH, KW), dtype=jnp.float32)
    conv_b = 0.1 * jax.random.normal(kb1, (OC,), dtype=jnp.float32)
    fc_w = 0.02 * jax.random.normal(kw2, (FC_OUT, FC_IN), dtype=jnp.float32)
    fc_b = 0.02 * jax.random.normal(kb2, (FC_OUT,), dtype=jnp.float32)

    out = one_conv_forward(x, conv_w, conv_b, fc_w, fc_b)
    out = jax.block_until_ready(out)

    ref = reference(x, conv_w, conv_b, fc_w, fc_b)
    assert out.shape == (B, FC_OUT)
    assert jnp.allclose(out, ref, atol=2e-3, rtol=2e-3)

    print("KERNEL_OK")
</pallas_src>

<mosaic_0001>
module attributes {stable_mosaic.version = 11 : i64} {
  func.func @one_conv_kernel(%arg0: i32, %arg1: memref<28x8x28xf32, #tpu.memory_space<vmem>>, %arg2: memref<5x28x216xf32, #tpu.memory_space<vmem>>, %arg3: memref<1x216xf32, #tpu.memory_space<vmem>>, %arg4: memref<24x10x216xf32, #tpu.memory_space<vmem>>, %arg5: memref<1x10xf32, #tpu.memory_space<vmem>>, %arg6: memref<8x10xf32, #tpu.memory_space<vmem>>) attributes {dimension_semantics = [#tpu.dimension_semantics<parallel>], iteration_bounds = array<i64: 1>, scalar_prefetch = 0 : i64, scratch_operands = 0 : i64, tpu.core_type = #tpu.core_type<tc>, window_params = [{transform_indices = @transform_0, window_bounds = array<i64: 28, 8, 28>}, {pipeline_mode = #tpu.pipeline_mode<synchronous>, transform_indices = @transform_1, window_bounds = array<i64: 5, 28, 216>}, {pipeline_mode = #tpu.pipeline_mode<synchronous>, transform_indices = @transform_2, window_bounds = array<i64: 1, 216>}, {pipeline_mode = #tpu.pipeline_mode<synchronous>, transform_indices = @transform_3, window_bounds = array<i64: 24, 10, 216>}, {pipeline_mode = #tpu.pipeline_mode<synchronous>, transform_indices = @transform_4, window_bounds = array<i64: 1, 10>}, {transform_indices = @transform_5, window_bounds = array<i64: 8, 10>}]} {
    %c0 = arith.constant 0 : index
    %c0_0 = arith.constant 0 : index
    %c0_1 = arith.constant 0 : index
    %0 = vector.load %arg1[%c0, %c0_0, %c0_1] : memref<28x8x28xf32, #tpu.memory_space<vmem>>, vector<24x8x28xf32>
    %1 = vector.shape_cast %0 : vector<24x8x28xf32> to vector<192x28xf32>
    %c0_2 = arith.constant 0 : index
    %c0_3 = arith.constant 0 : index
    %c0_4 = arith.constant 0 : index
    %2 = vector.load %arg2[%c0_2, %c0_3, %c0_4] : memref<5x28x216xf32, #tpu.memory_space<vmem>>, vector<1x28x216xf32>
    %3 = vector.shape_cast %2 : vector<1x28x216xf32> to vector<28x216xf32>
    %cst = arith.constant dense<0.000000e+00> : vector<192x216xf32>
    %4 = tpu.matmul %1, %3, %cst {dimension_numbers = #tpu.dot_dimension_numbers<[1], [0], [0], [1], [0, 0, 1, 1], [], []>} : vector<192x28xf32>, vector<28x216xf32>, vector<192x216xf32> -> vector<192x216xf32>
    %c1 = arith.constant 1 : index
    %c0_5 = arith.constant 0 : index
    %c0_6 = arith.constant 0 : index
    %5 = vector.load %arg1[%c1, %c0_5, %c0_6] : memref<28x8x28xf32, #tpu.memory_space<vmem>>, vector<24x8x28xf32>
    %6 = vector.shape_cast %5 : vector<24x8x28xf32> to vector<192x28xf32>
    %c1_7 = arith.constant 1 : index
    %c0_8 = arith.constant 0 : index
    %c0_9 = arith.constant 0 : index
    %7 = vector.load %arg2[%c1_7, %c0_8, %c0_9] : memref<5x28x216xf32, #tpu.memory_space<vmem>>, vector<1x28x216xf32>
    %8 = vector.shape_cast %7 : vector<1x28x216xf32> to vector<28x216xf32>
    %cst_10 = arith.constant dense<0.000000e+00> : vector<192x216xf32>
    %9 = tpu.matmul %6, %8, %cst_10 {dimension_numbers = #tpu.dot_dimension_numbers<[1], [0], [0], [1], [0, 0, 1, 1], [], []>} : vector<192x28xf32>, vector<28x216xf32>, vector<192x216xf32> -> vector<192x216xf32>
    %10 = arith.addf %4, %9 : vector<192x216xf32>
    %c2 = arith.constant 2 : index
    %c0_11 = arith.constant 0 : index
    %c0_12 = arith.constant 0 : index
    %11 = vector.load %arg1[%c2, %c0_11, %c0_12] : memref<28x8x28xf32, #tpu.memory_space<vmem>>, vector<24x8x28xf32>
    %12 = vector.shape_cast %11 : vector<24x8x28xf32> to vector<192x28xf32>
    %c2_13 = arith.constant 2 : index
    %c0_14 = arith.constant 0 : index
    %c0_15 = arith.constant 0 : index
    %13 = vector.load %arg2[%c2_13, %c0_14, %c0_15] : memref<5x28x216xf32, #tpu.memory_space<vmem>>, vector<1x28x216xf32>
    %14 = vector.shape_cast %13 : vector<1x28x216xf32> to vector<28x216xf32>
    %cst_16 = arith.constant dense<0.000000e+00> : vector<192x216xf32>
    %15 = tpu.matmul %12, %14, %cst_16 {dimension_numbers = #tpu.dot_dimension_numbers<[1], [0], [0], [1], [0, 0, 1, 1], [], []>} : vector<192x28xf32>, vector<28x216xf32>, vector<192x216xf32> -> vector<192x216xf32>
    %16 = arith.addf %10, %15 : vector<192x216xf32>
    %c3 = arith.constant 3 : index
    %c0_17 = arith.constant 0 : index
    %c0_18 = arith.constant 0 : index
    %17 = vector.load %arg1[%c3, %c0_17, %c0_18] : memref<28x8x28xf32, #tpu.memory_space<vmem>>, vector<24x8x28xf32>
    %18 = vector.shape_cast %17 : vector<24x8x28xf32> to vector<192x28xf32>
    %c3_19 = arith.constant 3 : index
    %c0_20 = arith.constant 0 : index
    %c0_21 = arith.constant 0 : index
    %19 = vector.load %arg2[%c3_19, %c0_20, %c0_21] : memref<5x28x216xf32, #tpu.memory_space<vmem>>, vector<1x28x216xf32>
    %20 = vector.shape_cast %19 : vector<1x28x216xf32> to vector<28x216xf32>
    %cst_22 = arith.constant dense<0.000000e+00> : vector<192x216xf32>
    %21 = tpu.matmul %18, %20, %cst_22 {dimension_numbers = #tpu.dot_dimension_numbers<[1], [0], [0], [1], [0, 0, 1, 1], [], []>} : vector<192x28xf32>, vector<28x216xf32>, vector<192x216xf32> -> vector<192x216xf32>
    %22 = arith.addf %16, %21 : vector<192x216xf32>
    %c4 = arith.constant 4 : index
    %c0_23 = arith.constant 0 : index
    %c0_24 = arith.constant 0 : index
    %23 = vector.load %arg1[%c4, %c0_23, %c0_24] : memref<28x8x28xf32, #tpu.memory_space<vmem>>, vector<24x8x28xf32>
    %24 = vector.shape_cast %23 : vector<24x8x28xf32> to vector<192x28xf32>
    %c4_25 = arith.constant 4 : index
    %c0_26 = arith.constant 0 : index
    %c0_27 = arith.constant 0 : index
    %25 = vector.load %arg2[%c4_25, %c0_26, %c0_27] : memref<5x28x216xf32, #tpu.memory_space<vmem>>, vector<1x28x216xf32>
    %26 = vector.shape_cast %25 : vector<1x28x216xf32> to vector<28x216xf32>
    %cst_28 = arith.constant dense<0.000000e+00> : vector<192x216xf32>
    %27 = tpu.matmul %24, %26, %cst_28 {dimension_numbers = #tpu.dot_dimension_numbers<[1], [0], [0], [1], [0, 0, 1, 1], [], []>} : vector<192x28xf32>, vector<28x216xf32>, vector<192x216xf32> -> vector<192x216xf32>
    %28 = arith.addf %22, %27 : vector<192x216xf32>
    %c0_29 = arith.constant 0 : index
    %c0_30 = arith.constant 0 : index
    %29 = vector.load %arg3[%c0_29, %c0_30] : memref<1x216xf32, #tpu.memory_space<vmem>>, vector<1x216xf32>
    %30 = vector.broadcast %29 : vector<1x216xf32> to vector<192x216xf32>
    %31 = arith.addf %28, %30 : vector<192x216xf32>
    %cst_31 = arith.constant 0.000000e+00 : f32
    %32 = vector.broadcast %cst_31 : f32 to vector<192x216xf32>
    %33 = arith.maximumf %31, %32 : vector<192x216xf32>
    %34 = vector.shape_cast %33 : vector<192x216xf32> to vector<24x8x216xf32>
    %c0_32 = arith.constant 0 : index
    %c0_33 = arith.constant 0 : index
    %c0_34 = arith.constant 0 : index
    %35 = vector.load %arg4[%c0_32, %c0_33, %c0_34] : memref<24x10x216xf32, #tpu.memory_space<vmem>>, vector<24x10x216xf32>
    %cst_35 = arith.constant dense<0.000000e+00> : vector<24x8x10xf32>
    %36 = tpu.matmul %34, %35, %cst_35 {dimension_numbers = #tpu.dot_dimension_numbers<[2], [2], [1], [1], [0, 0, 0, 1, 1, 1], [0], [0]>} : vector<24x8x216xf32>, vector<24x10x216xf32>, vector<24x8x10xf32> -> vector<24x8x10xf32>
    %cst_36 = arith.constant dense<0.000000e+00> : vector<8x10xf32>
    %37 = vector.multi_reduction <add>, %36, %cst_36 [0] : vector<24x8x10xf32> to vector<8x10xf32>
    %c0_37 = arith.constant 0 : index
    %c0_38 = arith.constant 0 : index
    %38 = vector.load %arg5[%c0_37, %c0_38] : memref<1x10xf32, #tpu.memory_space<vmem>>, vector<1x10xf32>
    %39 = vector.broadcast %38 : vector<1x10xf32> to vector<8x10xf32>
    %40 = arith.addf %37, %39 : vector<8x10xf32>
    %cst_39 = arith.constant dense<0xFF800000> : vector<8xf32>
    %41 = vector.multi_reduction <maximumf>, %40, %cst_39 [1] : vector<8x10xf32> to vector<8xf32>
    %42 = vector.shape_cast %41 : vector<8xf32> to vector<8x1xf32>
    %43 = vector.broadcast %42 : vector<8x1xf32> to vector<8x10xf32>
    %44 = arith.subf %40, %43 : vector<8x10xf32>
    %45 = math.exp %44 : vector<8x10xf32>
    %cst_40 = arith.constant dense<0.000000e+00> : vector<8xf32>
    %46 = vector.multi_reduction <add>, %45, %cst_40 [1] : vector<8x10xf32> to vector<8xf32>
    %47 = vector.shape_cast %46 : vector<8xf32> to vector<8x1xf32>
    %48 = math.log %47 : vector<8x1xf32>
    %49 = vector.broadcast %48 : vector<8x1xf32> to vector<8x10xf32>
    %50 = arith.subf %44, %49 : vector<8x10xf32>
    %c0_41 = arith.constant 0 : index
    %c0_42 = arith.constant 0 : index
    %51 = vector.load %arg6[%c0_41, %c0_42] : memref<8x10xf32, #tpu.memory_space<vmem>>, vector<8x10xf32>
    tpu.vector_store %arg6[%c0_41, %c0_42], %50 {strides = array<i32>} : memref<8x10xf32, #tpu.memory_space<vmem>>, vector<8x10xf32>,
    return
  }
  func.func @transform_0(%arg0: i32) -> (i32, i32, i32) {
    %c0_i32 = arith.constant 0 : i32
    %c0_i32_0 = arith.constant 0 : i32
    %c0_i32_1 = arith.constant 0 : i32
    return %c0_i32, %arg0, %c0_i32_0 : i32, i32, i32
  }
  func.func @transform_1(%arg0: i32) -> (i32, i32, i32) {
    %c0_i32 = arith.constant 0 : i32
    %c0_i32_0 = arith.constant 0 : i32
    %c0_i32_1 = arith.constant 0 : i32
    %c0_i32_2 = arith.constant 0 : i32
    return %c0_i32, %c0_i32_0, %c0_i32_1 : i32, i32, i32
  }
  func.func @transform_2(%arg0: i32) -> (i32, i32) {
    %c0_i32 = arith.constant 0 : i32
    %c0_i32_0 = arith.constant 0 : i32
    %c0_i32_1 = arith.constant 0 : i32
    return %c0_i32, %c0_i32_0 : i32, i32
  }
  func.func @transform_3(%arg0: i32) -> (i32, i32, i32) {
    %c0_i32 = arith.constant 0 : i32
    %c0_i32_0 = arith.constant 0 : i32
    %c0_i32_1 = arith.constant 0 : i32
    %c0_i32_2 = arith.constant 0 : i32
    return %c0_i32, %c0_i32_0, %c0_i32_1 : i32, i32, i32
  }
  func.func @transform_4(%arg0: i32) -> (i32, i32) {
    %c0_i32 = arith.constant 0 : i32
    %c0_i32_0 = arith.constant 0 : i32
    %c0_i32_1 = arith.constant 0 : i32
    return %c0_i32, %c0_i32_0 : i32, i32
  }
  func.func @transform_5(%arg0: i32) -> (i32, i32) {
    %c0_i32 = arith.constant 0 : i32
    %c0_i32_0 = arith.constant 0 : i32
    return %arg0, %c0_i32 : i32, i32
  }
}

</mosaic_0001>

<llo_original>
// kernel: tpu_custom_call.1
$region0: #{tpu_custom_call.1}
  #allocation0 [shape = 'u32[]', space=smem, size = 0x4, offset = 0x4, fixed_abs, tag = 'smem constant byte address 0x4 - core index']
  #allocation1 [shape = 'u32[144,128]{1,0:T(1,128)}', space=vmem, size = 0x12000, scoped, tag = 'internal scratch']
  %s0 = inlined_call_operand.vmem [shape: f32[28,8,28], index: 0, kind: input, shape index: {}]
  %s1 = inlined_call_operand.vmem [shape: f32[5,28,216], index: 1, kind: input, shape index: {}]
  %s2 = inlined_call_operand.vmem [shape: f32[1,216], index: 2, kind: input, shape index: {}]
  %s3 = inlined_call_operand.vmem [shape: f32[24,10,216], index: 3, kind: input, shape index: {}]
  %s4 = inlined_call_operand.vmem [shape: f32[1,10], index: 4, kind: input, shape index: {}]
  %s5 = inlined_call_operand.hbm [shape: f32[8,10], index: 5, kind: output, shape index: {}]
  %s6 = sld [smem:[#allocation0]]
  $region30: #{tpu_custom_call.1} parent=0
    _
  %s8 = ssub.s32 1, %s6
  %s9 = scalar_select 0, %s8, %s6
  $region1: #{tpu_custom_call.1} parent=0
    #allocation2 [shape = 'u8[4096]{0}', space=vmem, size = 0x1000, scoped, tag = 'output window, operand 0, single buffered']
    #allocation3 [shape = 's32[1]{0}', space=sflag, size = 0x4, scoped, tag = 'scoped memory for tpu_custom_call.1']
    %10 = vsyncpa [#allocation3], 0
    // Predicated region
    $region2: #{tpu_custom_call.1} parent=1 // pred_check
      _
    $region3: #{tpu_custom_call.1} parent=1 // pred_check_branch
      %12 = sbr.rel (0) target = $region5
    $region4: #{tpu_custom_call.1} parent=1 // pred_region
      _
    $region5: #{tpu_custom_call.1} parent=1 // pred_fallthru
      _
    // Predicated region
    $region6: #{tpu_custom_call.1} parent=1 // pred_check
      _
    $region7: #{tpu_custom_call.1} parent=1 // pred_check_branch
      %14 = sbr.rel (0) target = $region9
    $region8: #{tpu_custom_call.1} parent=1 // pred_region
      _
    $region9: #{tpu_custom_call.1} parent=1 // pred_fallthru
      _
    // Predicated region
    $region10: #{tpu_custom_call.1} parent=1 // pred_check
      _
    $region11: #{tpu_custom_call.1} parent=1 // pred_check_branch
      %16 = sbr.rel (0) target = $region13
    $region12: #{tpu_custom_call.1} parent=1 // pred_region
      _
    $region13: #{tpu_custom_call.1} parent=1 // pred_fallthru
      _
    // Predicated region
    $region14: #{tpu_custom_call.1} parent=1 // pred_check
      _
    $region15: #{tpu_custom_call.1} parent=1 // pred_check_branch
      %18 = sbr.rel (0) target = $region17
    $region16: #{tpu_custom_call.1} parent=1 // pred_region
      _
    $region17: #{tpu_custom_call.1} parent=1 // pred_fallthru
      _
    // Predicated region
    $region18: #{tpu_custom_call.1} parent=1 // pred_check
      _
    $region19: #{tpu_custom_call.1} parent=1 // pred_check_branch
      %20 = sbr.rel (0) target = $region21
    $region20: #{tpu_custom_call.1} parent=1 // pred_region
      _
    $region21: #{tpu_custom_call.1} parent=1 // pred_fallthru
      _
    %v21 = vld [vmem:[%s0] sm:$0xff]
    %v22 = vld [vmem:[%s0 + $0x8] sm:$0xff]
    %v23 = vld [vmem:[%s0 + $0x10] sm:$0xff]
    %v24 = vld [vmem:[%s0 + $0x18] sm:$0xff]
    %v25 = vld [vmem:[%s0 + $0x20] sm:$0xff]
    %v26 = vld [vmem:[%s0 + $0x28] sm:$0xff]
    %v27 = vld [vmem:[%s0 + $0x30] sm:$0xff]
    %v28 = vld [vmem:[%s0 + $0x38] sm:$0xff]
    %v29 = vld [vmem:[%s0 + $0x40] sm:$0xff]
    %v30 = vld [vmem:[%s0 + $0x48] sm:$0xff]
    %v31 = vld [vmem:[%s0 + $0x50] sm:$0xff]
    %v32 = vld [vmem:[%s0 + $0x58] sm:$0xff]
    %v33 = vld [vmem:[%s0 + $0x60] sm:$0xff]
    %v34 = vld [vmem:[%s0 + $0x68] sm:$0xff]
    %v35 = vld [vmem:[%s0 + $0x70] sm:$0xff]
    %v36 = vld [vmem:[%s0 + $0x78] sm:$0xff]
    %v37 = vld [vmem:[%s0 + $0x80] sm:$0xff]
    %v38 = vld [vmem:[%s0 + $0x88] sm:$0xff]
    %v39 = vld [vmem:[%s0 + $0x90] sm:$0xff]
    %v40 = vld [vmem:[%s0 + $0x98] sm:$0xff]
    %v41 = vld [vmem:[%s0 + $0xa0] sm:$0xff]
    %v42 = vld [vmem:[%s0 + $0xa8] sm:$0xff]
    %v43 = vld [vmem:[%s0 + $0xb0] sm:$0xff]
    %v44 = vld [vmem:[%s0 + $0xb8] sm:$0xff]
    %v45 = vld [vmem:[%s1] sm:$0xff]
    %v46 = vld [vmem:[%s1 + $0x8] sm:$0xff]
    %v47 = vld [vmem:[%s1 + $0x10] sm:$0xff]
    %v48 = vld [vmem:[%s1 + $0x18] sm:$0xff]
    %v49 = vld [vmem:[%s1 + $0x20] sm:$0xff]
    %v50 = vld [vmem:[%s1 + $0x28] sm:$0xff]
    %v51 = vld [vmem:[%s1 + $0x30] sm:$0xf]
    %v52 = vld [vmem:[%s1 + $0x38] sm:$0xf]
    %s53 = scalar_lea.vmem %s0, 8
    %v54 = vld [vmem:[%s53] sm:$0xff]
    %v55 = vld [vmem:[%s53 + $0x8] sm:$0xff]
    %v56 = vld [vmem:[%s53 + $0x10] sm:$0xff]
    %v57 = vld [vmem:[%s53 + $0x18] sm:$0xff]
    %v58 = vld [vmem:[%s53 + $0x20] sm:$0xff]
    %v59 = vld [vmem:[%s53 + $0x28] sm:$0xff]
    %v60 = vld [vmem:[%s53 + $0x30] sm:$0xff]
    %v61 = vld [vmem:[%s53 + $0x38] sm:$0xff]
    %v62 = vld [vmem:[%s53 + $0x40] sm:$0xff]
    %v63 = vld [vmem:[%s53 + $0x48] sm:$0xff]
    %v64 = vld [vmem:[%s53 + $0x50] sm:$0xff]
    %v65 = vld [vmem:[%s53 + $0x58] sm:$0xff]
    %v66 = vld [vmem:[%s53 + $0x60] sm:$0xff]
    %v67 = vld [vmem:[%s53 + $0x68] sm:$0xff]
    %v68 = vld [vmem:[%s53 + $0x70] sm:$0xff]
    %v69 = vld [vmem:[%s53 + $0x78] sm:$0xff]
    %v70 = vld [vmem:[%s53 + $0x80] sm:$0xff]
    %v71 = vld [vmem:[%s53 + $0x88] sm:$0xff]
    %v72 = vld [vmem:[%s53 + $0x90] sm:$0xff]
    %v73 = vld [vmem:[%s53 + $0x98] sm:$0xff]
    %v74 = vld [vmem:[%s53 + $0xa0] sm:$0xff]
    %v75 = vld [vmem:[%s53 + $0xa8] sm:$0xff]
    %v76 = vld [vmem:[%s53 + $0xb0] sm:$0xff]
    %v77 = vld [vmem:[%s53 + $0xb8] sm:$0xff]
    %s78 = scalar_lea.vmem %s1, 64
    %v79 = vld [vmem:[%s78] sm:$0xff]
    %v80 = vld [vmem:[%s78 + $0x8] sm:$0xff]
    %v81 = vld [vmem:[%s78 + $0x10] sm:$0xff]
    %v82 = vld [vmem:[%s78 + $0x18] sm:$0xff]
    %v83 = vld [vmem:[%s78 + $0x20] sm:$0xff]
    %v84 = vld [vmem:[%s78 + $0x28] sm:$0xff]
    %v85 = vld [vmem:[%s78 + $0x30] sm:$0xf]
    %v86 = vld [vmem:[%s78 + $0x38] sm:$0xf]
    %vm87 = vcmask 228352
    %v89 = vsel %vm87, %v54, 0
    %v92 = vsel %vm87, %v55, 0
    %v95 = vsel %vm87, %v56, 0
    %v98 = vsel %vm87, %v57, 0
    %v101 = vsel %vm87, %v58, 0
    %v104 = vsel %vm87, %v59, 0
    %v107 = vsel %vm87, %v60, 0
    %v110 = vsel %vm87, %v61, 0
    %v113 = vsel %vm87, %v62, 0
    %v116 = vsel %vm87, %v63, 0
    %v119 = vsel %vm87, %v64, 0
    %v122 = vsel %vm87, %v65, 0
    %v125 = vsel %vm87, %v66, 0
    %v128 = vsel %vm87, %v67, 0
    %v131 = vsel %vm87, %v68, 0
    %v134 = vsel %vm87, %v69, 0
    %v137 = vsel %vm87, %v70, 0
    %v140 = vsel %vm87, %v71, 0
    %v143 = vsel %vm87, %v72, 0
    %v146 = vsel %vm87, %v73, 0
    %v149 = vsel %vm87, %v74, 0
    %v152 = vsel %vm87, %v75, 0
    %v155 = vsel %vm87, %v76, 0
    %v158 = vsel %vm87, %v77, 0
    %vm160 = vcmask 1043456
    %v162 = vsel %vm160, %v85, 0
    %v165 = vsel %vm160, %v86, 0
    %167 = vmatprep.subr.mxu0 %v80
    %168 = vmatpush1.msra.mxu0 %v79
    %169 = vmatprep.subr.mxu0 %v82
    %170 = vmatpush1.msra.mxu0 %v81
    %171 = vmatprep.subr.mxu0 %v84
    %172 = vmatpush1.msra.mxu0 %v83
    %173 = vmatprep.subr.mxu0 %v165
    %174 = vmatpush1.msra.mxu0 %v162
    %175 = vmatprep.subr.mxu0 0.0
    %176 = vmatpush1.msra.mxu0 0.0
    %177 = vmatprep.subr.mxu0 0.0
    %178 = vmatpush1.msra.mxu0 0.0
    %179 = vmatprep.subr.mxu0 0.0
    %180 = vmatpush1.msra.mxu0 0.0
    %181 = vmatprep.subr.mxu0 0.0
    %182 = vmatpush1.msra.mxu0 0.0
    %183 = vmatprep.subr.mxu0 0.0
    %184 = vmatpush1.msra.mxu0 0.0
    %185 = vmatprep.subr.mxu0 0.0
    %186 = vmatpush1.msra.mxu0 0.0
    %187 = vmatprep.subr.mxu0 0.0
    %188 = vmatpush1.msra.mxu0 0.0
    %189 = vmatprep.subr.mxu0 0.0
    %190 = vmatpush1.msra.mxu0 0.0
    %191 = vmatprep.subr.mxu0 0.0
    %192 = vmatpush1.msra.mxu0 0.0
    %193 = vmatprep.subr.mxu0 0.0
    %194 = vmatpush1.msra.mxu0 0.0
    %195 = vmatprep.subr.mxu0 0.0
    %196 = vmatpush1.msra.mxu0 0.0
    %197 = vmatprep.subr.mxu0 0.0
    %198 = vmatpush1.msra.mxu0 0.0
    %199 = vmatprep.subr.mxu0 0.0
    %200 = vmatpush1.msra.mxu0 0.0
    %201 = vmatprep.subr.mxu0 0.0
    %202 = vmatpush1.msra.mxu0 0.0
    %203 = vmatprep.subr.mxu0 0.0
    %204 = vmatpush1.msra.mxu0 0.0
    %205 = vmatprep.subr.mxu0 0.0
    %206 = vmatpush1.msra.mxu0 0.0
    %207 = vmatprep.subr.mxu0 0.0
    %208 = vmatpush1.msra.mxu0 0.0
    %209 = vmatprep.subr.mxu0 0.0
    %210 = vmatpush1.msra.mxu0 0.0
    %211 = vmatprep.subr.mxu0 0.0
    %212 = vmatpush1.msra.mxu0 0.0
    %213 = vmatprep.subr.mxu0 0.0
    %214 = vmatpush1.msra.mxu0 0.0
    %215 = vmatprep.subr.mxu0 0.0
    %216 = vmatpush1.msra.mxu0 0.0
    %217 = vmatprep.subr.mxu0 0.0
    %218 = vmatpush1.msra.mxu0 0.0
    %219 = vmatprep.subr.mxu0 0.0
    %220 = vmatpush1.msra.mxu0 0.0
    %221 = vmatprep.subr.mxu0 0.0
    %222 = vmatpush1.msra.mxu0 0.0
    %223 = vmatprep.subr.mxu0 0.0
    %224 = vmatpush1.msra.mxu0 0.0
    %225 = vmatprep.subr.mxu0 0.0
    %226 = vmatpush1.msra.mxu0 0.0
    %227 = vmatprep.subr.mxu0 0.0
    %228 = vmatpush1.msra.mxu0 0.0
    %229 = vmatprep.subr.mxu0 0.0
    %230 = vmatpush1.msra.mxu0 0.0
    %231 = vmatprep.mubr.f32.mxu0 0.0
    %232 = vmatmul.mubr.f32.gmra.mrb[0].mxu0 %v89
    %v233 = vpop.f32.mrb[0].mxu0
    %v234 = vadd.f32 0.0, %v233
    %v235 = vpop.f32.mrb[0].mxu0
    %v236 = vadd.f32 0.0, %v235
    %237 = vmatprep.mubr.f32.mxu0 0.0
    %238 = vmatmul.mubr.f32.gmra.mrb[0].mxu0 %v92
    %v239 = vpop.f32.mrb[0].mxu0
    %v240 = vadd.f32 0.0, %v239
    %v241 = vpop.f32.mrb[0].mxu0
    %v242 = vadd.f32 0.0, %v241
    %243 = vmatprep.mubr.f32.mxu0 0.0
    %244 = vmatmul.mubr.f32.gmra.mrb[0].mxu0 %v95
    %v245 = vpop.f32.mrb[0].mxu0
    %v246 = vadd.f32 0.0, %v245
    %v247 = vpop.f32.mrb[0].mxu0
    %v248 = vadd.f32 0.0, %v247
    %249 = vmatprep.mubr.f32.mxu0 0.0
    %250 = vmatmul.mubr.f32.gmra.mrb[0].mxu0 %v98
    %v251 = vpop.f32.mrb[0].mxu0
    %v252 = vadd.f32 0.0, %v251
    %v253 = vpop.f32.mrb[0].mxu0
    %v254 = vadd.f32 0.0, %v253
    %255 = vmatprep.mubr.f32.mxu0 0.0
    %256 = vmatmul.mubr.f32.gmra.mrb[0].mxu0 %v101
    %v257 = vpop.f32.mrb[0].mxu0
    %v258 = vadd.f32 0.0, %v257
    %v259 = vpop.f32.mrb[0].mxu0
    %v260 = vadd.f32 0.0, %v259
    %261 = vmatprep.mubr.f32.mxu0 0.0
    %262 = vmatmul.mubr.f32.gmra.mrb[0].mxu0 %v104
    %v263 = vpop.f32.mrb[0].mxu0
    %v264 = vadd.f32 0.0, %v263
    %v265 = vpop.f32.mrb[0].mxu0
    %v266 = vadd.f32 0.0, %v265
    %267 = vmatprep.mubr.f32.mxu0 0.0
    %268 = vmatmul.mubr.f32.gmra.mrb[0].mxu0 %v107
    %v269 = vpop.f32.mrb[0].mxu0
    %v270 = vadd.f32 0.0, %v269
    %v271 = vpop.f32.mrb[0].mxu0
    %v272 = vadd.f32 0.0, %v271
    %273 = vmatprep.mubr.f32.mxu0 0.0
    %274 = vmatmul.mubr.f32.gmra.mrb[0].mxu0 %v110
    %v275 = vpop.f32.mrb[0].mxu0
    %v276 = vadd.f32 0.0, %v275
    %v277 = vpop.f32.mrb[0].mxu0
    %v278 = vadd.f32 0.0, %v277
    %279 = vmatprep.mubr.f32.mxu0 0.0
    %280 = vmatmul.mubr.f32.gmra.mrb[0].mxu0 %v113
    %v281 = vpop.f32.mrb[0].mxu0
    %v282 = vadd.f32 0.0, %v281
    %v283 = vpop.f32.mrb[0].mxu0
    %v284 = vadd.f32 0.0, %v283
    %285 = vmatprep.mubr.f32.mxu0 0.0
    %286 = vmatmul.mubr.f32.gmra.mrb[0].mxu0 %v116
    %v287 = vpop.f32.mrb[0].mxu0
    %v288 = vadd.f32 0.0, %v287
    %v289 = vpop.f32.mrb[0].mxu0
    %v290 = vadd.f32 0.0, %v289
    %291 = vmatprep.mubr.f32.mxu0 0.0
    %292 = vmatmul.mubr.f32.gmra.mrb[0].mxu0 %v119
    %v293 = vpop.f32.mrb[0].mxu0
    %v294 = vadd.f32 0.0, %v293
    %v295 = vpop.f32.mrb[0].mxu0
    %v296 = vadd.f32 0.0, %v295
    %297 = vmatprep.mubr.f32.mxu0 0.0
    %298 = vmatmul.mubr.f32.gmra.mrb[0].mxu0 %v122
    %v299 = vpop.f32.mrb[0].mxu0
    %v300 = vadd.f32 0.0, %v299
    %v301 = vpop.f32.mrb[0].mxu0
    %v302 = vadd.f32 0.0, %v301
    %303 = vmatprep.mubr.f32.mxu0 0.0
    %304 = vmatmul.mubr.f32.gmra.mrb[0].mxu0 %v125
    %v305 = vpop.f32.mrb[0].mxu0
    %v306 = vadd.f32 0.0, %v305
    %v307 = vpop.f32.mrb[0].mxu0
    %v308 = vadd.f32 0.0, %v307
    %309 = vmatprep.mubr.f32.mxu0 0.0
    %310 = vmatmul.mubr.f32.gmra.mrb[0].mxu0 %v128
    %v311 = vpop.f32.mrb[0].mxu0
    %v312 = vadd.f32 0.0, %v311
    %v313 = vpop.f32.mrb[0].mxu0
    %v314 = vadd.f32 0.0, %v313
    %315 = vmatprep.mubr.f32.mxu0 0.0
    %316 = vmatmul.mubr.f32.gmra.mrb[0].mxu0 %v131
    %v317 = vpop.f32.mrb[0].mxu0
    %v318 = vadd.f32 0.0, %v317
    %v319 = vpop.f32.mrb[0].mxu0
    %v320 = vadd.f32 0.0, %v319
    %321 = vmatprep.mubr.f32.mxu0 0.0
    %322 = vmatmul.mubr.f32.gmra.mrb[0].mxu0 %v134
    %v323 = vpop.f32.mrb[0].mxu0
    %v324 = vadd.f32 0.0, %v323
    %v325 = vpop.f32.mrb[0].mxu0
    %v326 = vadd.f32 0.0, %v325
    %327 = vmatprep.mubr.f32.mxu0 0.0
    %328 = vmatmul.mubr.f32.gmra.mrb[0].mxu0 %v137
    %v329 = vpop.f32.mrb[0].mxu0
    %v330 = vadd.f32 0.0, %v329
    %v331 = vpop.f32.mrb[0].mxu0
    %v332 = vadd.f32 0.0, %v331
    %333 = vmatprep.mubr.f32.mxu0 0.0
    %334 = vmatmul.mubr.f32.gmra.mrb[0].mxu0 %v140
    %v335 = vpop.f32.mrb[0].mxu0
    %v336 = vadd.f32 0.0, %v335
    %v337 = vpop.f32.mrb[0].mxu0
    %v338 = vadd.f32 0.0, %v337
    %339 = vmatprep.mubr.f32.mxu0 0.0
    %340 = vmatmul.mubr.f32.gmra.mrb[0].mxu0 %v143
    %v341 = vpop.f32.mrb[0].mxu0
    %v342 = vadd.f32 0.0, %v341
    %v343 = vpop.f32.mrb[0].mxu0
    %v344 = vadd.f32 0.0, %v343
    %345 = vmatprep.mubr.f32.mxu0 0.0
    %346 = vmatmul.mubr.f32.gmra.mrb[0].mxu0 %v146
    %v347 = vpop.f32.mrb[0].mxu0
    %v348 = vadd.f32 0.0, %v347
    %v349 = vpop.f32.mrb[0].mxu0
    %v350 = vadd.f32 0.0, %v349
    %351 = vmatprep.mubr.f32.mxu0 0.0
    %352 = vmatmul.mubr.f32.gmra.mrb[0].mxu0 %v149
    %v353 = vpop.f32.mrb[0].mxu0
    %v354 = vadd.f32 0.0, %v353
    %v355 = vpop.f32.mrb[0].mxu0
    %v356 = vadd.f32 0.0, %v355
    %357 = vmatprep.mubr.f32.mxu0 0.0
    %358 = vmatmul.mubr.f32.gmra.mrb[0].mxu0 %v152
    %v359 = vpop.f32.mrb[0].mxu0
    %v360 = vadd.f32 0.0, %v359
    %v361 = vpop.f32.mrb[0].mxu0
    %v362 = vadd.f32 0.0, %v361
    %363 = vmatprep.mubr.f32.mxu0 0.0
    %364 = vmatmul.mubr.f32.gmra.mrb[0].mxu0 %v155
    %v365 = vpop.f32.mrb[0].mxu0
    %v366 = vadd.f32 0.0, %v365
    %v367 = vpop.f32.mrb[0].mxu0
    %v368 = vadd.f32 0.0, %v367
    %369 = vmatprep.mubr.f32.mxu0 0.0
    %370 = vmatmul.mubr.f32.gmra.mrb[0].mxu0 %v158
    %v371 = vpop.f32.mrb[0].mxu0
    %v372 = vadd.f32 0.0, %v371
    %v373 = vpop.f32.mrb[0].mxu0
    %v374 = vadd.f32 0.0, %v373
    %375 = vdwg.mxu0
    %v377 = vsel %vm87, %v21, 0
    %v380 = vsel %vm87, %v22, 0
    %v383 = vsel %vm87, %v23, 0
    %v386 = vsel %vm87, %v24, 0
    %v389 = vsel %vm87, %v25, 0
    %v392 = vsel %vm87, %v26, 0
    %v395 = vsel %vm87, %v27, 0
    %v398 = vsel %vm87, %v28, 0
    %v401 = vsel %vm87, %v29, 0
    %v404 = vsel %vm87, %v30, 0
    %v407 = vsel %vm87, %v31, 0
    %v410 = vsel %vm87, %v32, 0
    %v413 = vsel %vm87, %v33, 0
    %v416 = vsel %vm87, %v34, 0
    %v419 = vsel %vm87, %v35, 0
    %v422 = vsel %vm87, %v36, 0
    %v425 = vsel %vm87, %v37, 0
    %v428 = vsel %vm87, %v38, 0
    %v431 = vsel %vm87, %v39, 0
    %v434 = vsel %vm87, %v40, 0
    %v437 = vsel %vm87, %v41, 0
    %v440 = vsel %vm87, %v42, 0
    %v443 = vsel %vm87, %v43, 0
    %v446 = vsel %vm87, %v44, 0
    %v449 = vsel %vm160, %v51, 0
    %v452 = vsel %vm160, %v52, 0
    %454 = vmatprep.subr.mxu0 %v46
    %455 = vmatpush1.msra.mxu0 %v45
    %456 = vmatprep.subr.mxu0 %v48
    %457 = vmatpush1.msra.mxu0 %v47
    %458 = vmatprep.subr.mxu0 %v50
    %459 = vmatpush1.msra.mxu0 %v49
    %460 = vmatprep.subr.mxu0 %v452
    %461 = vmatpush1.msra.mxu0 %v449
    %462 = vmatprep.subr.mxu0 0.0
    %463 = vmatpush1.msra.mxu0 0.0
    %464 = vmatprep.subr.mxu0 0.0
    %465 = vmatpush1.msra.mxu0 0.0
    %466 = vmatprep.subr.mxu0 0.0
    %467 = vmatpush1.msra.mxu0 0.0
    %468 = vmatprep.subr.mxu0 0.0
    %469 = vmatpush1.msra.mxu0 0.0
    %470 = vmatprep.subr.mxu0 0.0
    %471 = vmatpush1.msra.mxu0 0.0
    %472 = vmatprep.subr.mxu0 0.0
    %473 = vmatpush1.msra.mxu0 0.0
    %474 = vmatprep.subr.mxu0 0.0
    %475 = vmatpush1.msra.mxu0 0.0
    %476 = vmatprep.subr.mxu0 0.0
    %477 = vmatpush1.msra.mxu0 0.0
    %478 = vmatprep.subr.mxu0 0.0
    %479 = vmatpush1.msra.mxu0 0.0
    %480 = vmatprep.subr.mxu0 0.0
    %481 = vmatpush1.msra.mxu0 0.0
    %482 = vmatprep.subr.mxu0 0.0
    %483 = vmatpush1.msra.mxu0 0.0
    %484 = vmatprep.subr.mxu0 0.0
    %485 = vmatpush1.msra.mxu0 0.0
    %486 = vmatprep.subr.mxu0 0.0
    %487 = vmatpush1.msra.mxu0 0.0
    %488 = vmatprep.subr.mxu0 0.0
    %489 = vmatpush1.msra.mxu0 0.0
    %490 = vmatprep.subr.mxu0 0.0
    %491 = vmatpush1.msra.mxu0 0.0
    %492 = vmatprep.subr.mxu0 0.0
    %493 = vmatpush1.msra.mxu0 0.0
    %494 = vmatprep.subr.mxu0 0.0
    %495 = vmatpush1.msra.mxu0 0.0
    %496 = vmatprep.subr.mxu0 0.0
    %497 = vmatpush1.msra.mxu0 0.0
    %498 = vmatprep.subr.mxu0 0.0
    %499 = vmatpush1.msra.mxu0 0.0
    %500 = vmatprep.subr.mxu0 0.0
    %501 = vmatpush1.msra.mxu0 0.0
    %502 = vmatprep.subr.mxu0 0.0
    %503 = vmatpush1.msra.mxu0 0.0
    %504 = vmatprep.subr.mxu0 0.0
    %505 = vmatpush1.msra.mxu0 0.0
    %506 = vmatprep.subr.mxu0 0.0
    %507 = vmatpush1.msra.mxu0 0.0
    %508 = vmatprep.subr.mxu0 0.0
    %509 = vmatpush1.msra.mxu0 0.0
    %510 = vmatprep.subr.mxu0 0.0
    %511 = vmatpush1.msra.mxu0 0.0
    %512 = vmatprep.subr.mxu0 0.0
    %513 = vmatpush1.msra.mxu0 0.0
    %514 = vmatprep.subr.mxu0 0.0
    %515 = vmatpush1.msra.mxu0 0.0
    %516 = vmatprep.subr.mxu0 0.0
    %517 = vmatpush1.msra.mxu0 0.0
    %518 = vmatprep.mubr.f32.mxu0 0.0
    %519 = vmatmul.mubr.f32.gmra.mrb[0].mxu0 %v377
    %v520 = vpop.f32.mrb[0].mxu0
    %v521 = vadd.f32 %v234, %v520
    %v522 = vpop.f32.mrb[0].mxu0
    %v523 = vadd.f32 %v236, %v522
    %524 = vmatprep.mubr.f32.mxu0 0.0
    %525 = vmatmul.mubr.f32.gmra.mrb[0].mxu0 %v380
    %v526 = vpop.f32.mrb[0].mxu0
    %v527 = vadd.f32 %v240, %v526
    %v528 = vpop.f32.mrb[0].mxu0
    %v529 = vadd.f32 %v242, %v528
    %530 = vmatprep.mubr.f32.mxu0 0.0
    %531 = vmatmul.mubr.f32.gmra.mrb[0].mxu0 %v383
    %v532 = vpop.f32.mrb[0].mxu0
    %v533 = vadd.f32 %v246, %v532
    %v534 = vpop.f32.mrb[0].mxu0
    %v535 = vadd.f32 %v248, %v534
    %536 = vmatprep.mubr.f32.mxu0 0.0
    %537 = vmatmul.mubr.f32.gmra.mrb[0].mxu0 %v386
    %v538 = vpop.f32.mrb[0].mxu0
    %v539 = vadd.f32 %v252, %v538
    %v540 = vpop.f32.mrb[0].mxu0
    %v541 = vadd.f32 %v254, %v540
    %542 = vmatprep.mubr.f32.mxu0 0.0
    %543 = vmatmul.mubr.f32.gmra.mrb[0].mxu0 %v389
    %v544 = vpop.f32.mrb[0].mxu0
    %v545 = vadd.f32 %v258, %v544
    %v546 = vpop.f32.mrb[0].mxu0
    %v547 = vadd.f32 %v260, %v546
    %548 = vmatprep.mubr.f32.mxu0 0.0
    %549 = vmatmul.mubr.f32.gmra.mrb[0].mxu0 %v392
    %v550 = vpop.f32.mrb[0].mxu0
    %v551 = vadd.f32 %v264, %v550
    %v552 = vpop.f32.mrb[0].mxu0
    %v553 = vadd.f32 %v266, %v552
    %554 = vmatprep.mubr.f32.mxu0 0.0
    %555 = vmatmul.mubr.f32.gmra.mrb[0].mxu0 %v395
    %v556 = vpop.f32.mrb[0].mxu0
    %v557 = vadd.f32 %v270, %v556
    %v558 = vpop.f32.mrb[0].mxu0
    %v559 = vadd.f32 %v272, %v558
    %560 = vmatprep.mubr.f32.mxu0 0.0
    %561 = vmatmul.mubr.f32.gmra.mrb[0].mxu0 %v398
    %v562 = vpop.f32.mrb[0].mxu0
    %v563 = vadd.f32 %v276, %v562
    %v564 = vpop.f32.mrb[0].mxu0
    %v565 = vadd.f32 %v278, %v564
    %566 = vmatprep.mubr.f32.mxu0 0.0
    %567 = vmatmul.mubr.f32.gmra.mrb[0].mxu0 %v401
    %v568 = vpop.f32.mrb[0].mxu0
    %v569 = vadd.f32 %v282, %v568
    %v570 = vpop.f32.mrb[0].mxu0
    %v571 = vadd.f32 %v284, %v570
    %572 = vmatprep.mubr.f32.mxu0 0.0
    %573 = vmatmul.mubr.f32.gmra.mrb[0].mxu0 %v404
    %v574 = vpop.f32.mrb[0].mxu0
    %v575 = vadd.f32 %v288, %v574
    %v576 = vpop.f32.mrb[0].mxu0
    %v577 = vadd.f32 %v290, %v576
    %578 = vmatprep.mubr.f32.mxu0 0.0
    %579 = vmatmul.mubr.f32.gmra.mrb[0].mxu0 %v407
    %v580 = vpop.f32.mrb[0].mxu0
    %v581 = vadd.f32 %v294, %v580
    %v582 = vpop.f32.mrb[0].mxu0
    %v583 = vadd.f32 %v296, %v582
    %584 = vmatprep.mubr.f32.mxu0 0.0
    %585 = vmatmul.mubr.f32.gmra.mrb[0].mxu0 %v410
    %v586 = vpop.f32.mrb[0].mxu0
    %v587 = vadd.f32 %v300, %v586
    %v588 = vpop.f32.mrb[0].mxu0
    %v589 = vadd.f32 %v302, %v588
    %590 = vmatprep.mubr.f32.mxu0 0.0
    %591 = vmatmul.mubr.f32.gmra.mrb[0].mxu0 %v413
    %v592 = vpop.f32.mrb[0].mxu0
    %v593 = vadd.f32 %v306, %v592
    %v594 = vpop.f32.mrb[0].mxu0
    %v595 = vadd.f32 %v308, %v594
    %596 = vmatprep.mubr.f32.mxu0 0.0
    %597 = vmatmul.mubr.f32.gmra.mrb[0].mxu0 %v416
    %v598 = vpop.f32.mrb[0].mxu0
    %v599 = vadd.f32 %v312, %v598
    %v600 = vpop.f32.mrb[0].mxu0
    %v601 = vadd.f32 %v314, %v600
    %602 = vmatprep.mubr.f32.mxu0 0.0
    %603 = vmatmul.mubr.f32.gmra.mrb[0].mxu0 %v419
    %v604 = vpop.f32.mrb[0].mxu0
    %v605 = vadd.f32 %v318, %v604
    %v606 = vpop.f32.mrb[0].mxu0
    %v607 = vadd.f32 %v320, %v606
    %608 = vmatprep.mubr.f32.mxu0 0.0
    %609 = vmatmul.mubr.f32.gmra.mrb[0].mxu0 %v422
    %v610 = vpop.f32.mrb[0].mxu0
    %v611 = vadd.f32 %v324, %v610
    %v612 = vpop.f32.mrb[0].mxu0
    %v613 = vadd.f32 %v326, %v612
    %614 = vmatprep.mubr.f32.mxu0 0.0
    %615 = vmatmul.mubr.f32.gmra.mrb[0].mxu0 %v425
    %v616 = vpop.f32.mrb[0].mxu0
    %v617 = vadd.f32 %v330, %v616
    %v618 = vpop.f32.mrb[0].mxu0
    %v619 = vadd.f32 %v332, %v618
    %620 = vmatprep.mubr.f32.mxu0 0.0
    %621 = vmatmul.mubr.f32.gmra.mrb[0].mxu0 %v428
    %v622 = vpop.f32.mrb[0].mxu0
    %v623 = vadd.f32 %v336, %v622
    %v624 = vpop.f32.mrb[0].mxu0
    %v625 = vadd.f32 %v338, %v624
    %626 = vmatprep.mubr.f32.mxu0 0.0
    %627 = vmatmul.mubr.f32.gmra.mrb[0].mxu0 %v431
    %v628 = vpop.f32.mrb[0].mxu0
    %v629 = vadd.f32 %v342, %v628
    %v630 = vpop.f32.mrb[0].mxu0
    %v631 = vadd.f32 %v344, %v630
    %632 = vmatprep.mubr.f32.mxu0 0.0
    %633 = vmatmul.mubr.f32.gmra.mrb[0].mxu0 %v434
    %v634 = vpop.f32.mrb[0].mxu0
    %v635 = vadd.f32 %v348, %v634
    %v636 = vpop.f32.mrb[0].mxu0
    %v637 = vadd.f32 %v350, %v636
    %638 = vmatprep.mubr.f32.mxu0 0.0
    %639 = vmatmul.mubr.f32.gmra.mrb[0].mxu0 %v437
    %v640 = vpop.f32.mrb[0].mxu0
    %v641 = vadd.f32 %v354, %v640
    %v642 = vpop.f32.mrb[0].mxu0
    %v643 = vadd.f32 %v356, %v642
    %644 = vmatprep.mubr.f32.mxu0 0.0
    %645 = vmatmul.mubr.f32.gmra.mrb[0].mxu0 %v440
    %v646 = vpop.f32.mrb[0].mxu0
    %v647 = vadd.f32 %v360, %v646
    %v648 = vpop.f32.mrb[0].mxu0
    %v649 = vadd.f32 %v362, %v648
    %650 = vmatprep.mubr.f32.mxu0 0.0
    %651 = vmatmul.mubr.f32.gmra.mrb[0].mxu0 %v443
    %v652 = vpop.f32.mrb[0].mxu0
    %v653 = vadd.f32 %v366, %v652
    %v654 = vpop.f32.mrb[0].mxu0
    %v655 = vadd.f32 %v368, %v654
    %656 = vmatprep.mubr.f32.mxu0 0.0
    %657 = vmatmul.mubr.f32.gmra.mrb[0].mxu0 %v446
    %v658 = vpop.f32.mrb[0].mxu0
    %v659 = vadd.f32 %v372, %v658
    %v660 = vpop.f32.mrb[0].mxu0
    %v661 = vadd.f32 %v374, %v660
    %662 = vdwg.mxu0
    %s663 = scalar_lea.vmem %s0, 16
    %v664 = vld [vmem:[%s663] sm:$0xff]
    %v665 = vld [vmem:[%s663 + $0x8] sm:$0xff]
    %v666 = vld [vmem:[%s663 + $0x10] sm:$0xff]
    %v667 = vld [vmem:[%s663 + $0x18] sm:$0xff]
    %v668 = vld [vmem:[%s663 + $0x20] sm:$0xff]
    %v669 = vld [vmem:[%s663 + $0x28] sm:$0xff]
    %v670 = vld [vmem:[%s663 + $0x30] sm:$0xff]
    %v671 = vld [vmem:[%s663 + $0x38] sm:$0xff]
    %v672 = vld [vmem:[%s663 + $0x40] sm:$0xff]
    %v673 = vld [vmem:[%s663 + $0x48] sm:$0xff]
    %v674 = vld [vmem:[%s663 + $0x50] sm:$0xff]
    %v675 = vld [vmem:[%s663 + $0x58] sm:$0xff]
    %v676 = vld [vmem:[%s663 + $0x60] sm:$0xff]
    %v677 = vld [vmem:[%s663 + $0x68] sm:$0xff]
    %v678 = vld [vmem:[%s663 + $0x70] sm:$0xff]
    %v679 = vld [vmem:[%s663 + $0x78] sm:$0xff]
    %v680 = vld [vmem:[%s663 + $0x80] sm:$0xff]
    %v681 = vld [vmem:[%s663 + $0x88] sm:$0xff]
    %v682 = vld [vmem:[%s663 + $0x90] sm:$0xff]
    %v683 = vld [vmem:[%s663 + $0x98] sm:$0xff]
    %v684 = vld [vmem:[%s663 + $0xa0] sm:$0xff]
    %v685 = vld [vmem:[%s663 + $0xa8] sm:$0xff]
    %v686 = vld [vmem:[%s663 + $0xb0] sm:$0xff]
    %v687 = vld [vmem:[%s663 + $0xb8] sm:$0xff]
    %s688 = scalar_lea.vmem %s1, 128
    %v689 = vld [vmem:[%s688] sm:$0xff]
    %v690 = vld [vmem:[%s688 + $0x8] sm:$0xff]
    %v691 = vld [vmem:[%s688 + $0x10] sm:$0xff]
    %v692 = vld [vmem:[%s688 + $0x18] sm:$0xff]
    %v693 = vld [vmem:[%s688 + $0x20] sm:$0xff]
    %v694 = vld [vmem:[%s688 + $0x28] sm:$0xff]
    %v695 = vld [vmem:[%s688 + $0x30] sm:$0xf]
    %v696 = vld [vmem:[%s688 + $0x38] sm:$0xf]
    %v698 = vsel %vm87, %v664, 0
    %v701 = vsel %vm87, %v665, 0
    %v704 = vsel %vm87, %v666, 0
    %v707 = vsel %vm87, %v667, 0
    %v710 = vsel %vm87, %v668, 0
    %v713 = vsel %vm87, %v669, 0
    %v716 = vsel %vm87, %v670, 0
    %v719 = vsel %vm87, %v671, 0
    %v722 = vsel %vm87, %v672, 0
    %v725 = vsel %vm87, %v673, 0
    %v728 = vsel %vm87, %v674, 0
    %v731 = vsel %vm87, %v675, 0
    %v734 = vsel %vm87, %v676, 0
    %v737 = vsel %vm87, %v677, 0
    %v740 = vsel %vm87, %v678, 0
    %v743 = vsel %vm87, %v679, 0
    %v746 = vsel %vm87, %v680, 0
    %v749 = vsel %vm87, %v681, 0
    %v752 = vsel %vm87, %v682, 0
    %v755 = vsel %vm87, %v683, 0
    %v758 = vsel %vm87, %v684, 0
    %v761 = vsel %vm87, %v685, 0
    %v764 = vsel %vm87, %v686, 0
    %v767 = vsel %vm87, %v687, 0
    %v770 = vsel %vm160, %v695, 0
    %v773 = vsel %vm160, %v696, 0
    %775 = vmatprep.subr.mxu0 %v690
    %776 = vmatpush1.msra.mxu0 %v689
    %777 = vmatprep.subr.mxu0 %v692
    %778 = vmatpush1.msra.mxu0 %v691
    %779 = vmatprep.subr.mxu0 %v694
    %780 = vmatpush1.msra.mxu0 %v693
    %781 = vmatprep.subr.mxu0 %v773
    %782 = vmatpush1.msra.mxu0 %v770
    %783 = vmatprep.subr.mxu0 0.0
    %784 = vmatpush1.msra.mxu0 0.0
    %785 = vmatprep.subr.mxu0 0.0
    %786 = vmatpush1.msra.mxu0 0.0
    %787 = vmatprep.subr.mxu0 0.0
    %788 = vmatpush1.msra.mxu0 0.0
    %789 = vmatprep.subr.mxu0 0.0
    %790 = vmatpush1.msra.mxu0 0.0
    %791 = vmatprep.subr.mxu0 0.0
    %792 = vmatpush1.msra.mxu0 0.0
    %793 = vmatprep.subr.mxu0 0.0
    %794 = vmatpush1.msra.mxu0 0.0
    %795 = vmatprep.subr.mxu0 0.0
    %796 = vmatpush1.msra.mxu0 0.0
    %797 = vmatprep.subr.mxu0 0.0
    %798 = vmatpush1.msra.mxu0 0.0
    %799 = vmatprep.subr.mxu0 0.0
    %800 = vmatpush1.msra.mxu0 0.0
    %801 = vmatprep.subr.mxu0 0.0
    %802 = vmatpush1.msra.mxu0 0.0
    %803 = vmatprep.subr.mxu0 0.0
    %804 = vmatpush1.msra.mxu0 0.0
    %805 = vmatprep.subr.mxu0 0.0
    %806 = vmatpush1.msra.mxu0 0.0
    %807 = vmatprep.subr.mxu0 0.0
    %808 = vmatpush1.msra.mxu0 0.0
    %809 = vmatprep.subr.mxu0 0.0
    %810 = vmatpush1.msra.mxu0 0.0
    %811 = vmatprep.subr.mxu0 0.0
    %812 = vmatpush1.msra.mxu0 0.0
    %813 = vmatprep.subr.mxu0 0.0
    %814 = vmatpush1.msra.mxu0 0.0
    %815 = vmatprep.subr.mxu0 0.0
    %816 = vmatpush1.msra.mxu0 0.0
    %817 = vmatprep.subr.mxu0 0.0
    %818 = vmatpush1.msra.mxu0 0.0
    %819 = vmatprep.subr.mxu0 0.0
    %820 = vmatpush1.msra.mxu0 0.0
    %821 = vmatprep.subr.mxu0 0.0
    %822 = vmatpush1.msra.mxu0 0.0
    %823 = vmatprep.subr.mxu0 0.0
    %824 = vmatpush1.msra.mxu0 0.0
    %825 = vmatprep.subr.mxu0 0.0
    %826 = vmatpush1.msra.mxu0 0.0
    %827 = vmatprep.subr.mxu0 0.0
    %828 = vmatpush1.msra.mxu0 0.0
    %829 = vmatprep.subr.mxu0 0.0
    %830 = vmatpush1.msra.mxu0 0.0
    %831 = vmatprep.subr.mxu0 0.0
    %832 = vmatpush1.msra.mxu0 0.0
    %833 = vmatprep.subr.mxu0 0.0
    %834 = vmatpush1.msra.mxu0 0.0
    %835 = vmatprep.subr.mxu0 0.0
    %836 = vmatpush1.msra.mxu0 0.0
    %837 = vmatprep.subr.mxu0 0.0
    %838 = vmatpush1.msra.mxu0 0.0
    %839 = vmatprep.mubr.f32.mxu0 0.0
    %840 = vmatmul.mubr.f32.gmra.mrb[0].mxu0 %v698
    %v841 = vpop.f32.mrb[0].mxu0
    %v842 = vadd.f32 0.0, %v841
    %v843 = vpop.f32.mrb[0].mxu0
    %v844 = vadd.f32 0.0, %v843
    %845 = vmatprep.mubr.f32.mxu0 0.0
    %846 = vmatmul.mubr.f32.gmra.mrb[0].mxu0 %v701
    %v847 = vpop.f32.mrb[0].mxu0
    %v848 = vadd.f32 0.0, %v847
    %v849 = vpop.f32.mrb[0].mxu0
    %v850 = vadd.f32 0.0, %v849
    %851 = vmatprep.mubr.f32.mxu0 0.0
    %852 = vmatmul.mubr.f32.gmra.mrb[0].mxu0 %v704
    %v853 = vpop.f32.mrb[0].mxu0
    %v854 = vadd.f32 0.0, %v853
    %v855 = vpop.f32.mrb[0].mxu0
    %v856 = vadd.f32 0.0, %v855
    %857 = vmatprep.mubr.f32.mxu0 0.0
    %858 = vmatmul.mubr.f32.gmra.mrb[0].mxu0 %v707
    %v859 = vpop.f32.mrb[0].mxu0
    %v860 = vadd.f32 0.0, %v859
    %v861 = vpop.f32.mrb[0].mxu0
    %v862 = vadd.f32 0.0, %v861
    %863 = vmatprep.mubr.f32.mxu0 0.0
    %864 = vmatmul.mubr.f32.gmra.mrb[0].mxu0 %v710
    %v865 = vpop.f32.mrb[0].mxu0
    %v866 = vadd.f32 0.0, %v865
    %v867 = vpop.f32.mrb[0].mxu0
    %v868 = vadd.f32 0.0, %v867
    %869 = vmatprep.mubr.f32.mxu0 0.0
    %870 = vmatmul.mubr.f32.gmra.mrb[0].mxu0 %v713
    %v871 = vpop.f32.mrb[0].mxu0
    %v872 = vadd.f32 0.0, %v871
    %v873 = vpop.f32.mrb[0].mxu0
    %v874 = vadd.f32 0.0, %v873
    %875 = vmatprep.mubr.f32.mxu0 0.0
    %876 = vmatmul.mubr.f32.gmra.mrb[0].mxu0 %v716
    %v877 = vpop.f32.mrb[0].mxu0
    %v878 = vadd.f32 0.0, %v877
    %v879 = vpop.f32.mrb[0].mxu0
    %v880 = vadd.f32 0.0, %v879
    %881 = vmatprep.mubr.f32.mxu0 0.0
    %882 = vmatmul.mubr.f32.gmra.mrb[0].mxu0 %v719
    %v883 = vpop.f32.mrb[0].mxu0
    %v884 = vadd.f32 0.0, %v883
    %v885 = vpop.f32.mrb[0].mxu0
    %v886 = vadd.f32 0.0, %v885
    %887 = vmatprep.mubr.f32.mxu0 0.0
    %888 = vmatmul.mubr.f32.gmra.mrb[0].mxu0 %v722
    %v889 = vpop.f32.mrb[0].mxu0
    %v890 = vadd.f32 0.0, %v889
    %v891 = vpop.f32.mrb[0].mxu0
    %v892 = vadd.f32 0.0, %v891
    %893 = vmatprep.mubr.f32.mxu0 0.0
    %894 = vmatmul.mubr.f32.gmra.mrb[0].mxu0 %v725
    %v895 = vpop.f32.mrb[0].mxu0
    %v896 = vadd.f32 0.0, %v895
    %v897 = vpop.f32.mrb[0].mxu0
    %v898 = vadd.f32 0.0, %v897
    %899 = vmatprep.mubr.f32.mxu0 0.0
    %900 = vmatmul.mubr.f32.gmra.mrb[0].mxu0 %v728
    %v901 = vpop.f32.mrb[0].mxu0
    %v902 = vadd.f32 0.0, %v901
    %v903 = vpop.f32.mrb[0].mxu0
    %v904 = vadd.f32 0.0, %v903
    %905 = vmatprep.mubr.f32.mxu0 0.0
    %906 = vmatmul.mubr.f32.gmra.mrb[0].mxu0 %v731
    %v907 = vpop.f32.mrb[0].mxu0
    %v908 = vadd.f32 0.0, %v907
    %v909 = vpop.f32.mrb[0].mxu0
    %v910 = vadd.f32 0.0, %v909
    %911 = vmatprep.mubr.f32.mxu0 0.0
    %912 = vmatmul.mubr.f32.gmra.mrb[0].mxu0 %v734
    %v913 = vpop.f32.mrb[0].mxu0
    %v914 = vadd.f32 0.0, %v913
    %v915 = vpop.f32.mrb[0].mxu0
    %v916 = vadd.f32 0.0, %v915
    %917 = vmatprep.mubr.f32.mxu0 0.0
    %918 = vmatmul.mubr.f32.gmra.mrb[0].mxu0 %v737
    %v919 = vpop.f32.mrb[0].mxu0
    %v920 = vadd.f32 0.0, %v919
    %v921 = vpop.f32.mrb[0].mxu0
    %v922 = vadd.f32 0.0, %v921
    %923 = vmatprep.mubr.f32.mxu0 0.0
    %924 = vmatmul.mubr.f32.gmra.mrb[0].mxu0 %v740
    %v925 = vpop.f32.mrb[0].mxu0
    %v926 = vadd.f32 0.0, %v925
    %v927 = vpop.f32.mrb[0].mxu0
    %v928 = vadd.f32 0.0, %v927
    %929 = vmatprep.mubr.f32.mxu0 0.0
    %930 = vmatmul.mubr.f32.gmra.mrb[0].mxu0 %v743
    %v931 = vpop.f32.mrb[0].mxu0
    %v932 = vadd.f32 0.0, %v931
    %v933 = vpop.f32.mrb[0].mxu0
    %v934 = vadd.f32 0.0, %v933
    %935 = vmatprep.mubr.f32.mxu0 0.0
    %936 = vmatmul.mubr.f32.gmra.mrb[0].mxu0 %v746
    %v937 = vpop.f32.mrb[0].mxu0
    %v938 = vadd.f32 0.0, %v937
    %v939 = vpop.f32.mrb[0].mxu0
    %v940 = vadd.f32 0.0, %v939
    %941 = vmatprep.mubr.f32.mxu0 0.0
    %942 = vmatmul.mubr.f32.gmra.mrb[0].mxu0 %v749
    %v943 = vpop.f32.mrb[0].mxu0
    %v944 = vadd.f32 0.0, %v943
    %v945 = vpop.f32.mrb[0].mxu0
    %v946 = vadd.f32 0.0, %v945
    %947 = vmatprep.mubr.f32.mxu0 0.0
    %948 = vmatmul.mubr.f32.gmra.mrb[0].mxu0 %v752
    %v949 = vpop.f32.mrb[0].mxu0
    %v950 = vadd.f32 0.0, %v949
    %v951 = vpop.f32.mrb[0].mxu0
    %v952 = vadd.f32 0.0, %v951
    %953 = vmatprep.mubr.f32.mxu0 0.0
    %954 = vmatmul.mubr.f32.gmra.mrb[0].mxu0 %v755
    %v955 = vpop.f32.mrb[0].mxu0
    %v956 = vadd.f32 0.0, %v955
    %v957 = vpop.f32.mrb[0].mxu0
    %v958 = vadd.f32 0.0, %v957
    %959 = vmatprep.mubr.f32.mxu0 0.0
    %960 = vmatmul.mubr.f32.gmra.mrb[0].mxu0 %v758
    %v961 = vpop.f32.mrb[0].mxu0
    %v962 = vadd.f32 0.0, %v961
    %v963 = vpop.f32.mrb[0].mxu0
    %v964 = vadd.f32 0.0, %v963
    %965 = vmatprep.mubr.f32.mxu0 0.0
    %966 = vmatmul.mubr.f32.gmra.mrb[0].mxu0 %v761
    %v967 = vpop.f32.mrb[0].mxu0
    %v968 = vadd.f32 0.0, %v967
    %v969 = vpop.f32.mrb[0].mxu0
    %v970 = vadd.f32 0.0, %v969
    %971 = vmatprep.mubr.f32.mxu0 0.0
    %972 = vmatmul.mubr.f32.gmra.mrb[0].mxu0 %v764
    %v973 = vpop.f32.mrb[0].mxu0
    %v974 = vadd.f32 0.0, %v973
    %v975 = vpop.f32.mrb[0].mxu0
    %v976 = vadd.f32 0.0, %v975
    %977 = vmatprep.mubr.f32.mxu0 0.0
    %978 = vmatmul.mubr.f32.gmra.mrb[0].mxu0 %v767
    %v979 = vpop.f32.mrb[0].mxu0
    %v980 = vadd.f32 0.0, %v979
    %v981 = vpop.f32.mrb[0].mxu0
    %v982 = vadd.f32 0.0, %v981
    %983 = vdwg.mxu0
    %v984 = vadd.f32 %v521, %v842
    %v985 = vadd.f32 %v523, %v844
    %v986 = vadd.f32 %v527, %v848
    %v987 = vadd.f32 %v529, %v850
    %v988 = vadd.f32 %v533, %v854
    %v989 = vadd.f32 %v535, %v856
    %v990 = vadd.f32 %v539, %v860
    %v991 = vadd.f32 %v541, %v862
    %v992 = vadd.f32 %v545, %v866
    %v993 = vadd.f32 %v547, %v868
    %v994 = vadd.f32 %v551, %v872
    %v995 = vadd.f32 %v553, %v874
    %v996 = vadd.f32 %v557, %v878
    %v997 = vadd.f32 %v559, %v880
    %v998 = vadd.f32 %v563, %v884
    %v999 = vadd.f32 %v565, %v886
    %v1000 = vadd.f32 %v569, %v890
    %v1001 = vadd.f32 %v571, %v892
    %v1002 = vadd.f32 %v575, %v896
    %v1003 = vadd.f32 %v577, %v898
    %v1004 = vadd.f32 %v581, %v902
    %v1005 = vadd.f32 %v583, %v904
    %v1006 = vadd.f32 %v587, %v908
    %v1007 = vadd.f32 %v589, %v910
    %v1008 = vadd.f32 %v593, %v914
    %v1009 = vadd.f32 %v595, %v916
    %v1010 = vadd.f32 %v599, %v920
    %v1011 = vadd.f32 %v601, %v922
    %v1012 = vadd.f32 %v605, %v926
    %v1013 = vadd.f32 %v607, %v928
    %v1014 = vadd.f32 %v611, %v932
    %v1015 = vadd.f32 %v613, %v934
    %v1016 = vadd.f32 %v617, %v938
    %v1017 = vadd.f32 %v619, %v940
    %v1018 = vadd.f32 %v623, %v944
    %v1019 = vadd.f32 %v625, %v946
    %v1020 = vadd.f32 %v629, %v950
    %v1021 = vadd.f32 %v631, %v952
    %v1022 = vadd.f32 %v635, %v956
    %v1023 = vadd.f32 %v637, %v958
    %v1024 = vadd.f32 %v641, %v962
    %v1025 = vadd.f32 %v643, %v964
    %v1026 = vadd.f32 %v647, %v968
    %v1027 = vadd.f32 %v649, %v970
    %v1028 = vadd.f32 %v653, %v974
    %v1029 = vadd.f32 %v655, %v976
    %v1030 = vadd.f32 %v659, %v980
    %v1031 = vadd.f32 %v661, %v982
    %s1032 = scalar_lea.vmem %s0, 24
    %v1033 = vld [vmem:[%s1032] sm:$0xff]
    %v1034 = vld [vmem:[%s1032 + $0x8] sm:$0xff]
    %v1035 = vld [vmem:[%s1032 + $0x10] sm:$0xff]
    %v1036 = vld [vmem:[%s1032 + $0x18] sm:$0xff]
    %v1037 = vld [vmem:[%s1032 + $0x20] sm:$0xff]
    %v1038 = vld [vmem:[%s1032 + $0x28] sm:$0xff]
    %v1039 = vld [vmem:[%s1032 + $0x30] sm:$0xff]
    %v1040 = vld [vmem:[%s1032 + $0x38] sm:$0xff]
    %v1041 = vld [vmem:[%s1032 + $0x40] sm:$0xff]
    %v1042 = vld [vmem:[%s1032 + $0x48] sm:$0xff]
    %v1043 = vld [vmem:[%s1032 + $0x50] sm:$0xff]
    %v1044 = vld [vmem:[%s1032 + $0x58] sm:$0xff]
    %v1045 = vld [vmem:[%s1032 + $0x60] sm:$0xff]
    %v1046 = vld [vmem:[%s1032 + $0x68] sm:$0xff]
    %v1047 = vld [vmem:[%s1032 + $0x70] sm:$0xff]
    %v1048 = vld [vmem:[%s1032 + $0x78] sm:$0xff]
    %v1049 = vld [vmem:[%s1032 + $0x80] sm:$0xff]
    %v1050 = vld [vmem:[%s1032 + $0x88] sm:$0xff]
    %v1051 = vld [vmem:[%s1032 + $0x90] sm:$0xff]
    %v1052 = vld [vmem:[%s1032 + $0x98] sm:$0xff]
    %v1053 = vld [vmem:[%s1032 + $0xa0] sm:$0xff]
    %v1054 = vld [vmem:[%s1032 + $0xa8] sm:$0xff]
    %v1055 = vld [vmem:[%s1032 + $0xb0] sm:$0xff]
    %v1056 = vld [vmem:[%s1032 + $0xb8] sm:$0xff]
    %s1057 = scalar_lea.vmem %s1, 192
    %v1058 = vld [vmem:[%s1057] sm:$0xff]
    %v1059 = vld [vmem:[%s1057 + $0x8] sm:$0xff]
    %v1060 = vld [vmem:[%s1057 + $0x10] sm:$0xff]
    %v1061 = vld [vmem:[%s1057 + $0x18] sm:$0xff]
    %v1062 = vld [vmem:[%s1057 + $0x20] sm:$0xff]
    %v1063 = vld [vmem:[%s1057 + $0x28] sm:$0xff]
    %v1064 = vld [vmem:[%s1057 + $0x30] sm:$0xf]
    %v1065 = vld [vmem:[%s1057 + $0x38] sm:$0xf]
    %v1067 = vsel %vm87, %v1033, 0
    %v1070 = vsel %vm87, %v1034, 0
    %v1073 = vsel %vm87, %v1035, 0
    %v1076 = vsel %vm87, %v1036, 0
    %v1079 = vsel %vm87, %v1037, 0
    %v1082 = vsel %vm87, %v1038, 0
    %v1085 = vsel %vm87, %v1039, 0
    %v1088 = vsel %vm87, %v1040, 0
    %v1091 = vsel %vm87, %v1041, 0
    %v1094 = vsel %vm87, %v1042, 0
    %v1097 = vsel %vm87, %v1043, 0
    %v1100 = vsel %vm87, %v1044, 0
    %v1103 = vsel %vm87, %v1045, 0
    %v1106 = vsel %vm87, %v1046, 0
    %v1109 = vsel %vm87, %v1047, 0
    %v1112 = vsel %vm87, %v1048, 0
    %v1115 = vsel %vm87, %v1049, 0
    %v1118 = vsel %vm87, %v1050, 0
    %v1121 = vsel %vm87, %v1051, 0
    %v1124 = vsel %vm87, %v1052, 0
    %v1127 = vsel %vm87, %v1053, 0
    %v1130 = vsel %vm87, %v1054, 0
    %v1133 = vsel %vm87, %v1055, 0
    %v1136 = vsel %vm87, %v1056, 0
    %v1139 = vsel %vm160, %v1064, 0
    %v1142 = vsel %vm160, %v1065, 0
    %1144 = vmatprep.subr.mxu0 %v1059
    %1145 = vmatpush1.msra.mxu0 %v1058
    %1146 = vmatprep.subr.mxu0 %v1061
    %1147 = vmatpush1.msra.mxu0 %v1060
    %1148 = vmatprep.subr.mxu0 %v1063
    %1149 = vmatpush1.msra.mxu0 %v1062
    %1150 = vmatprep.subr.mxu0 %v1142
    %1151 = vmatpush1.msra.mxu0 %v1139
    %1152 = vmatprep.subr.mxu0 0.0
    %1153 = vmatpush1.msra.mxu0 0.0
    %1154 = vmatprep.subr.mxu0 0.0
    %1155 = vmatpush1.msra.mxu0 0.0
    %1156 = vmatprep.subr.mxu0 0.0
    %1157 = vmatpush1.msra.mxu0 0.0
    %1158 = vmatprep.subr.mxu0 0.0
    %1159 = vmatpush1.msra.mxu0 0.0
    %1160 = vmatprep.subr.mxu0 0.0
    %1161 = vmatpush1.msra.mxu0 0.0
    %1162 = vmatprep.subr.mxu0 0.0
    %1163 = vmatpush1.msra.mxu0 0.0
    %1164 = vmatprep.subr.mxu0 0.0
    %1165 = vmatpush1.msra.mxu0 0.0
    %1166 = vmatprep.subr.mxu0 0.0
    %1167 = vmatpush1.msra.mxu0 0.0
    %1168 = vmatprep.subr.mxu0 0.0
    %1169 = vmatpush1.msra.mxu0 0.0
    %1170 = vmatprep.subr.mxu0 0.0
    %1171 = vmatpush1.msra.mxu0 0.0
    %1172 = vmatprep.subr.mxu0 0.0
    %1173 = vmatpush1.msra.mxu0 0.0
    %1174 = vmatprep.subr.mxu0 0.0
    %1175 = vmatpush1.msra.mxu0 0.0
    %1176 = vmatprep.subr.mxu0 0.0
    %1177 = vmatpush1.msra.mxu0 0.0
    %1178 = vmatprep.subr.mxu0 0.0
    %1179 = vmatpush1.msra.mxu0 0.0
    %1180 = vmatprep.subr.mxu0 0.0
    %1181 = vmatpush1.msra.mxu0 0.0
    %1182 = vmatprep.subr.mxu0 0.0
    %1183 = vmatpush1.msra.mxu0 0.0
    %1184 = vmatprep.subr.mxu0 0.0
    %1185 = vmatpush1.msra.mxu0 0.0
    %1186 = vmatprep.subr.mxu0 0.0
    %1187 = vmatpush1.msra.mxu0 0.0
    %1188 = vmatprep.subr.mxu0 0.0
    %1189 = vmatpush1.msra.mxu0 0.0
    %1190 = vmatprep.subr.mxu0 0.0
    %1191 = vmatpush1.msra.mxu0 0.0
    %1192 = vmatprep.subr.mxu0 0.0
    %1193 = vmatpush1.msra.mxu0 0.0
    %1194 = vmatprep.subr.mxu0 0.0
    %1195 = vmatpush1.msra.mxu0 0.0
    %1196 = vmatprep.subr.mxu0 0.0
    %1197 = vmatpush1.msra.mxu0 0.0
    %1198 = vmatprep.subr.mxu0 0.0
    %1199 = vmatpush1.msra.mxu0 0.0
    %1200 = vmatprep.subr.mxu0 0.0
    %1201 = vmatpush1.msra.mxu0 0.0
    %1202 = vmatprep.subr.mxu0 0.0
    %1203 = vmatpush1.msra.mxu0 0.0
    %1204 = vmatprep.subr.mxu0 0.0
    %1205 = vmatpush1.msra.mxu0 0.0
    %1206 = vmatprep.subr.mxu0 0.0
    %1207 = vmatpush1.msra.mxu0 0.0
    %1208 = vmatprep.mubr.f32.mxu0 0.0
    %1209 = vmatmul.mubr.f32.gmra.mrb[0].mxu0 %v1067
    %v1210 = vpop.f32.mrb[0].mxu0
    %v1211 = vadd.f32 0.0, %v1210
    %v1212 = vpop.f32.mrb[0].mxu0
    %v1213 = vadd.f32 0.0, %v1212
    %1214 = vmatprep.mubr.f32.mxu0 0.0
    %1215 = vmatmul.mubr.f32.gmra.mrb[0].mxu0 %v1070
    %v1216 = vpop.f32.mrb[0].mxu0
    %v1217 = vadd.f32 0.0, %v1216
    %v1218 = vpop.f32.mrb[0].mxu0
    %v1219 = vadd.f32 0.0, %v1218
    %1220 = vmatprep.mubr.f32.mxu0 0.0
    %1221 = vmatmul.mubr.f32.gmra.mrb[0].mxu0 %v1073
    %v1222 = vpop.f32.mrb[0].mxu0
    %v1223 = vadd.f32 0.0, %v1222
    %v1224 = vpop.f32.mrb[0].mxu0
    %v1225 = vadd.f32 0.0, %v1224
    %1226 = vmatprep.mubr.f32.mxu0 0.0
    %1227 = vmatmul.mubr.f32.gmra.mrb[0].mxu0 %v1076
    %v1228 = vpop.f32.mrb[0].mxu0
    %v1229 = vadd.f32 0.0, %v1228
    %v1230 = vpop.f32.mrb[0].mxu0
    %v1231 = vadd.f32 0.0, %v1230
    %1232 = vmatprep.mubr.f32.mxu0 0.0
    %1233 = vmatmul.mubr.f32.gmra.mrb[0].mxu0 %v1079
    %v1234 = vpop.f32.mrb[0].mxu0
    %v1235 = vadd.f32 0.0, %v1234
    %v1236 = vpop.f32.mrb[0].mxu0
    %v1237 = vadd.f32 0.0, %v1236
    %1238 = vmatprep.mubr.f32.mxu0 0.0
    %1239 = vmatmul.mubr.f32.gmra.mrb[0].mxu0 %v1082
    %v1240 = vpop.f32.mrb[0].mxu0
    %v1241 = vadd.f32 0.0, %v1240
    %v1242 = vpop.f32.mrb[0].mxu0
    %v1243 = vadd.f32 0.0, %v1242
    %1244 = vmatprep.mubr.f32.mxu0 0.0
    %1245 = vmatmul.mubr.f32.gmra.mrb[0].mxu0 %v1085
    %v1246 = vpop.f32.mrb[0].mxu0
    %v1247 = vadd.f32 0.0, %v1246
    %v1248 = vpop.f32.mrb[0].mxu0
    %v1249 = vadd.f32 0.0, %v1248
    %1250 = vmatprep.mubr.f32.mxu0 0.0
    %1251 = vmatmul.mubr.f32.gmra.mrb[0].mxu0 %v1088
    %v1252 = vpop.f32.mrb[0].mxu0
    %v1253 = vadd.f32 0.0, %v1252
    %v1254 = vpop.f32.mrb[0].mxu0
    %v1255 = vadd.f32 0.0, %v1254
    %1256 = vmatprep.mubr.f32.mxu0 0.0
    %1257 = vmatmul.mubr.f32.gmra.mrb[0].mxu0 %v1091
    %v1258 = vpop.f32.mrb[0].mxu0
    %v1259 = vadd.f32 0.0, %v1258
    %v1260 = vpop.f32.mrb[0].mxu0
    %v1261 = vadd.f32 0.0, %v1260
    %1262 = vmatprep.mubr.f32.mxu0 0.0
    %1263 = vmatmul.mubr.f32.gmra.mrb[0].mxu0 %v1094
    %v1264 = vpop.f32.mrb[0].mxu0
    %v1265 = vadd.f32 0.0, %v1264
    %v1266 = vpop.f32.mrb[0].mxu0
    %v1267 = vadd.f32 0.0, %v1266
    %1268 = vmatprep.mubr.f32.mxu0 0.0
    %1269 = vmatmul.mubr.f32.gmra.mrb[0].mxu0 %v1097
    %v1270 = vpop.f32.mrb[0].mxu0
    %v1271 = vadd.f32 0.0, %v1270
    %v1272 = vpop.f32.mrb[0].mxu0
    %v1273 = vadd.f32 0.0, %v1272
    %1274 = vmatprep.mubr.f32.mxu0 0.0
    %1275 = vmatmul.mubr.f32.gmra.mrb[0].mxu0 %v1100
    %v1276 = vpop.f32.mrb[0].mxu0
    %v1277 = vadd.f32 0.0, %v1276
    %v1278 = vpop.f32.mrb[0].mxu0
    %v1279 = vadd.f32 0.0, %v1278
    %1280 = vmatprep.mubr.f32.mxu0 0.0
    %1281 = vmatmul.mubr.f32.gmra.mrb[0].mxu0 %v1103
    %v1282 = vpop.f32.mrb[0].mxu0
    %v1283 = vadd.f32 0.0, %v1282
    %v1284 = vpop.f32.mrb[0].mxu0
    %v1285 = vadd.f32 0.0, %v1284
    %1286 = vmatprep.mubr.f32.mxu0 0.0
    %1287 = vmatmul.mubr.f32.gmra.mrb[0].mxu0 %v1106
    %v1288 = vpop.f32.mrb[0].mxu0
    %v1289 = vadd.f32 0.0, %v1288
    %v1290 = vpop.f32.mrb[0].mxu0
    %v1291 = vadd.f32 0.0, %v1290
    %1292 = vmatprep.mubr.f32.mxu0 0.0
    %1293 = vmatmul.mubr.f32.gmra.mrb[0].mxu0 %v1109
    %v1294 = vpop.f32.mrb[0].mxu0
    %v1295 = vadd.f32 0.0, %v1294
    %v1296 = vpop.f32.mrb[0].mxu0
    %v1297 = vadd.f32 0.0, %v1296
    %1298 = vmatprep.mubr.f32.mxu0 0.0
    %1299 = vmatmul.mubr.f32.gmra.mrb[0].mxu0 %v1112
    %v1300 = vpop.f32.mrb[0].mxu0
    %v1301 = vadd.f32 0.0, %v1300
    %v1302 = vpop.f32.mrb[0].mxu0
    %v1303 = vadd.f32 0.0, %v1302
    %1304 = vmatprep.mubr.f32.mxu0 0.0
    %1305 = vmatmul.mubr.f32.gmra.mrb[0].mxu0 %v1115
    %v1306 = vpop.f32.mrb[0].mxu0
    %v1307 = vadd.f32 0.0, %v1306
    %v1308 = vpop.f32.mrb[0].mxu0
    %v1309 = vadd.f32 0.0, %v1308
    %1310 = vmatprep.mubr.f32.mxu0 0.0
    %1311 = vmatmul.mubr.f32.gmra.mrb[0].mxu0 %v1118
    %v1312 = vpop.f32.mrb[0].mxu0
    %v1313 = vadd.f32 0.0, %v1312
    %v1314 = vpop.f32.mrb[0].mxu0
    %v1315 = vadd.f32 0.0, %v1314
    %1316 = vmatprep.mubr.f32.mxu0 0.0
    %1317 = vmatmul.mubr.f32.gmra.mrb[0].mxu0 %v1121
    %v1318 = vpop.f32.mrb[0].mxu0
    %v1319 = vadd.f32 0.0, %v1318
    %v1320 = vpop.f32.mrb[0].mxu0
    %v1321 = vadd.f32 0.0, %v1320
    %1322 = vmatprep.mubr.f32.mxu0 0.0
    %1323 = vmatmul.mubr.f32.gmra.mrb[0].mxu0 %v1124
    %v1324 = vpop.f32.mrb[0].mxu0
    %v1325 = vadd.f32 0.0, %v1324
    %v1326 = vpop.f32.mrb[0].mxu0
    %v1327 = vadd.f32 0.0, %v1326
    %1328 = vmatprep.mubr.f32.mxu0 0.0
    %1329 = vmatmul.mubr.f32.gmra.mrb[0].mxu0 %v1127
    %v1330 = vpop.f32.mrb[0].mxu0
    %v1331 = vadd.f32 0.0, %v1330
    %v1332 = vpop.f32.mrb[0].mxu0
    %v1333 = vadd.f32 0.0, %v1332
    %1334 = vmatprep.mubr.f32.mxu0 0.0
    %1335 = vmatmul.mubr.f32.gmra.mrb[0].mxu0 %v1130
    %v1336 = vpop.f32.mrb[0].mxu0
    %v1337 = vadd.f32 0.0, %v1336
    %v1338 = vpop.f32.mrb[0].mxu0
    %v1339 = vadd.f32 0.0, %v1338
    %1340 = vmatprep.mubr.f32.mxu0 0.0
    %1341 = vmatmul.mubr.f32.gmra.mrb[0].mxu0 %v1133
    %v1342 = vpop.f32.mrb[0].mxu0
    %v1343 = vadd.f32 0.0, %v1342
    %v1344 = vpop.f32.mrb[0].mxu0
    %v1345 = vadd.f32 0.0, %v1344
    %1346 = vmatprep.mubr.f32.mxu0 0.0
    %1347 = vmatmul.mubr.f32.gmra.mrb[0].mxu0 %v1136
    %v1348 = vpop.f32.mrb[0].mxu0
    %v1349 = vadd.f32 0.0, %v1348
    %v1350 = vpop.f32.mrb[0].mxu0
    %v1351 = vadd.f32 0.0, %v1350
    %1352 = vdwg.mxu0
    %v1353 = vadd.f32 %v984, %v1211
    %v1354 = vadd.f32 %v985, %v1213
    %v1355 = vadd.f32 %v986, %v1217
    %v1356 = vadd.f32 %v987, %v1219
    %v1357 = vadd.f32 %v988, %v1223
    %v1358 = vadd.f32 %v989, %v1225
    %v1359 = vadd.f32 %v990, %v1229
    %v1360 = vadd.f32 %v991, %v1231
    %v1361 = vadd.f32 %v992, %v1235
    %v1362 = vadd.f32 %v993, %v1237
    %v1363 = vadd.f32 %v994, %v1241
    %v1364 = vadd.f32 %v995, %v1243
    %v1365 = vadd.f32 %v996, %v1247
    %v1366 = vadd.f32 %v997, %v1249
    %v1367 = vadd.f32 %v998, %v1253
    %v1368 = vadd.f32 %v999, %v1255
    %v1369 = vadd.f32 %v1000, %v1259
    %v1370 = vadd.f32 %v1001, %v1261
    %v1371 = vadd.f32 %v1002, %v1265
    %v1372 = vadd.f32 %v1003, %v1267
    %v1373 = vadd.f32 %v1004, %v1271
    %v1374 = vadd.f32 %v1005, %v1273
    %v1375 = vadd.f32 %v1006, %v1277
    %v1376 = vadd.f32 %v1007, %v1279
    %v1377 = vadd.f32 %v1008, %v1283
    %v1378 = vadd.f32 %v1009, %v1285
    %v1379 = vadd.f32 %v1010, %v1289
    %v1380 = vadd.f32 %v1011, %v1291
    %v1381 = vadd.f32 %v1012, %v1295
    %v1382 = vadd.f32 %v1013, %v1297
    %v1383 = vadd.f32 %v1014, %v1301
    %v1384 = vadd.f32 %v1015, %v1303
    %v1385 = vadd.f32 %v1016, %v1307
    %v1386 = vadd.f32 %v1017, %v1309
    %v1387 = vadd.f32 %v1018, %v1313
    %v1388 = vadd.f32 %v1019, %v1315
    %v1389 = vadd.f32 %v1020, %v1319
    %v1390 = vadd.f32 %v1021, %v1321
    %v1391 = vadd.f32 %v1022, %v1325
    %v1392 = vadd.f32 %v1023, %v1327
    %v1393 = vadd.f32 %v1024, %v1331
    %v1394 = vadd.f32 %v1025, %v1333
    %v1395 = vadd.f32 %v1026, %v1337
    %v1396 = vadd.f32 %v1027, %v1339
    %v1397 = vadd.f32 %v1028, %v1343
    %v1398 = vadd.f32 %v1029, %v1345
    %v1399 = vadd.f32 %v1030, %v1349
    %v1400 = vadd.f32 %v1031, %v1351
    %s1401 = scalar_lea.vmem %s0, 32
    %v1402 = vld [vmem:[%s1401] sm:$0xff]
    %v1403 = vld [vmem:[%s1401 + $0x8] sm:$0xff]
    %v1404 = vld [vmem:[%s1401 + $0x10] sm:$0xff]
    %v1405 = vld [vmem:[%s1401 + $0x18] sm:$0xff]
    %v1406 = vld [vmem:[%s1401 + $0x20] sm:$0xff]
    %v1407 = vld [vmem:[%s1401 + $0x28] sm:$0xff]
    %v1408 = vld [vmem:[%s1401 + $0x30] sm:$0xff]
    %v1409 = vld [vmem:[%s1401 + $0x38] sm:$0xff]
    %v1410 = vld [vmem:[%s1401 + $0x40] sm:$0xff]
    %v1411 = vld [vmem:[%s1401 + $0x48] sm:$0xff]
    %v1412 = vld [vmem:[%s1401 + $0x50] sm:$0xff]
    %v1413 = vld [vmem:[%s1401 + $0x58] sm:$0xff]
    %v1414 = vld [vmem:[%s1401 + $0x60] sm:$0xff]
    %v1415 = vld [vmem:[%s1401 + $0x68] sm:$0xff]
    %v1416 = vld [vmem:[%s1401 + $0x70] sm:$0xff]
    %v1417 = vld [vmem:[%s1401 + $0x78] sm:$0xff]
    %v1418 = vld [vmem:[%s1401 + $0x80] sm:$0xff]
    %v1419 = vld [vmem:[%s1401 + $0x88] sm:$0xff]
    %v1420 = vld [vmem:[%s1401 + $0x90] sm:$0xff]
    %v1421 = vld [vmem:[%s1401 + $0x98] sm:$0xff]
    %v1422 = vld [vmem:[%s1401 + $0xa0] sm:$0xff]
    %v1423 = vld [vmem:[%s1401 + $0xa8] sm:$0xff]
    %v1424 = vld [vmem:[%s1401 + $0xb0] sm:$0xff]
    %v1425 = vld [vmem:[%s1401 + $0xb8] sm:$0xff]
    %s1426 = scalar_lea.vmem %s1, 256
    %v1427 = vld [vmem:[%s1426] sm:$0xff]
    %v1428 = vld [vmem:[%s1426 + $0x8] sm:$0xff]
    %v1429 = vld [vmem:[%s1426 + $0x10] sm:$0xff]
    %v1430 = vld [vmem:[%s1426 + $0x18] sm:$0xff]
    %v1431 = vld [vmem:[%s1426 + $0x20] sm:$0xff]
    %v1432 = vld [vmem:[%s1426 + $0x28] sm:$0xff]
    %v1433 = vld [vmem:[%s1426 + $0x30] sm:$0xf]
    %v1434 = vld [vmem:[%s1426 + $0x38] sm:$0xf]
    %v1436 = vsel %vm87, %v1402, 0
    %v1439 = vsel %vm87, %v1403, 0
    %v1442 = vsel %vm87, %v1404, 0
    %v1445 = vsel %vm87, %v1405, 0
    %v1448 = vsel %vm87, %v1406, 0
    %v1451 = vsel %vm87, %v1407, 0
    %v1454 = vsel %vm87, %v1408, 0
    %v1457 = vsel %vm87, %v1409, 0
    %v1460 = vsel %vm87, %v1410, 0
    %v1463 = vsel %vm87, %v1411, 0
    %v1466 = vsel %vm87, %v1412, 0
    %v1469 = vsel %vm87, %v1413, 0
    %v1472 = vsel %vm87, %v1414, 0
    %v1475 = vsel %vm87, %v1415, 0
    %v1478 = vsel %vm87, %v1416, 0
    %v1481 = vsel %vm87, %v1417, 0
    %v1484 = vsel %vm87, %v1418, 0
    %v1487 = vsel %vm87, %v1419, 0
    %v1490 = vsel %vm87, %v1420, 0
    %v1493 = vsel %vm87, %v1421, 0
    %v1496 = vsel %vm87, %v1422, 0
    %v1499 = vsel %vm87, %v1423, 0
    %v1502 = vsel %vm87, %v1424, 0
    %v1505 = vsel %vm87, %v1425, 0
    %v1508 = vsel %vm160, %v1433, 0
    %v1511 = vsel %vm160, %v1434, 0
    %1513 = vmatprep.subr.mxu0 %v1428
    %1514 = vmatpush1.msra.mxu0 %v1427
    %1515 = vmatprep.subr.mxu0 %v1430
    %1516 = vmatpush1.msra.mxu0 %v1429
    %1517 = vmatprep.subr.mxu0 %v1432
    %1518 = vmatpush1.msra.mxu0 %v1431
    %1519 = vmatprep.subr.mxu0 %v1511
    %1520 = vmatpush1.msra.mxu0 %v1508
    %1521 = vmatprep.subr.mxu0 0.0
    %1522 = vmatpush1.msra.mxu0 0.0
    %1523 = vmatprep.subr.mxu0 0.0
    %1524 = vmatpush1.msra.mxu0 0.0
    %1525 = vmatprep.subr.mxu0 0.0
    %1526 = vmatpush1.msra.mxu0 0.0
    %1527 = vmatprep.subr.mxu0 0.0
    %1528 = vmatpush1.msra.mxu0 0.0
    %1529 = vmatprep.subr.mxu0 0.0
    %1530 = vmatpush1.msra.mxu0 0.0
    %1531 = vmatprep.subr.mxu0 0.0
    %1532 = vmatpush1.msra.mxu0 0.0
    %1533 = vmatprep.subr.mxu0 0.0
    %1534 = vmatpush1.msra.mxu0 0.0
    %1535 = vmatprep.subr.mxu0 0.0
    %1536 = vmatpush1.msra.mxu0 0.0
    %1537 = vmatprep.subr.mxu0 0.0
    %1538 = vmatpush1.msra.mxu0 0.0
    %1539 = vmatprep.subr.mxu0 0.0
    %1540 = vmatpush1.msra.mxu0 0.0
    %1541 = vmatprep.subr.mxu0 0.0
    %1542 = vmatpush1.msra.mxu0 0.0
    %1543 = vmatprep.subr.mxu0 0.0
    %1544 = vmatpush1.msra.mxu0 0.0
    %1545 = vmatprep.subr.mxu0 0.0
    %1546 = vmatpush1.msra.mxu0 0.0
    %1547 = vmatprep.subr.mxu0 0.0
    %1548 = vmatpush1.msra.mxu0 0.0
    %1549 = vmatprep.subr.mxu0 0.0
    %1550 = vmatpush1.msra.mxu0 0.0
    %1551 = vmatprep.subr.mxu0 0.0
    %1552 = vmatpush1.msra.mxu0 0.0
    %1553 = vmatprep.subr.mxu0 0.0
    %1554 = vmatpush1.msra.mxu0 0.0
    %1555 = vmatprep.subr.mxu0 0.0
    %1556 = vmatpush1.msra.mxu0 0.0
    %1557 = vmatprep.subr.mxu0 0.0
    %1558 = vmatpush1.msra.mxu0 0.0
    %1559 = vmatprep.subr.mxu0 0.0
    %1560 = vmatpush1.msra.mxu0 0.0
    %1561 = vmatprep.subr.mxu0 0.0
    %1562 = vmatpush1.msra.mxu0 0.0
    %1563 = vmatprep.subr.mxu0 0.0
    %1564 = vmatpush1.msra.mxu0 0.0
    %1565 = vmatprep.subr.mxu0 0.0
    %1566 = vmatpush1.msra.mxu0 0.0
    %1567 = vmatprep.subr.mxu0 0.0
    %1568 = vmatpush1.msra.mxu0 0.0
    %1569 = vmatprep.subr.mxu0 0.0
    %1570 = vmatpush1.msra.mxu0 0.0
    %1571 = vmatprep.subr.mxu0 0.0
    %1572 = vmatpush1.msra.mxu0 0.0
    %1573 = vmatprep.subr.mxu0 0.0
    %1574 = vmatpush1.msra.mxu0 0.0
    %1575 = vmatprep.subr.mxu0 0.0
    %1576 = vmatpush1.msra.mxu0 0.0
    %1577 = vmatprep.mubr.f32.mxu0 0.0
    %1578 = vmatmul.mubr.f32.gmra.mrb[0].mxu0 %v1436
    %v1579 = vpop.f32.mrb[0].mxu0
    %v1580 = vadd.f32 0.0, %v1579
    %v1581 = vpop.f32.mrb[0].mxu0
    %v1582 = vadd.f32 0.0, %v1581
    %1583 = vmatprep.mubr.f32.mxu0 0.0
    %1584 = vmatmul.mubr.f32.gmra.mrb[0].mxu0 %v1439
    %v1585 = vpop.f32.mrb[0].mxu0
    %v1586 = vadd.f32 0.0, %v1585
    %v1587 = vpop.f32.mrb[0].mxu0
    %v1588 = vadd.f32 0.0, %v1587
    %1589 = vmatprep.mubr.f32.mxu0 0.0
    %1590 = vmatmul.mubr.f32.gmra.mrb[0].mxu0 %v1442
    %v1591 = vpop.f32.mrb[0].mxu0
    %v1592 = vadd.f32 0.0, %v1591
    %v1593 = vpop.f32.mrb[0].mxu0
    %v1594 = vadd.f32 0.0, %v1593
    %1595 = vmatprep.mubr.f32.mxu0 0.0
    %1596 = vmatmul.mubr.f32.gmra.mrb[0].mxu0 %v1445
    %v1597 = vpop.f32.mrb[0].mxu0
    %v1598 = vadd.f32 0.0, %v1597
    %v1599 = vpop.f32.mrb[0].mxu0
    %v1600 = vadd.f32 0.0, %v1599
    %1601 = vmatprep.mubr.f32.mxu0 0.0
    %1602 = vmatmul.mubr.f32.gmra.mrb[0].mxu0 %v1448
    %v1603 = vpop.f32.mrb[0].mxu0
    %v1604 = vadd.f32 0.0, %v1603
    %v1605 = vpop.f32.mrb[0].mxu0
    %v1606 = vadd.f32 0.0, %v1605
    %1607 = vmatprep.mubr.f32.mxu0 0.0
    %1608 = vmatmul.mubr.f32.gmra.mrb[0].mxu0 %v1451
    %v1609 = vpop.f32.mrb[0].mxu0
    %v1610 = vadd.f32 0.0, %v1609
    %v1611 = vpop.f32.mrb[0].mxu0
    %v1612 = vadd.f32 0.0, %v1611
    %1613 = vmatprep.mubr.f32.mxu0 0.0
    %1614 = vmatmul.mubr.f32.gmra.mrb[0].mxu0 %v1454
    %v1615 = vpop.f32.mrb[0].mxu0
    %v1616 = vadd.f32 0.0, %v1615
    %v1617 = vpop.f32.mrb[0].mxu0
    %v1618 = vadd.f32 0.0, %v1617
    %1619 = vmatprep.mubr.f32.mxu0 0.0
    %1620 = vmatmul.mubr.f32.gmra.mrb[0].mxu0 %v1457
    %v1621 = vpop.f32.mrb[0].mxu0
    %v1622 = vadd.f32 0.0, %v1621
    %v1623 = vpop.f32.mrb[0].mxu0
    %v1624 = vadd.f32 0.0, %v1623
    %1625 = vmatprep.mubr.f32.mxu0 0.0
    %1626 = vmatmul.mubr.f32.gmra.mrb[0].mxu0 %v1460
    %v1627 = vpop.f32.mrb[0].mxu0
    %v1628 = vadd.f32 0.0, %v1627
    %v1629 = vpop.f32.mrb[0].mxu0
    %v1630 = vadd.f32 0.0, %v1629
    %1631 = vmatprep.mubr.f32.mxu0 0.0
    %1632 = vmatmul.mubr.f32.gmra.mrb[0].mxu0 %v1463
    %v1633 = vpop.f32.mrb[0].mxu0
    %v1634 = vadd.f32 0.0, %v1633
    %v1635 = vpop.f32.mrb[0].mxu0
    %v1636 = vadd.f32 0.0, %v1635
    %1637 = vmatprep.mubr.f32.mxu0 0.0
    %1638 = vmatmul.mubr.f32.gmra.mrb[0].mxu0 %v1466
    %v1639 = vpop.f32.mrb[0].mxu0
    %v1640 = vadd.f32 0.0, %v1639
    %v1641 = vpop.f32.mrb[0].mxu0
    %v1642 = vadd.f32 0.0, %v1641
    %1643 = vmatprep.mubr.f32.mxu0 0.0
    %1644 = vmatmul.mubr.f32.gmra.mrb[0].mxu0 %v1469
    %v1645 = vpop.f32.mrb[0].mxu0
    %v1646 = vadd.f32 0.0, %v1645
    %v1647 = vpop.f32.mrb[0].mxu0
    %v1648 = vadd.f32 0.0, %v1647
    %1649 = vmatprep.mubr.f32.mxu0 0.0
    %1650 = vmatmul.mubr.f32.gmra.mrb[0].mxu0 %v1472
    %v1651 = vpop.f32.mrb[0].mxu0
    %v1652 = vadd.f32 0.0, %v1651
    %v1653 = vpop.f32.mrb[0].mxu0
    %v1654 = vadd.f32 0.0, %v1653
    %1655 = vmatprep.mubr.f32.mxu0 0.0
    %1656 = vmatmul.mubr.f32.gmra.mrb[0].mxu0 %v1475
    %v1657 = vpop.f32.mrb[0].mxu0
    %v1658 = vadd.f32 0.0, %v1657
    %v1659 = vpop.f32.mrb[0].mxu0
    %v1660 = vadd.f32 0.0, %v1659
    %1661 = vmatprep.mubr.f32.mxu0 0.0
    %1662 = vmatmul.mubr.f32.gmra.mrb[0].mxu0 %v1478
    %v1663 = vpop.f32.mrb[0].mxu0
    %v1664 = vadd.f32 0.0, %v1663
    %v1665 = vpop.f32.mrb[0].mxu0
    %v1666 = vadd.f32 0.0, %v1665
    %1667 = vmatprep.mubr.f32.mxu0 0.0
    %1668 = vmatmul.mubr.f32.gmra.mrb[0].mxu0 %v1481
    %v1669 = vpop.f32.mrb[0].mxu0
    %v1670 = vadd.f32 0.0, %v1669
    %v1671 = vpop.f32.mrb[0].mxu0
    %v1672 = vadd.f32 0.0, %v1671
    %1673 = vmatprep.mubr.f32.mxu0 0.0
    %1674 = vmatmul.mubr.f32.gmra.mrb[0].mxu0 %v1484
    %v1675 = vpop.f32.mrb[0].mxu0
    %v1676 = vadd.f32 0.0, %v1675
    %v1677 = vpop.f32.mrb[0].mxu0
    %v1678 = vadd.f32 0.0, %v1677
    %1679 = vmatprep.mubr.f32.mxu0 0.0
    %1680 = vmatmul.mubr.f32.gmra.mrb[0].mxu0 %v1487
    %v1681 = vpop.f32.mrb[0].mxu0
    %v1682 = vadd.f32 0.0, %v1681
    %v1683 = vpop.f32.mrb[0].mxu0
    %v1684 = vadd.f32 0.0, %v1683
    %1685 = vmatprep.mubr.f32.mxu0 0.0
    %1686 = vmatmul.mubr.f32.gmra.mrb[0].mxu0 %v1490
    %v1687 = vpop.f32.mrb[0].mxu0
    %v1688 = vadd.f32 0.0, %v1687
    %v1689 = vpop.f32.mrb[0].mxu0
    %v1690 = vadd.f32 0.0, %v1689
    %1691 = vmatprep.mubr.f32.mxu0 0.0
    %1692 = vmatmul.mubr.f32.gmra.mrb[0].mxu0 %v1493
    %v1693 = vpop.f32.mrb[0].mxu0
    %v1694 = vadd.f32 0.0, %v1693
    %v1695 = vpop.f32.mrb[0].mxu0
    %v1696 = vadd.f32 0.0, %v1695
    %1697 = vmatprep.mubr.f32.mxu0 0.0
    %1698 = vmatmul.mubr.f32.gmra.mrb[0].mxu0 %v1496
    %v1699 = vpop.f32.mrb[0].mxu0
    %v1700 = vadd.f32 0.0, %v1699
    %v1701 = vpop.f32.mrb[0].mxu0
    %v1702 = vadd.f32 0.0, %v1701
    %1703 = vmatprep.mubr.f32.mxu0 0.0
    %1704 = vmatmul.mubr.f32.gmra.mrb[0].mxu0 %v1499
    %v1705 = vpop.f32.mrb[0].mxu0
    %v1706 = vadd.f32 0.0, %v1705
    %v1707 = vpop.f32.mrb[0].mxu0
    %v1708 = vadd.f32 0.0, %v1707
    %1709 = vmatprep.mubr.f32.mxu0 0.0
    %1710 = vmatmul.mubr.f32.gmra.mrb[0].mxu0 %v1502
    %v1711 = vpop.f32.mrb[0].mxu0
    %v1712 = vadd.f32 0.0, %v1711
    %v1713 = vpop.f32.mrb[0].mxu0
    %v1714 = vadd.f32 0.0, %v1713
    %1715 = vmatprep.mubr.f32.mxu0 0.0
    %1716 = vmatmul.mubr.f32.gmra.mrb[0].mxu0 %v1505
    %v1717 = vpop.f32.mrb[0].mxu0
    %v1718 = vadd.f32 0.0, %v1717
    %v1719 = vpop.f32.mrb[0].mxu0
    %v1720 = vadd.f32 0.0, %v1719
    %1721 = vdwg.mxu0
    %v1722 = vadd.f32 %v1353, %v1580
    %v1723 = vadd.f32 %v1354, %v1582
    %v1724 = vadd.f32 %v1355, %v1586
    %v1725 = vadd.f32 %v1356, %v1588
    %v1726 = vadd.f32 %v1357, %v1592
    %v1727 = vadd.f32 %v1358, %v1594
    %v1728 = vadd.f32 %v1359, %v1598
    %v1729 = vadd.f32 %v1360, %v1600
    %v1730 = vadd.f32 %v1361, %v1604
    %v1731 = vadd.f32 %v1362, %v1606
    %v1732 = vadd.f32 %v1363, %v1610
    %v1733 = vadd.f32 %v1364, %v1612
    %v1734 = vadd.f32 %v1365, %v1616
    %v1735 = vadd.f32 %v1366, %v1618
    %v1736 = vadd.f32 %v1367, %v1622
    %v1737 = vadd.f32 %v1368, %v1624
    %v1738 = vadd.f32 %v1369, %v1628
    %v1739 = vadd.f32 %v1370, %v1630
    %v1740 = vadd.f32 %v1371, %v1634
    %v1741 = vadd.f32 %v1372, %v1636
    %v1742 = vadd.f32 %v1373, %v1640
    %v1743 = vadd.f32 %v1374, %v1642
    %v1744 = vadd.f32 %v1375, %v1646
    %v1745 = vadd.f32 %v1376, %v1648
    %v1746 = vadd.f32 %v1377, %v1652
    %v1747 = vadd.f32 %v1378, %v1654
    %v1748 = vadd.f32 %v1379, %v1658
    %v1749 = vadd.f32 %v1380, %v1660
    %v1750 = vadd.f32 %v1381, %v1664
    %v1751 = vadd.f32 %v1382, %v1666
    %v1752 = vadd.f32 %v1383, %v1670
    %v1753 = vadd.f32 %v1384, %v1672
    %v1754 = vadd.f32 %v1385, %v1676
    %v1755 = vadd.f32 %v1386, %v1678
    %v1756 = vadd.f32 %v1387, %v1682
    %v1757 = vadd.f32 %v1388, %v1684
    %v1758 = vadd.f32 %v1389, %v1688
    %v1759 = vadd.f32 %v1390, %v1690
    %v1760 = vadd.f32 %v1391, %v1694
    %v1761 = vadd.f32 %v1392, %v1696
    %v1762 = vadd.f32 %v1393, %v1700
    %v1763 = vadd.f32 %v1394, %v1702
    %v1764 = vadd.f32 %v1395, %v1706
    %v1765 = vadd.f32 %v1396, %v1708
    %v1766 = vadd.f32 %v1397, %v1712
    %v1767 = vadd.f32 %v1398, %v1714
    %v1768 = vadd.f32 %v1399, %v1718
    %v1769 = vadd.f32 %v1400, %v1720
    %v1770 = vld [vmem:[%s2] sm:$0x3]
    %v1772 = vlaneseq
    %v1773 = vshrl.u32 %v1772, 7
    %v1774 = vsub.s32 0, %v1773
    %v1775 = vrot.slane %v1770, %v1774
    %v1776 = vlaneseq
    %v1777 = vshrl.u32 %v1776, 7
    %v1778 = vsub.s32 1, %v1777
    %v1779 = vrot.slane %v1770, %v1778
    %v1782 = vadd.f32 %v1722, %v1775
    %v1783 = vadd.f32 %v1723, %v1779
    %v1784 = vadd.f32 %v1724, %v1775
    %v1785 = vadd.f32 %v1725, %v1779
    %v1786 = vadd.f32 %v1726, %v1775
    %v1787 = vadd.f32 %v1727, %v1779
    %v1788 = vadd.f32 %v1728, %v1775
    %v1789 = vadd.f32 %v1729, %v1779
    %v1790 = vadd.f32 %v1730, %v1775
    %v1791 = vadd.f32 %v1731, %v1779
    %v1792 = vadd.f32 %v1732, %v1775
    %v1793 = vadd.f32 %v1733, %v1779
    %v1794 = vadd.f32 %v1734, %v1775
    %v1795 = vadd.f32 %v1735, %v1779
    %v1796 = vadd.f32 %v1736, %v1775
    %v1797 = vadd.f32 %v1737, %v1779
    %v1798 = vadd.f32 %v1738, %v1775
    %v1799 = vadd.f32 %v1739, %v1779
    %v1800 = vadd.f32 %v1740, %v1775
    %v1801 = vadd.f32 %v1741, %v1779
    %v1802 = vadd.f32 %v1742, %v1775
    %v1803 = vadd.f32 %v1743, %v1779
    %v1804 = vadd.f32 %v1744, %v1775
    %v1805 = vadd.f32 %v1745, %v1779
    %v1806 = vadd.f32 %v1746, %v1775
    %v1807 = vadd.f32 %v1747, %v1779
    %v1808 = vadd.f32 %v1748, %v1775
    %v1809 = vadd.f32 %v1749, %v1779
    %v1810 = vadd.f32 %v1750, %v1775
    %v1811 = vadd.f32 %v1751, %v1779
    %v1812 = vadd.f32 %v1752, %v1775
    %v1813 = vadd.f32 %v1753, %v1779
    %v1814 = vadd.f32 %v1754, %v1775
    %v1815 = vadd.f32 %v1755, %v1779
    %v1816 = vadd.f32 %v1756, %v1775
    %v1817 = vadd.f32 %v1757, %v1779
    %v1818 = vadd.f32 %v1758, %v1775
    %v1819 = vadd.f32 %v1759, %v1779
    %v1820 = vadd.f32 %v1760, %v1775
    %v1821 = vadd.f32 %v1761, %v1779
    %v1822 = vadd.f32 %v1762, %v1775
    %v1823 = vadd.f32 %v1763, %v1779
    %v1824 = vadd.f32 %v1764, %v1775
    %v1825 = vadd.f32 %v1765, %v1779
    %v1826 = vadd.f32 %v1766, %v1775
    %v1827 = vadd.f32 %v1767, %v1779
    %v1828 = vadd.f32 %v1768, %v1775
    %v1829 = vadd.f32 %v1769, %v1779
    %v1830 = vmax.f32 %v1782, 0.0
    %v1831 = vmax.f32 %v1783, 0.0
    %v1832 = vmax.f32 %v1784, 0.0
    %v1833 = vmax.f32 %v1785, 0.0
    %v1834 = vmax.f32 %v1786, 0.0
    %v1835 = vmax.f32 %v1787, 0.0
    %v1836 = vmax.f32 %v1788, 0.0
    %v1837 = vmax.f32 %v1789, 0.0
    %v1838 = vmax.f32 %v1790, 0.0
    %v1839 = vmax.f32 %v1791, 0.0
    %v1840 = vmax.f32 %v1792, 0.0
    %v1841 = vmax.f32 %v1793, 0.0
    %v1842 = vmax.f32 %v1794, 0.0
    %v1843 = vmax.f32 %v1795, 0.0
    %v1844 = vmax.f32 %v1796, 0.0
    %v1845 = vmax.f32 %v1797, 0.0
    %v1846 = vmax.f32 %v1798, 0.0
    %v1847 = vmax.f32 %v1799, 0.0
    %v1848 = vmax.f32 %v1800, 0.0
    %v1849 = vmax.f32 %v1801, 0.0
    %v1850 = vmax.f32 %v1802, 0.0
    %v1851 = vmax.f32 %v1803, 0.0
    %v1852 = vmax.f32 %v1804, 0.0
    %v1853 = vmax.f32 %v1805, 0.0
    %v1854 = vmax.f32 %v1806, 0.0
    %v1855 = vmax.f32 %v1807, 0.0
    %v1856 = vmax.f32 %v1808, 0.0
    %v1857 = vmax.f32 %v1809, 0.0
    %v1858 = vmax.f32 %v1810, 0.0
    %v1859 = vmax.f32 %v1811, 0.0
    %v1860 = vmax.f32 %v1812, 0.0
    %v1861 = vmax.f32 %v1813, 0.0
    %v1862 = vmax.f32 %v1814, 0.0
    %v1863 = vmax.f32 %v1815, 0.0
    %v1864 = vmax.f32 %v1816, 0.0
    %v1865 = vmax.f32 %v1817, 0.0
    %v1866 = vmax.f32 %v1818, 0.0
    %v1867 = vmax.f32 %v1819, 0.0
    %v1868 = vmax.f32 %v1820, 0.0
    %v1869 = vmax.f32 %v1821, 0.0
    %v1870 = vmax.f32 %v1822, 0.0
    %v1871 = vmax.f32 %v1823, 0.0
    %v1872 = vmax.f32 %v1824, 0.0
    %v1873 = vmax.f32 %v1825, 0.0
    %v1874 = vmax.f32 %v1826, 0.0
    %v1875 = vmax.f32 %v1827, 0.0
    %v1876 = vmax.f32 %v1828, 0.0
    %v1877 = vmax.f32 %v1829, 0.0
    %v1878 = vld [vmem:[%s3] sm:$0xff]
    %v1879 = vld [vmem:[%s3 + $0x8] sm:$0xff]
    %v1880 = vld [vmem:[%s3 + $0x10] sm:$0x3]
    %v1881 = vld [vmem:[%s3 + $0x18] sm:$0x3]
    %v1882 = vld [vmem:[%s3 + $0x20] sm:$0xff]
    %v1883 = vld [vmem:[%s3 + $0x28] sm:$0xff]
    %v1884 = vld [vmem:[%s3 + $0x30] sm:$0x3]
    %v1885 = vld [vmem:[%s3 + $0x38] sm:$0x3]
    %v1886 = vld [vmem:[%s3 + $0x40] sm:$0xff]
    %v1887 = vld [vmem:[%s3 + $0x48] sm:$0xff]
    %v1888 = vld [vmem:[%s3 + $0x50] sm:$0x3]
    %v1889 = vld [vmem:[%s3 + $0x58] sm:$0x3]
    %v1890 = vld [vmem:[%s3 + $0x60] sm:$0xff]
    %v1891 = vld [vmem:[%s3 + $0x68] sm:$0xff]
    %v1892 = vld [vmem:[%s3 + $0x70] sm:$0x3]
    %v1893 = vld [vmem:[%s3 + $0x78] sm:$0x3]
    %v1894 = vld [vmem:[%s3 + $0x80] sm:$0xff]
    %v1895 = vld [vmem:[%s3 + $0x88] sm:$0xff]
    %v1896 = vld [vmem:[%s3 + $0x90] sm:$0x3]
    %v1897 = vld [vmem:[%s3 + $0x98] sm:$0x3]
    %v1898 = vld [vmem:[%s3 + $0xa0] sm:$0xff]
    %v1899 = vld [vmem:[%s3 + $0xa8] sm:$0xff]
    %v1900 = vld [vmem:[%s3 + $0xb0] sm:$0x3]
    %v1901 = vld [vmem:[%s3 + $0xb8] sm:$0x3]
    %v1902 = vld [vmem:[%s3 + $0xc0] sm:$0xff]
    %v1903 = vld [vmem:[%s3 + $0xc8] sm:$0xff]
    %v1904 = vld [vmem:[%s3 + $0xd0] sm:$0x3]
    %v1905 = vld [vmem:[%s3 + $0xd8] sm:$0x3]
    %v1906 = vld [vmem:[%s3 + $0xe0] sm:$0xff]
    %v1907 = vld [vmem:[%s3 + $0xe8] sm:$0xff]
    %v1908 = vld [vmem:[%s3 + $0xf0] sm:$0x3]
    %v1909 = vld [vmem:[%s3 + $0xf8] sm:$0x3]
    %v1910 = vld [vmem:[%s3 + $0x100] sm:$0xff]
    %v1911 = vld [vmem:[%s3 + $0x108] sm:$0xff]
    %v1912 = vld [vmem:[%s3 + $0x110] sm:$0x3]
    %v1913 = vld [vmem:[%s3 + $0x118] sm:$0x3]
    %v1914 = vld [vmem:[%s3 + $0x120] sm:$0xff]
    %v1915 = vld [vmem:[%s3 + $0x128] sm:$0xff]
    %v1916 = vld [vmem:[%s3 + $0x130] sm:$0x3]
    %v1917 = vld [vmem:[%s3 + $0x138] sm:$0x3]
    %v1918 = vld [vmem:[%s3 + $0x140] sm:$0xff]
    %v1919 = vld [vmem:[%s3 + $0x148] sm:$0xff]
    %v1920 = vld [vmem:[%s3 + $0x150] sm:$0x3]
    %v1921 = vld [vmem:[%s3 + $0x158] sm:$0x3]
    %v1922 = vld [vmem:[%s3 + $0x160] sm:$0xff]
    %v1923 = vld [vmem:[%s3 + $0x168] sm:$0xff]
    %v1924 = vld [vmem:[%s3 + $0x170] sm:$0x3]
    %v1925 = vld [vmem:[%s3 + $0x178] sm:$0x3]
    %v1926 = vld [vmem:[%s3 + $0x180] sm:$0xff]
    %v1927 = vld [vmem:[%s3 + $0x188] sm:$0xff]
    %v1928 = vld [vmem:[%s3 + $0x190] sm:$0x3]
    %v1929 = vld [vmem:[%s3 + $0x198] sm:$0x3]
    %v1930 = vld [vmem:[%s3 + $0x1a0] sm:$0xff]
    %v1931 = vld [vmem:[%s3 + $0x1a8] sm:$0xff]
    %v1932 = vld [vmem:[%s3 + $0x1b0] sm:$0x3]
    %v1933 = vld [vmem:[%s3 + $0x1b8] sm:$0x3]
    %v1934 = vld [vmem:[%s3 + $0x1c0] sm:$0xff]
    %v1935 = vld [vmem:[%s3 + $0x1c8] sm:$0xff]
    %v1936 = vld [vmem:[%s3 + $0x1d0] sm:$0x3]
    %v1937 = vld [vmem:[%s3 + $0x1d8] sm:$0x3]
    %v1938 = vld [vmem:[%s3 + $0x1e0] sm:$0xff]
    %v1939 = vld [vmem:[%s3 + $0x1e8] sm:$0xff]
    %v1940 = vld [vmem:[%s3 + $0x1f0] sm:$0x3]
    %v1941 = vld [vmem:[%s3 + $0x1f8] sm:$0x3]
    %v1942 = vld [vmem:[%s3 + $0x200] sm:$0xff]
    %v1943 = vld [vmem:[%s3 + $0x208] sm:$0xff]
    %v1944 = vld [vmem:[%s3 + $0x210] sm:$0x3]
    %v1945 = vld [vmem:[%s3 + $0x218] sm:$0x3]
    %v1946 = vld [vmem:[%s3 + $0x220] sm:$0xff]
    %v1947 = vld [vmem:[%s3 + $0x228] sm:$0xff]
    %v1948 = vld [vmem:[%s3 + $0x230] sm:$0x3]
    %v1949 = vld [vmem:[%s3 + $0x238] sm:$0x3]
    %v1950 = vld [vmem:[%s3 + $0x240] sm:$0xff]
    %v1951 = vld [vmem:[%s3 + $0x248] sm:$0xff]
    %v1952 = vld [vmem:[%s3 + $0x250] sm:$0x3]
    %v1953 = vld [vmem:[%s3 + $0x258] sm:$0x3]
    %v1954 = vld [vmem:[%s3 + $0x260] sm:$0xff]
    %v1955 = vld [vmem:[%s3 + $0x268] sm:$0xff]
    %v1956 = vld [vmem:[%s3 + $0x270] sm:$0x3]
    %v1957 = vld [vmem:[%s3 + $0x278] sm:$0x3]
    %v1958 = vld [vmem:[%s3 + $0x280] sm:$0xff]
    %v1959 = vld [vmem:[%s3 + $0x288] sm:$0xff]
    %v1960 = vld [vmem:[%s3 + $0x290] sm:$0x3]
    %v1961 = vld [vmem:[%s3 + $0x298] sm:$0x3]
    %v1962 = vld [vmem:[%s3 + $0x2a0] sm:$0xff]
    %v1963 = vld [vmem:[%s3 + $0x2a8] sm:$0xff]
    %v1964 = vld [vmem:[%s3 + $0x2b0] sm:$0x3]
    %v1965 = vld [vmem:[%s3 + $0x2b8] sm:$0x3]
    %v1966 = vld [vmem:[%s3 + $0x2c0] sm:$0xff]
    %v1967 = vld [vmem:[%s3 + $0x2c8] sm:$0xff]
    %v1968 = vld [vmem:[%s3 + $0x2d0] sm:$0x3]
    %v1969 = vld [vmem:[%s3 + $0x2d8] sm:$0x3]
    %v1970 = vld [vmem:[%s3 + $0x2e0] sm:$0xff]
    %v1971 = vld [vmem:[%s3 + $0x2e8] sm:$0xff]
    %v1972 = vld [vmem:[%s3 + $0x2f0] sm:$0x3]
    %v1973 = vld [vmem:[%s3 + $0x2f8] sm:$0x3]
    %vm1974 = vcmask 719872
    %v1976 = vsel %vm1974, %v1831, 0
    %v1979 = vsel %vm1974, %v1879, 0
    %v1982 = vsel %vm1974, %v1881, 0
    %1984 = vmatprep.subr.mxu0 %v1979
    %1985 = vmatpush1.xpose.msra.mxu0 %v1878
    %1986 = vmatprep.subr.mxu0 %v1982
    %1987 = vmatpush1.xpose.msra.mxu0 %v1880
    %1988 = vmatprep.subr.mxu0 0.0
    %1989 = vmatpush1.xpose.msra.mxu0 0.0
    %1990 = vmatprep.subr.mxu0 0.0
    %1991 = vmatpush1.xpose.msra.mxu0 0.0
    %1992 = vmatprep.subr.mxu0 0.0
    %1993 = vmatpush1.xpose.msra.mxu0 0.0
    %1994 = vmatprep.subr.mxu0 0.0
    %1995 = vmatpush1.xpose.msra.mxu0 0.0
    %1996 = vmatprep.subr.mxu0 0.0
    %1997 = vmatpush1.xpose.msra.mxu0 0.0
    %1998 = vmatprep.subr.mxu0 0.0
    %1999 = vmatpush1.xpose.msra.mxu0 0.0
    %2000 = vmatprep.subr.mxu0 0.0
    %2001 = vmatpush1.xpose.msra.mxu0 0.0
    %2002 = vmatprep.subr.mxu0 0.0
    %2003 = vmatpush1.xpose.msra.mxu0 0.0
    %2004 = vmatprep.subr.mxu0 0.0
    %2005 = vmatpush1.xpose.msra.mxu0 0.0
    %2006 = vmatprep.subr.mxu0 0.0
    %2007 = vmatpush1.xpose.msra.mxu0 0.0
    %2008 = vmatprep.subr.mxu0 0.0
    %2009 = vmatpush1.xpose.msra.mxu0 0.0
    %2010 = vmatprep.subr.mxu0 0.0
    %2011 = vmatpush1.xpose.msra.mxu0 0.0
    %2012 = vmatprep.subr.mxu0 0.0
    %2013 = vmatpush1.xpose.msra.mxu0 0.0
    %2014 = vmatprep.subr.mxu0 0.0
    %2015 = vmatpush1.xpose.msra.mxu0 0.0
    %2016 = vmatprep.subr.mxu0 0.0
    %2017 = vmatpush1.xpose.msra.mxu0 0.0
    %2018 = vmatprep.subr.mxu0 0.0
    %2019 = vmatpush1.xpose.msra.mxu0 0.0
    %2020 = vmatprep.subr.mxu0 0.0
    %2021 = vmatpush1.xpose.msra.mxu0 0.0
    %2022 = vmatprep.subr.mxu0 0.0
    %2023 = vmatpush1.xpose.msra.mxu0 0.0
    %2024 = vmatprep.subr.mxu0 0.0
    %2025 = vmatpush1.xpose.msra.mxu0 0.0
    %2026 = vmatprep.subr.mxu0 0.0
    %2027 = vmatpush1.xpose.msra.mxu0 0.0
    %2028 = vmatprep.subr.mxu0 0.0
    %2029 = vmatpush1.xpose.msra.mxu0 0.0
    %2030 = vmatprep.subr.mxu0 0.0
    %2031 = vmatpush1.xpose.msra.mxu0 0.0
    %2032 = vmatprep.subr.mxu0 0.0
    %2033 = vmatpush1.xpose.msra.mxu0 0.0
    %2034 = vmatprep.subr.mxu0 0.0
    %2035 = vmatpush1.xpose.msra.mxu0 0.0
    %2036 = vmatprep.subr.mxu0 0.0
    %2037 = vmatpush1.xpose.msra.mxu0 0.0
    %2038 = vmatprep.subr.mxu0 0.0
    %2039 = vmatpush1.xpose.msra.mxu0 0.0
    %2040 = vmatprep.subr.mxu0 0.0
    %2041 = vmatpush1.xpose.msra.mxu0 0.0
    %2042 = vmatprep.subr.mxu0 0.0
    %2043 = vmatpush1.xpose.msra.mxu0 0.0
    %2044 = vmatprep.subr.mxu0 0.0
    %2045 = vmatpush1.xpose.msra.mxu0 0.0
    %2046 = vmatprep.subr.mxu0 0.0
    %2047 = vmatpush1.xpose.msra.mxu0 0.0
    %2048 = vmatprep.mubr.f32.mxu0 %v1976
    %2049 = vmatmul.mubr.f32.gmra.mrb[0].mxu0 %v1830
    %v2050 = vpop.f32.mrb[0].mxu0
    %v2051 = vadd.f32 0.0, %v2050
    %v2052 = vpop.f32.mrb[0].mxu0
    %2053 = vdwg.mxu0
    %v2055 = vsel %vm1974, %v1833, 0
    %v2058 = vsel %vm1974, %v1883, 0
    %v2061 = vsel %vm1974, %v1885, 0
    %2063 = vmatprep.subr.mxu0 %v2058
    %2064 = vmatpush1.xpose.msra.mxu0 %v1882
    %2065 = vmatprep.subr.mxu0 %v2061
    %2066 = vmatpush1.xpose.msra.mxu0 %v1884
    %2067 = vmatprep.subr.mxu0 0.0
    %2068 = vmatpush1.xpose.msra.mxu0 0.0
    %2069 = vmatprep.subr.mxu0 0.0
    %2070 = vmatpush1.xpose.msra.mxu0 0.0
    %2071 = vmatprep.subr.mxu0 0.0
    %2072 = vmatpush1.xpose.msra.mxu0 0.0
    %2073 = vmatprep.subr.mxu0 0.0
    %2074 = vmatpush1.xpose.msra.mxu0 0.0
    %2075 = vmatprep.subr.mxu0 0.0
    %2076 = vmatpush1.xpose.msra.mxu0 0.0
    %2077 = vmatprep.subr.mxu0 0.0
    %2078 = vmatpush1.xpose.msra.mxu0 0.0
    %2079 = vmatprep.subr.mxu0 0.0
    %2080 = vmatpush1.xpose.msra.mxu0 0.0
    %2081 = vmatprep.subr.mxu0 0.0
    %2082 = vmatpush1.xpose.msra.mxu0 0.0
    %2083 = vmatprep.subr.mxu0 0.0
    %2084 = vmatpush1.xpose.msra.mxu0 0.0
    %2085 = vmatprep.subr.mxu0 0.0
    %2086 = vmatpush1.xpose.msra.mxu0 0.0
    %2087 = vmatprep.subr.mxu0 0.0
    %2088 = vmatpush1.xpose.msra.mxu0 0.0
    %2089 = vmatprep.subr.mxu0 0.0
    %2090 = vmatpush1.xpose.msra.mxu0 0.0
    %2091 = vmatprep.subr.mxu0 0.0
    %2092 = vmatpush1.xpose.msra.mxu0 0.0
    %2093 = vmatprep.subr.mxu0 0.0
    %2094 = vmatpush1.xpose.msra.mxu0 0.0
    %2095 = vmatprep.subr.mxu0 0.0
    %2096 = vmatpush1.xpose.msra.mxu0 0.0
    %2097 = vmatprep.subr.mxu0 0.0
    %2098 = vmatpush1.xpose.msra.mxu0 0.0
    %2099 = vmatprep.subr.mxu0 0.0
    %2100 = vmatpush1.xpose.msra.mxu0 0.0
    %2101 = vmatprep.subr.mxu0 0.0
    %2102 = vmatpush1.xpose.msra.mxu0 0.0
    %2103 = vmatprep.subr.mxu0 0.0
    %2104 = vmatpush1.xpose.msra.mxu0 0.0
    %2105 = vmatprep.subr.mxu0 0.0
    %2106 = vmatpush1.xpose.msra.mxu0 0.0
    %2107 = vmatprep.subr.mxu0 0.0
    %2108 = vmatpush1.xpose.msra.mxu0 0.0
    %2109 = vmatprep.subr.mxu0 0.0
    %2110 = vmatpush1.xpose.msra.mxu0 0.0
    %2111 = vmatprep.subr.mxu0 0.0
    %2112 = vmatpush1.xpose.msra.mxu0 0.0
    %2113 = vmatprep.subr.mxu0 0.0
    %2114 = vmatpush1.xpose.msra.mxu0 0.0
    %2115 = vmatprep.subr.mxu0 0.0
    %2116 = vmatpush1.xpose.msra.mxu0 0.0
    %2117 = vmatprep.subr.mxu0 0.0
    %2118 = vmatpush1.xpose.msra.mxu0 0.0
    %2119 = vmatprep.subr.mxu0 0.0
    %2120 = vmatpush1.xpose.msra.mxu0 0.0
    %2121 = vmatprep.subr.mxu0 0.0
    %2122 = vmatpush1.xpose.msra.mxu0 0.0
    %2123 = vmatprep.subr.mxu0 0.0
    %2124 = vmatpush1.xpose.msra.mxu0 0.0
    %2125 = vmatprep.subr.mxu0 0.0
    %2126 = vmatpush1.xpose.msra.mxu0 0.0
    %2127 = vmatprep.mubr.f32.mxu0 %v2055
    %2128 = vmatmul.mubr.f32.gmra.mrb[0].mxu0 %v1832
    %v2129 = vpop.f32.mrb[0].mxu0
    %v2130 = vadd.f32 0.0, %v2129
    %v2131 = vpop.f32.mrb[0].mxu0
    %2132 = vdwg.mxu0
    %v2134 = vsel %vm1974, %v1835, 0
    %v2137 = vsel %vm1974, %v1887, 0
    %v2140 = vsel %vm1974, %v1889, 0
    %2142 = vmatprep.subr.mxu0 %v2137
    %2143 = vmatpush1.xpose.msra.mxu0 %v1886
    %2144 = vmatprep.subr.mxu0 %v2140
    %2145 = vmatpush1.xpose.msra.mxu0 %v1888
    %2146 = vmatprep.subr.mxu0 0.0
    %2147 = vmatpush1.xpose.msra.mxu0 0.0
    %2148 = vmatprep.subr.mxu0 0.0
    %2149 = vmatpush1.xpose.msra.mxu0 0.0
    %2150 = vmatprep.subr.mxu0 0.0
    %2151 = vmatpush1.xpose.msra.mxu0 0.0
    %2152 = vmatprep.subr.mxu0 0.0
    %2153 = vmatpush1.xpose.msra.mxu0 0.0
    %2154 = vmatprep.subr.mxu0 0.0
    %2155 = vmatpush1.xpose.msra.mxu0 0.0
    %2156 = vmatprep.subr.mxu0 0.0
    %2157 = vmatpush1.xpose.msra.mxu0 0.0
    %2158 = vmatprep.subr.mxu0 0.0
    %2159 = vmatpush1.xpose.msra.mxu0 0.0
    %2160 = vmatprep.subr.mxu0 0.0
    %2161 = vmatpush1.xpose.msra.mxu0 0.0
    %2162 = vmatprep.subr.mxu0 0.0
    %2163 = vmatpush1.xpose.msra.mxu0 0.0
    %2164 = vmatprep.subr.mxu0 0.0
    %2165 = vmatpush1.xpose.msra.mxu0 0.0
    %2166 = vmatprep.subr.mxu0 0.0
    %2167 = vmatpush1.xpose.msra.mxu0 0.0
    %2168 = vmatprep.subr.mxu0 0.0
    %2169 = vmatpush1.xpose.msra.mxu0 0.0
    %2170 = vmatprep.subr.mxu0 0.0
    %2171 = vmatpush1.xpose.msra.mxu0 0.0
    %2172 = vmatprep.subr.mxu0 0.0
    %2173 = vmatpush1.xpose.msra.mxu0 0.0
    %2174 = vmatprep.subr.mxu0 0.0
    %2175 = vmatpush1.xpose.msra.mxu0 0.0
    %2176 = vmatprep.subr.mxu0 0.0
    %2177 = vmatpush1.xpose.msra.mxu0 0.0
    %2178 = vmatprep.subr.mxu0 0.0
    %2179 = vmatpush1.xpose.msra.mxu0 0.0
    %2180 = vmatprep.subr.mxu0 0.0
    %2181 = vmatpush1.xpose.msra.mxu0 0.0
    %2182 = vmatprep.subr.mxu0 0.0
    %2183 = vmatpush1.xpose.msra.mxu0 0.0
    %2184 = vmatprep.subr.mxu0 0.0
    %2185 = vmatpush1.xpose.msra.mxu0 0.0
    %2186 = vmatprep.subr.mxu0 0.0
    %2187 = vmatpush1.xpose.msra.mxu0 0.0
    %2188 = vmatprep.subr.mxu0 0.0
    %2189 = vmatpush1.xpose.msra.mxu0 0.0
    %2190 = vmatprep.subr.mxu0 0.0
    %2191 = vmatpush1.xpose.msra.mxu0 0.0
    %2192 = vmatprep.subr.mxu0 0.0
    %2193 = vmatpush1.xpose.msra.mxu0 0.0
    %2194 = vmatprep.subr.mxu0 0.0
    %2195 = vmatpush1.xpose.msra.mxu0 0.0
    %2196 = vmatprep.subr.mxu0 0.0
    %2197 = vmatpush1.xpose.msra.mxu0 0.0
    %2198 = vmatprep.subr.mxu0 0.0
    %2199 = vmatpush1.xpose.msra.mxu0 0.0
    %2200 = vmatprep.subr.mxu0 0.0
    %2201 = vmatpush1.xpose.msra.mxu0 0.0
    %2202 = vmatprep.subr.mxu0 0.0
    %2203 = vmatpush1.xpose.msra.mxu0 0.0
    %2204 = vmatprep.subr.mxu0 0.0
    %2205 = vmatpush1.xpose.msra.mxu0 0.0
    %2206 = vmatprep.mubr.f32.mxu0 %v2134
    %2207 = vmatmul.mubr.f32.gmra.mrb[0].mxu0 %v1834
    %v2208 = vpop.f32.mrb[0].mxu0
    %v2209 = vadd.f32 0.0, %v2208
    %v2210 = vpop.f32.mrb[0].mxu0
    %2211 = vdwg.mxu0
    %v2213 = vsel %vm1974, %v1837, 0
    %v2216 = vsel %vm1974, %v1891, 0
    %v2219 = vsel %vm1974, %v1893, 0
    %2221 = vmatprep.subr.mxu0 %v2216
    %2222 = vmatpush1.xpose.msra.mxu0 %v1890
    %2223 = vmatprep.subr.mxu0 %v2219
    %2224 = vmatpush1.xpose.msra.mxu0 %v1892
    %2225 = vmatprep.subr.mxu0 0.0
    %2226 = vmatpush1.xpose.msra.mxu0 0.0
    %2227 = vmatprep.subr.mxu0 0.0
    %2228 = vmatpush1.xpose.msra.mxu0 0.0
    %2229 = vmatprep.subr.mxu0 0.0
    %2230 = vmatpush1.xpose.msra.mxu0 0.0
    %2231 = vmatprep.subr.mxu0 0.0
    %2232 = vmatpush1.xpose.msra.mxu0 0.0
    %2233 = vmatprep.subr.mxu0 0.0
    %2234 = vmatpush1.xpose.msra.mxu0 0.0
    %2235 = vmatprep.subr.mxu0 0.0
    %2236 = vmatpush1.xpose.msra.mxu0 0.0
    %2237 = vmatprep.subr.mxu0 0.0
    %2238 = vmatpush1.xpose.msra.mxu0 0.0
    %2239 = vmatprep.subr.mxu0 0.0
    %2240 = vmatpush1.xpose.msra.mxu0 0.0
    %2241 = vmatprep.subr.mxu0 0.0
    %2242 = vmatpush1.xpose.msra.mxu0 0.0
    %2243 = vmatprep.subr.mxu0 0.0
    %2244 = vmatpush1.xpose.msra.mxu0 0.0
    %2245 = vmatprep.subr.mxu0 0.0
    %2246 = vmatpush1.xpose.msra.mxu0 0.0
    %2247 = vmatprep.subr.mxu0 0.0
    %2248 = vmatpush1.xpose.msra.mxu0 0.0
    %2249 = vmatprep.subr.mxu0 0.0
    %2250 = vmatpush1.xpose.msra.mxu0 0.0
    %2251 = vmatprep.subr.mxu0 0.0
    %2252 = vmatpush1.xpose.msra.mxu0 0.0
    %2253 = vmatprep.subr.mxu0 0.0
    %2254 = vmatpush1.xpose.msra.mxu0 0.0
    %2255 = vmatprep.subr.mxu0 0.0
    %2256 = vmatpush1.xpose.msra.mxu0 0.0
    %2257 = vmatprep.subr.mxu0 0.0
    %2258 = vmatpush1.xpose.msra.mxu0 0.0
    %2259 = vmatprep.subr.mxu0 0.0
    %2260 = vmatpush1.xpose.msra.mxu0 0.0
    %2261 = vmatprep.subr.mxu0 0.0
    %2262 = vmatpush1.xpose.msra.mxu0 0.0
    %2263 = vmatprep.subr.mxu0 0.0
    %2264 = vmatpush1.xpose.msra.mxu0 0.0
    %2265 = vmatprep.subr.mxu0 0.0
    %2266 = vmatpush1.xpose.msra.mxu0 0.0
    %2267 = vmatprep.subr.mxu0 0.0
    %2268 = vmatpush1.xpose.msra.mxu0 0.0
    %2269 = vmatprep.subr.mxu0 0.0
    %2270 = vmatpush1.xpose.msra.mxu0 0.0
    %2271 = vmatprep.subr.mxu0 0.0
    %2272 = vmatpush1.xpose.msra.mxu0 0.0
    %2273 = vmatprep.subr.mxu0 0.0
    %2274 = vmatpush1.xpose.msra.mxu0 0.0
    %2275 = vmatprep.subr.mxu0 0.0
    %2276 = vmatpush1.xpose.msra.mxu0 0.0
    %2277 = vmatprep.subr.mxu0 0.0
    %2278 = vmatpush1.xpose.msra.mxu0 0.0
    %2279 = vmatprep.subr.mxu0 0.0
    %2280 = vmatpush1.xpose.msra.mxu0 0.0
    %2281 = vmatprep.subr.mxu0 0.0
    %2282 = vmatpush1.xpose.msra.mxu0 0.0
    %2283 = vmatprep.subr.mxu0 0.0
    %2284 = vmatpush1.xpose.msra.mxu0 0.0
    %2285 = vmatprep.mubr.f32.mxu0 %v2213
    %2286 = vmatmul.mubr.f32.gmra.mrb[0].mxu0 %v1836
    %v2287 = vpop.f32.mrb[0].mxu0
    %v2288 = vadd.f32 0.0, %v2287
    %v2289 = vpop.f32.mrb[0].mxu0
    %2290 = vdwg.mxu0
    %v2292 = vsel %vm1974, %v1839, 0
    %v2295 = vsel %vm1974, %v1895, 0
    %v2298 = vsel %vm1974, %v1897, 0
    %2300 = vmatprep.subr.mxu0 %v2295
    %2301 = vmatpush1.xpose.msra.mxu0 %v1894
    %2302 = vmatprep.subr.mxu0 %v2298
    %2303 = vmatpush1.xpose.msra.mxu0 %v1896
    %2304 = vmatprep.subr.mxu0 0.0
    %2305 = vmatpush1.xpose.msra.mxu0 0.0
    %2306 = vmatprep.subr.mxu0 0.0
    %2307 = vmatpush1.xpose.msra.mxu0 0.0
    %2308 = vmatprep.subr.mxu0 0.0
    %2309 = vmatpush1.xpose.msra.mxu0 0.0
    %2310 = vmatprep.subr.mxu0 0.0
    %2311 = vmatpush1.xpose.msra.mxu0 0.0
    %2312 = vmatprep.subr.mxu0 0.0
    %2313 = vmatpush1.xpose.msra.mxu0 0.0
    %2314 = vmatprep.subr.mxu0 0.0
    %2315 = vmatpush1.xpose.msra.mxu0 0.0
    %2316 = vmatprep.subr.mxu0 0.0
    %2317 = vmatpush1.xpose.msra.mxu0 0.0
    %2318 = vmatprep.subr.mxu0 0.0
    %2319 = vmatpush1.xpose.msra.mxu0 0.0
    %2320 = vmatprep.subr.mxu0 0.0
    %2321 = vmatpush1.xpose.msra.mxu0 0.0
    %2322 = vmatprep.subr.mxu0 0.0
    %2323 = vmatpush1.xpose.msra.mxu0 0.0
    %2324 = vmatprep.subr.mxu0 0.0
    %2325 = vmatpush1.xpose.msra.mxu0 0.0
    %2326 = vmatprep.subr.mxu0 0.0
    %2327 = vmatpush1.xpose.msra.mxu0 0.0
    %2328 = vmatprep.subr.mxu0 0.0
    %2329 = vmatpush1.xpose.msra.mxu0 0.0
    %2330 = vmatprep.subr.mxu0 0.0
    %2331 = vmatpush1.xpose.msra.mxu0 0.0
    %2332 = vmatprep.subr.mxu0 0.0
    %2333 = vmatpush1.xpose.msra.mxu0 0.0
    %2334 = vmatprep.subr.mxu0 0.0
    %2335 = vmatpush1.xpose.msra.mxu0 0.0
    %2336 = vmatprep.subr.mxu0 0.0
    %2337 = vmatpush1.xpose.msra.mxu0 0.0
    %2338 = vmatprep.subr.mxu0 0.0
    %2339 = vmatpush1.xpose.msra.mxu0 0.0
    %2340 = vmatprep.subr.mxu0 0.0
    %2341 = vmatpush1.xpose.msra.mxu0 0.0
    %2342 = vmatprep.subr.mxu0 0.0
    %2343 = vmatpush1.xpose.msra.mxu0 0.0
    %2344 = vmatprep.subr.mxu0 0.0
    %2345 = vmatpush1.xpose.msra.mxu0 0.0
    %2346 = vmatprep.subr.mxu0 0.0
    %2347 = vmatpush1.xpose.msra.mxu0 0.0
    %2348 = vmatprep.subr.mxu0 0.0
    %2349 = vmatpush1.xpose.msra.mxu0 0.0
    %2350 = vmatprep.subr.mxu0 0.0
    %2351 = vmatpush1.xpose.msra.mxu0 0.0
    %2352 = vmatprep.subr.mxu0 0.0
    %2353 = vmatpush1.xpose.msra.mxu0 0.0
    %2354 = vmatprep.subr.mxu0 0.0
    %2355 = vmatpush1.xpose.msra.mxu0 0.0
    %2356 = vmatprep.subr.mxu0 0.0
    %2357 = vmatpush1.xpose.msra.mxu0 0.0
    %2358 = vmatprep.subr.mxu0 0.0
    %2359 = vmatpush1.xpose.msra.mxu0 0.0
    %2360 = vmatprep.subr.mxu0 0.0
    %2361 = vmatpush1.xpose.msra.mxu0 0.0
    %2362 = vmatprep.subr.mxu0 0.0
    %2363 = vmatpush1.xpose.msra.mxu0 0.0
    %2364 = vmatprep.mubr.f32.mxu0 %v2292
    %2365 = vmatmul.mubr.f32.gmra.mrb[0].mxu0 %v1838
    %v2366 = vpop.f32.mrb[0].mxu0
    %v2367 = vadd.f32 0.0, %v2366
    %v2368 = vpop.f32.mrb[0].mxu0
    %2369 = vdwg.mxu0
    %v2371 = vsel %vm1974, %v1841, 0
    %v2374 = vsel %vm1974, %v1899, 0
    %v2377 = vsel %vm1974, %v1901, 0
    %2379 = vmatprep.subr.mxu0 %v2374
    %2380 = vmatpush1.xpose.msra.mxu0 %v1898
    %2381 = vmatprep.subr.mxu0 %v2377
    %2382 = vmatpush1.xpose.msra.mxu0 %v1900
    %2383 = vmatprep.subr.mxu0 0.0
    %2384 = vmatpush1.xpose.msra.mxu0 0.0
    %2385 = vmatprep.subr.mxu0 0.0
    %2386 = vmatpush1.xpose.msra.mxu0 0.0
    %2387 = vmatprep.subr.mxu0 0.0
    %2388 = vmatpush1.xpose.msra.mxu0 0.0
    %2389 = vmatprep.subr.mxu0 0.0
    %2390 = vmatpush1.xpose.msra.mxu0 0.0
    %2391 = vmatprep.subr.mxu0 0.0
    %2392 = vmatpush1.xpose.msra.mxu0 0.0
    %2393 = vmatprep.subr.mxu0 0.0
    %2394 = vmatpush1.xpose.msra.mxu0 0.0
    %2395 = vmatprep.subr.mxu0 0.0
    %2396 = vmatpush1.xpose.msra.mxu0 0.0
    %2397 = vmatprep.subr.mxu0 0.0
    %2398 = vmatpush1.xpose.msra.mxu0 0.0
    %2399 = vmatprep.subr.mxu0 0.0
    %2400 = vmatpush1.xpose.msra.mxu0 0.0
    %2401 = vmatprep.subr.mxu0 0.0
    %2402 = vmatpush1.xpose.msra.mxu0 0.0
    %2403 = vmatprep.subr.mxu0 0.0
    %2404 = vmatpush1.xpose.msra.mxu0 0.0
    %2405 = vmatprep.subr.mxu0 0.0
    %2406 = vmatpush1.xpose.msra.mxu0 0.0
    %2407 = vmatprep.subr.mxu0 0.0
    %2408 = vmatpush1.xpose.msra.mxu0 0.0
    %2409 = vmatprep.subr.mxu0 0.0
    %2410 = vmatpush1.xpose.msra.mxu0 0.0
    %2411 = vmatprep.subr.mxu0 0.0
    %2412 = vmatpush1.xpose.msra.mxu0 0.0
    %2413 = vmatprep.subr.mxu0 0.0
    %2414 = vmatpush1.xpose.msra.mxu0 0.0
    %2415 = vmatprep.subr.mxu0 0.0
    %2416 = vmatpush1.xpose.msra.mxu0 0.0
    %2417 = vmatprep.subr.mxu0 0.0
    %2418 = vmatpush1.xpose.msra.mxu0 0.0
    %2419 = vmatprep.subr.mxu0 0.0
    %2420 = vmatpush1.xpose.msra.mxu0 0.0
    %2421 = vmatprep.subr.mxu0 0.0
    %2422 = vmatpush1.xpose.msra.mxu0 0.0
    %2423 = vmatprep.subr.mxu0 0.0
    %2424 = vmatpush1.xpose.msra.mxu0 0.0
    %2425 = vmatprep.subr.mxu0 0.0
    %2426 = vmatpush1.xpose.msra.mxu0 0.0
    %2427 = vmatprep.subr.mxu0 0.0
    %2428 = vmatpush1.xpose.msra.mxu0 0.0
    %2429 = vmatprep.subr.mxu0 0.0
    %2430 = vmatpush1.xpose.msra.mxu0 0.0
    %2431 = vmatprep.subr.mxu0 0.0
    %2432 = vmatpush1.xpose.msra.mxu0 0.0
    %2433 = vmatprep.subr.mxu0 0.0
    %2434 = vmatpush1.xpose.msra.mxu0 0.0
    %2435 = vmatprep.subr.mxu0 0.0
    %2436 = vmatpush1.xpose.msra.mxu0 0.0
    %2437 = vmatprep.subr.mxu0 0.0
    %2438 = vmatpush1.xpose.msra.mxu0 0.0
    %2439 = vmatprep.subr.mxu0 0.0
    %2440 = vmatpush1.xpose.msra.mxu0 0.0
    %2441 = vmatprep.subr.mxu0 0.0
    %2442 = vmatpush1.xpose.msra.mxu0 0.0
    %2443 = vmatprep.mubr.f32.mxu0 %v2371
    %2444 = vmatmul.mubr.f32.gmra.mrb[0].mxu0 %v1840
    %v2445 = vpop.f32.mrb[0].mxu0
    %v2446 = vadd.f32 0.0, %v2445
    %v2447 = vpop.f32.mrb[0].mxu0
    %2448 = vdwg.mxu0
    %v2450 = vsel %vm1974, %v1843, 0
    %v2453 = vsel %vm1974, %v1903, 0
    %v2456 = vsel %vm1974, %v1905, 0
    %2458 = vmatprep.subr.mxu0 %v2453
    %2459 = vmatpush1.xpose.msra.mxu0 %v1902
    %2460 = vmatprep.subr.mxu0 %v2456
    %2461 = vmatpush1.xpose.msra.mxu0 %v1904
    %2462 = vmatprep.subr.mxu0 0.0
    %2463 = vmatpush1.xpose.msra.mxu0 0.0
    %2464 = vmatprep.subr.mxu0 0.0
    %2465 = vmatpush1.xpose.msra.mxu0 0.0
    %2466 = vmatprep.subr.mxu0 0.0
    %2467 = vmatpush1.xpose.msra.mxu0 0.0
    %2468 = vmatprep.subr.mxu0 0.0
    %2469 = vmatpush1.xpose.msra.mxu0 0.0
    %2470 = vmatprep.subr.mxu0 0.0
    %2471 = vmatpush1.xpose.msra.mxu0 0.0
    %2472 = vmatprep.subr.mxu0 0.0
    %2473 = vmatpush1.xpose.msra.mxu0 0.0
    %2474 = vmatprep.subr.mxu0 0.0
    %2475 = vmatpush1.xpose.msra.mxu0 0.0
    %2476 = vmatprep.subr.mxu0 0.0
    %2477 = vmatpush1.xpose.msra.mxu0 0.0
    %2478 = vmatprep.subr.mxu0 0.0
    %2479 = vmatpush1.xpose.msra.mxu0 0.0
    %2480 = vmatprep.subr.mxu0 0.0
    %2481 = vmatpush1.xpose.msra.mxu0 0.0
    %2482 = vmatprep.subr.mxu0 0.0
    %2483 = vmatpush1.xpose.msra.mxu0 0.0
    %2484 = vmatprep.subr.mxu0 0.0
    %2485 = vmatpush1.xpose.msra.mxu0 0.0
    %2486 = vmatprep.subr.mxu0 0.0
    %2487 = vmatpush1.xpose.msra.mxu0 0.0
    %2488 = vmatprep.subr.mxu0 0.0
    %2489 = vmatpush1.xpose.msra.mxu0 0.0
    %2490 = vmatprep.subr.mxu0 0.0
    %2491 = vmatpush1.xpose.msra.mxu0 0.0
    %2492 = vmatprep.subr.mxu0 0.0
    %2493 = vmatpush1.xpose.msra.mxu0 0.0
    %2494 = vmatprep.subr.mxu0 0.0
    %2495 = vmatpush1.xpose.msra.mxu0 0.0
    %2496 = vmatprep.subr.mxu0 0.0
    %2497 = vmatpush1.xpose.msra.mxu0 0.0
    %2498 = vmatprep.subr.mxu0 0.0
    %2499 = vmatpush1.xpose.msra.mxu0 0.0
    %2500 = vmatprep.subr.mxu0 0.0
    %2501 = vmatpush1.xpose.msra.mxu0 0.0
    %2502 = vmatprep.subr.mxu0 0.0
    %2503 = vmatpush1.xpose.msra.mxu0 0.0
    %2504 = vmatprep.subr.mxu0 0.0
    %2505 = vmatpush1.xpose.msra.mxu0 0.0
    %2506 = vmatprep.subr.mxu0 0.0
    %2507 = vmatpush1.xpose.msra.mxu0 0.0
    %2508 = vmatprep.subr.mxu0 0.0
    %2509 = vmatpush1.xpose.msra.mxu0 0.0
    %2510 = vmatprep.subr.mxu0 0.0
    %2511 = vmatpush1.xpose.msra.mxu0 0.0
    %2512 = vmatprep.subr.mxu0 0.0
    %2513 = vmatpush1.xpose.msra.mxu0 0.0
    %2514 = vmatprep.subr.mxu0 0.0
    %2515 = vmatpush1.xpose.msra.mxu0 0.0
    %2516 = vmatprep.subr.mxu0 0.0
    %2517 = vmatpush1.xpose.msra.mxu0 0.0
    %2518 = vmatprep.subr.mxu0 0.0
    %2519 = vmatpush1.xpose.msra.mxu0 0.0
    %2520 = vmatprep.subr.mxu0 0.0
    %2521 = vmatpush1.xpose.msra.mxu0 0.0
    %2522 = vmatprep.mubr.f32.mxu0 %v2450
    %2523 = vmatmul.mubr.f32.gmra.mrb[0].mxu0 %v1842
    %v2524 = vpop.f32.mrb[0].mxu0
    %v2525 = vadd.f32 0.0, %v2524
    %v2526 = vpop.f32.mrb[0].mxu0
    %2527 = vdwg.mxu0
    %v2529 = vsel %vm1974, %v1845, 0
    %v2532 = vsel %vm1974, %v1907, 0
    %v2535 = vsel %vm1974, %v1909, 0
    %2537 = vmatprep.subr.mxu0 %v2532
    %2538 = vmatpush1.xpose.msra.mxu0 %v1906
    %2539 = vmatprep.subr.mxu0 %v2535
    %2540 = vmatpush1.xpose.msra.mxu0 %v1908
    %2541 = vmatprep.subr.mxu0 0.0
    %2542 = vmatpush1.xpose.msra.mxu0 0.0
    %2543 = vmatprep.subr.mxu0 0.0
    %2544 = vmatpush1.xpose.msra.mxu0 0.0
    %2545 = vmatprep.subr.mxu0 0.0
    %2546 = vmatpush1.xpose.msra.mxu0 0.0
    %2547 = vmatprep.subr.mxu0 0.0
    %2548 = vmatpush1.xpose.msra.mxu0 0.0
    %2549 = vmatprep.subr.mxu0 0.0
    %2550 = vmatpush1.xpose.msra.mxu0 0.0
    %2551 = vmatprep.subr.mxu0 0.0
    %2552 = vmatpush1.xpose.msra.mxu0 0.0
    %2553 = vmatprep.subr.mxu0 0.0
    %2554 = vmatpush1.xpose.msra.mxu0 0.0
    %2555 = vmatprep.subr.mxu0 0.0
    %2556 = vmatpush1.xpose.msra.mxu0 0.0
    %2557 = vmatprep.subr.mxu0 0.0
    %2558 = vmatpush1.xpose.msra.mxu0 0.0
    %2559 = vmatprep.subr.mxu0 0.0
    %2560 = vmatpush1.xpose.msra.mxu0 0.0
    %2561 = vmatprep.subr.mxu0 0.0
    %2562 = vmatpush1.xpose.msra.mxu0 0.0
    %2563 = vmatprep.subr.mxu0 0.0
    %2564 = vmatpush1.xpose.msra.mxu0 0.0
    %2565 = vmatprep.subr.mxu0 0.0
    %2566 = vmatpush1.xpose.msra.mxu0 0.0
    %2567 = vmatprep.subr.mxu0 0.0
    %2568 = vmatpush1.xpose.msra.mxu0 0.0
    %2569 = vmatprep.subr.mxu0 0.0
    %2570 = vmatpush1.xpose.msra.mxu0 0.0
    %2571 = vmatprep.subr.mxu0 0.0
    %2572 = vmatpush1.xpose.msra.mxu0 0.0
    %2573 = vmatprep.subr.mxu0 0.0
    %2574 = vmatpush1.xpose.msra.mxu0 0.0
    %2575 = vmatprep.subr.mxu0 0.0
    %2576 = vmatpush1.xpose.msra.mxu0 0.0
    %2577 = vmatprep.subr.mxu0 0.0
    %2578 = vmatpush1.xpose.msra.mxu0 0.0
    %2579 = vmatprep.subr.mxu0 0.0
    %2580 = vmatpush1.xpose.msra.mxu0 0.0
    %2581 = vmatprep.subr.mxu0 0.0
    %2582 = vmatpush1.xpose.msra.mxu0 0.0
    %2583 = vmatprep.subr.mxu0 0.0
    %2584 = vmatpush1.xpose.msra.mxu0 0.0
    %2585 = vmatprep.subr.mxu0 0.0
    %2586 = vmatpush1.xpose.msra.mxu0 0.0
    %2587 = vmatprep.subr.mxu0 0.0
    %2588 = vmatpush1.xpose.msra.mxu0 0.0
    %2589 = vmatprep.subr.mxu0 0.0
    %2590 = vmatpush1.xpose.msra.mxu0 0.0
    %2591 = vmatprep.subr.mxu0 0.0
    %2592 = vmatpush1.xpose.msra.mxu0 0.0
    %2593 = vmatprep.subr.mxu0 0.0
    %2594 = vmatpush1.xpose.msra.mxu0 0.0
    %2595 = vmatprep.subr.mxu0 0.0
    %2596 = vmatpush1.xpose.msra.mxu0 0.0
    %2597 = vmatprep.subr.mxu0 0.0
    %2598 = vmatpush1.xpose.msra.mxu0 0.0
    %2599 = vmatprep.subr.mxu0 0.0
    %2600 = vmatpush1.xpose.msra.mxu0 0.0
    %2601 = vmatprep.mubr.f32.mxu0 %v2529
    %2602 = vmatmul.mubr.f32.gmra.mrb[0].mxu0 %v1844
    %v2603 = vpop.f32.mrb[0].mxu0
    %v2604 = vadd.f32 0.0, %v2603
    %v2605 = vpop.f32.mrb[0].mxu0
    %2606 = vdwg.mxu0
    %v2608 = vsel %vm1974, %v1847, 0
    %v2611 = vsel %vm1974, %v1911, 0
    %v2614 = vsel %vm1974, %v1913, 0
    %2616 = vmatprep.subr.mxu0 %v2611
    %2617 = vmatpush1.xpose.msra.mxu0 %v1910
    %2618 = vmatprep.subr.mxu0 %v2614
    %2619 = vmatpush1.xpose.msra.mxu0 %v1912
    %2620 = vmatprep.subr.mxu0 0.0
    %2621 = vmatpush1.xpose.msra.mxu0 0.0
    %2622 = vmatprep.subr.mxu0 0.0
    %2623 = vmatpush1.xpose.msra.mxu0 0.0
    %2624 = vmatprep.subr.mxu0 0.0
    %2625 = vmatpush1.xpose.msra.mxu0 0.0
    %2626 = vmatprep.subr.mxu0 0.0
    %2627 = vmatpush1.xpose.msra.mxu0 0.0
    %2628 = vmatprep.subr.mxu0 0.0
    %2629 = vmatpush1.xpose.msra.mxu0 0.0
    %2630 = vmatprep.subr.mxu0 0.0
    %2631 = vmatpush1.xpose.msra.mxu0 0.0
    %2632 = vmatprep.subr.mxu0 0.0
    %2633 = vmatpush1.xpose.msra.mxu0 0.0
    %2634 = vmatprep.subr.mxu0 0.0
    %2635 = vmatpush1.xpose.msra.mxu0 0.0
    %2636 = vmatprep.subr.mxu0 0.0
    %2637 = vmatpush1.xpose.msra.mxu0 0.0
    %2638 = vmatprep.subr.mxu0 0.0
    %2639 = vmatpush1.xpose.msra.mxu0 0.0
    %2640 = vmatprep.subr.mxu0 0.0
    %2641 = vmatpush1.xpose.msra.mxu0 0.0
    %2642 = vmatprep.subr.mxu0 0.0
    %2643 = vmatpush1.xpose.msra.mxu0 0.0
    %2644 = vmatprep.subr.mxu0 0.0
    %2645 = vmatpush1.xpose.msra.mxu0 0.0
    %2646 = vmatprep.subr.mxu0 0.0
    %2647 = vmatpush1.xpose.msra.mxu0 0.0
    %2648 = vmatprep.subr.mxu0 0.0
    %2649 = vmatpush1.xpose.msra.mxu0 0.0
    %2650 = vmatprep.subr.mxu0 0.0
    %2651 = vmatpush1.xpose.msra.mxu0 0.0
    %2652 = vmatprep.subr.mxu0 0.0
    %2653 = vmatpush1.xpose.msra.mxu0 0.0
    %2654 = vmatprep.subr.mxu0 0.0
    %2655 = vmatpush1.xpose.msra.mxu0 0.0
    %2656 = vmatprep.subr.mxu0 0.0
    %2657 = vmatpush1.xpose.msra.mxu0 0.0
    %2658 = vmatprep.subr.mxu0 0.0
    %2659 = vmatpush1.xpose.msra.mxu0 0.0
    %2660 = vmatprep.subr.mxu0 0.0
    %2661 = vmatpush1.xpose.msra.mxu0 0.0
    %2662 = vmatprep.subr.mxu0 0.0
    %2663 = vmatpush1.xpose.msra.mxu0 0.0
    %2664 = vmatprep.subr.mxu0 0.0
    %2665 = vmatpush1.xpose.msra.mxu0 0.0
    %2666 = vmatprep.subr.mxu0 0.0
    %2667 = vmatpush1.xpose.msra.mxu0 0.0
    %2668 = vmatprep.subr.mxu0 0.0
    %2669 = vmatpush1.xpose.msra.mxu0 0.0
    %2670 = vmatprep.subr.mxu0 0.0
    %2671 = vmatpush1.xpose.msra.mxu0 0.0
    %2672 = vmatprep.subr.mxu0 0.0
    %2673 = vmatpush1.xpose.msra.mxu0 0.0
    %2674 = vmatprep.subr.mxu0 0.0
    %2675 = vmatpush1.xpose.msra.mxu0 0.0
    %2676 = vmatprep.subr.mxu0 0.0
    %2677 = vmatpush1.xpose.msra.mxu0 0.0
    %2678 = vmatprep.subr.mxu0 0.0
    %2679 = vmatpush1.xpose.msra.mxu0 0.0
    %2680 = vmatprep.mubr.f32.mxu0 %v2608
    %2681 = vmatmul.mubr.f32.gmra.mrb[0].mxu0 %v1846
    %v2682 = vpop.f32.mrb[0].mxu0
    %v2683 = vadd.f32 0.0, %v2682
    %v2684 = vpop.f32.mrb[0].mxu0
    %2685 = vdwg.mxu0
    %v2687 = vsel %vm1974, %v1849, 0
    %v2690 = vsel %vm1974, %v1915, 0
    %v2693 = vsel %vm1974, %v1917, 0
    %2695 = vmatprep.subr.mxu0 %v2690
    %2696 = vmatpush1.xpose.msra.mxu0 %v1914
    %2697 = vmatprep.subr.mxu0 %v2693
    %2698 = vmatpush1.xpose.msra.mxu0 %v1916
    %2699 = vmatprep.subr.mxu0 0.0
    %2700 = vmatpush1.xpose.msra.mxu0 0.0
    %2701 = vmatprep.subr.mxu0 0.0
    %2702 = vmatpush1.xpose.msra.mxu0 0.0
    %2703 = vmatprep.subr.mxu0 0.0
    %2704 = vmatpush1.xpose.msra.mxu0 0.0
    %2705 = vmatprep.subr.mxu0 0.0
    %2706 = vmatpush1.xpose.msra.mxu0 0.0
    %2707 = vmatprep.subr.mxu0 0.0
    %2708 = vmatpush1.xpose.msra.mxu0 0.0
    %2709 = vmatprep.subr.mxu0 0.0
    %2710 = vmatpush1.xpose.msra.mxu0 0.0
    %2711 = vmatprep.subr.mxu0 0.0
    %2712 = vmatpush1.xpose.msra.mxu0 0.0
    %2713 = vmatprep.subr.mxu0 0.0
    %2714 = vmatpush1.xpose.msra.mxu0 0.0
    %2715 = vmatprep.subr.mxu0 0.0
    %2716 = vmatpush1.xpose.msra.mxu0 0.0
    %2717 = vmatprep.subr.mxu0 0.0
    %2718 = vmatpush1.xpose.msra.mxu0 0.0
    %2719 = vmatprep.subr.mxu0 0.0
    %2720 = vmatpush1.xpose.msra.mxu0 0.0
    %2721 = vmatprep.subr.mxu0 0.0
    %2722 = vmatpush1.xpose.msra.mxu0 0.0
    %2723 = vmatprep.subr.mxu0 0.0
    %2724 = vmatpush1.xpose.msra.mxu0 0.0
    %2725 = vmatprep.subr.mxu0 0.0
    %2726 = vmatpush1.xpose.msra.mxu0 0.0
    %2727 = vmatprep.subr.mxu0 0.0
    %2728 = vmatpush1.xpose.msra.mxu0 0.0
    %2729 = vmatprep.subr.mxu0 0.0
    %2730 = vmatpush1.xpose.msra.mxu0 0.0
    %2731 = vmatprep.subr.mxu0 0.0
    %2732 = vmatpush1.xpose.msra.mxu0 0.0
    %2733 = vmatprep.subr.mxu0 0.0
    %2734 = vmatpush1.xpose.msra.mxu0 0.0
    %2735 = vmatprep.subr.mxu0 0.0
    %2736 = vmatpush1.xpose.msra.mxu0 0.0
    %2737 = vmatprep.subr.mxu0 0.0
    %2738 = vmatpush1.xpose.msra.mxu0 0.0
    %2739 = vmatprep.subr.mxu0 0.0
    %2740 = vmatpush1.xpose.msra.mxu0 0.0
    %2741 = vmatprep.subr.mxu0 0.0
    %2742 = vmatpush1.xpose.msra.mxu0 0.0
    %2743 = vmatprep.subr.mxu0 0.0
    %2744 = vmatpush1.xpose.msra.mxu0 0.0
    %2745 = vmatprep.subr.mxu0 0.0
    %2746 = vmatpush1.xpose.msra.mxu0 0.0
    %2747 = vmatprep.subr.mxu0 0.0
    %2748 = vmatpush1.xpose.msra.mxu0 0.0
    %2749 = vmatprep.subr.mxu0 0.0
    %2750 = vmatpush1.xpose.msra.mxu0 0.0
    %2751 = vmatprep.subr.mxu0 0.0
    %2752 = vmatpush1.xpose.msra.mxu0 0.0
    %2753 = vmatprep.subr.mxu0 0.0
    %2754 = vmatpush1.xpose.msra.mxu0 0.0
    %2755 = vmatprep.subr.mxu0 0.0
    %2756 = vmatpush1.xpose.msra.mxu0 0.0
    %2757 = vmatprep.subr.mxu0 0.0
    %2758 = vmatpush1.xpose.msra.mxu0 0.0
    %2759 = vmatprep.mubr.f32.mxu0 %v2687
    %2760 = vmatmul.mubr.f32.gmra.mrb[0].mxu0 %v1848
    %v2761 = vpop.f32.mrb[0].mxu0
    %v2762 = vadd.f32 0.0, %v2761
    %v2763 = vpop.f32.mrb[0].mxu0
    %2764 = vdwg.mxu0
    %v2766 = vsel %vm1974, %v1851, 0
    %v2769 = vsel %vm1974, %v1919, 0
    %v2772 = vsel %vm1974, %v1921, 0
    %2774 = vmatprep.subr.mxu0 %v2769
    %2775 = vmatpush1.xpose.msra.mxu0 %v1918
    %2776 = vmatprep.subr.mxu0 %v2772
    %2777 = vmatpush1.xpose.msra.mxu0 %v1920
    %2778 = vmatprep.subr.mxu0 0.0
    %2779 = vmatpush1.xpose.msra.mxu0 0.0
    %2780 = vmatprep.subr.mxu0 0.0
    %2781 = vmatpush1.xpose.msra.mxu0 0.0
    %2782 = vmatprep.subr.mxu0 0.0
    %2783 = vmatpush1.xpose.msra.mxu0 0.0
    %2784 = vmatprep.subr.mxu0 0.0
    %2785 = vmatpush1.xpose.msra.mxu0 0.0
    %2786 = vmatprep.subr.mxu0 0.0
    %2787 = vmatpush1.xpose.msra.mxu0 0.0
    %2788 = vmatprep.subr.mxu0 0.0
    %2789 = vmatpush1.xpose.msra.mxu0 0.0
    %2790 = vmatprep.subr.mxu0 0.0
    %2791 = vmatpush1.xpose.msra.mxu0 0.0
    %2792 = vmatprep.subr.mxu0 0.0
    %2793 = vmatpush1.xpose.msra.mxu0 0.0
    %2794 = vmatprep.subr.mxu0 0.0
    %2795 = vmatpush1.xpose.msra.mxu0 0.0
    %2796 = vmatprep.subr.mxu0 0.0
    %2797 = vmatpush1.xpose.msra.mxu0 0.0
    %2798 = vmatprep.subr.mxu0 0.0
    %2799 = vmatpush1.xpose.msra.mxu0 0.0
    %2800 = vmatprep.subr.mxu0 0.0
    %2801 = vmatpush1.xpose.msra.mxu0 0.0
    %2802 = vmatprep.subr.mxu0 0.0
    %2803 = vmatpush1.xpose.msra.mxu0 0.0
    %2804 = vmatprep.subr.mxu0 0.0
    %2805 = vmatpush1.xpose.msra.mxu0 0.0
    %2806 = vmatprep.subr.mxu0 0.0
    %2807 = vmatpush1.xpose.msra.mxu0 0.0
    %2808 = vmatprep.subr.mxu0 0.0
    %2809 = vmatpush1.xpose.msra.mxu0 0.0
    %2810 = vmatprep.subr.mxu0 0.0
    %2811 = vmatpush1.xpose.msra.mxu0 0.0
    %2812 = vmatprep.subr.mxu0 0.0
    %2813 = vmatpush1.xpose.msra.mxu0 0.0
    %2814 = vmatprep.subr.mxu0 0.0
    %2815 = vmatpush1.xpose.msra.mxu0 0.0
    %2816 = vmatprep.subr.mxu0 0.0
    %2817 = vmatpush1.xpose.msra.mxu0 0.0
    %2818 = vmatprep.subr.mxu0 0.0
    %2819 = vmatpush1.xpose.msra.mxu0 0.0
    %2820 = vmatprep.subr.mxu0 0.0
    %2821 = vmatpush1.xpose.msra.mxu0 0.0
    %2822 = vmatprep.subr.mxu0 0.0
    %2823 = vmatpush1.xpose.msra.mxu0 0.0
    %2824 = vmatprep.subr.mxu0 0.0
    %2825 = vmatpush1.xpose.msra.mxu0 0.0
    %2826 = vmatprep.subr.mxu0 0.0
    %2827 = vmatpush1.xpose.msra.mxu0 0.0
    %2828 = vmatprep.subr.mxu0 0.0
    %2829 = vmatpush1.xpose.msra.mxu0 0.0
    %2830 = vmatprep.subr.mxu0 0.0
    %2831 = vmatpush1.xpose.msra.mxu0 0.0
    %2832 = vmatprep.subr.mxu0 0.0
    %2833 = vmatpush1.xpose.msra.mxu0 0.0
    %2834 = vmatprep.subr.mxu0 0.0
    %2835 = vmatpush1.xpose.msra.mxu0 0.0
    %2836 = vmatprep.subr.mxu0 0.0
    %2837 = vmatpush1.xpose.msra.mxu0 0.0
    %2838 = vmatprep.mubr.f32.mxu0 %v2766
    %2839 = vmatmul.mubr.f32.gmra.mrb[0].mxu0 %v1850
    %v2840 = vpop.f32.mrb[0].mxu0
    %v2841 = vadd.f32 0.0, %v2840
    %v2842 = vpop.f32.mrb[0].mxu0
    %2843 = vdwg.mxu0
    %v2845 = vsel %vm1974, %v1853, 0
    %v2848 = vsel %vm1974, %v1923, 0
    %v2851 = vsel %vm1974, %v1925, 0
    %2853 = vmatprep.subr.mxu0 %v2848
    %2854 = vmatpush1.xpose.msra.mxu0 %v1922
    %2855 = vmatprep.subr.mxu0 %v2851
    %2856 = vmatpush1.xpose.msra.mxu0 %v1924
    %2857 = vmatprep.subr.mxu0 0.0
    %2858 = vmatpush1.xpose.msra.mxu0 0.0
    %2859 = vmatprep.subr.mxu0 0.0
    %2860 = vmatpush1.xpose.msra.mxu0 0.0
    %2861 = vmatprep.subr.mxu0 0.0
    %2862 = vmatpush1.xpose.msra.mxu0 0.0
    %2863 = vmatprep.subr.mxu0 0.0
    %2864 = vmatpush1.xpose.msra.mxu0 0.0
    %2865 = vmatprep.subr.mxu0 0.0
    %2866 = vmatpush1.xpose.msra.mxu0 0.0
    %2867 = vmatprep.subr.mxu0 0.0
    %2868 = vmatpush1.xpose.msra.mxu0 0.0
    %2869 = vmatprep.subr.mxu0 0.0
    %2870 = vmatpush1.xpose.msra.mxu0 0.0
    %2871 = vmatprep.subr.mxu0 0.0
    %2872 = vmatpush1.xpose.msra.mxu0 0.0
    %2873 = vmatprep.subr.mxu0 0.0
    %2874 = vmatpush1.xpose.msra.mxu0 0.0
    %2875 = vmatprep.subr.mxu0 0.0
    %2876 = vmatpush1.xpose.msra.mxu0 0.0
    %2877 = vmatprep.subr.mxu0 0.0
    %2878 = vmatpush1.xpose.msra.mxu0 0.0
    %2879 = vmatprep.subr.mxu0 0.0
    %2880 = vmatpush1.xpose.msra.mxu0 0.0
    %2881 = vmatprep.subr.mxu0 0.0
    %2882 = vmatpush1.xpose.msra.mxu0 0.0
    %2883 = vmatprep.subr.mxu0 0.0
    %2884 = vmatpush1.xpose.msra.mxu0 0.0
    %2885 = vmatprep.subr.mxu0 0.0
    %2886 = vmatpush1.xpose.msra.mxu0 0.0
    %2887 = vmatprep.subr.mxu0 0.0
    %2888 = vmatpush1.xpose.msra.mxu0 0.0
    %2889 = vmatprep.subr.mxu0 0.0
    %2890 = vmatpush1.xpose.msra.mxu0 0.0
    %2891 = vmatprep.subr.mxu0 0.0
    %2892 = vmatpush1.xpose.msra.mxu0 0.0
    %2893 = vmatprep.subr.mxu0 0.0
    %2894 = vmatpush1.xpose.msra.mxu0 0.0
    %2895 = vmatprep.subr.mxu0 0.0
    %2896 = vmatpush1.xpose.msra.mxu0 0.0
    %2897 = vmatprep.subr.mxu0 0.0
    %2898 = vmatpush1.xpose.msra.mxu0 0.0
    %2899 = vmatprep.subr.mxu0 0.0
    %2900 = vmatpush1.xpose.msra.mxu0 0.0
    %2901 = vmatprep.subr.mxu0 0.0
    %2902 = vmatpush1.xpose.msra.mxu0 0.0
    %2903 = vmatprep.subr.mxu0 0.0
    %2904 = vmatpush1.xpose.msra.mxu0 0.0
    %2905 = vmatprep.subr.mxu0 0.0
    %2906 = vmatpush1.xpose.msra.mxu0 0.0
    %2907 = vmatprep.subr.mxu0 0.0
    %2908 = vmatpush1.xpose.msra.mxu0 0.0
    %2909 = vmatprep.subr.mxu0 0.0
    %2910 = vmatpush1.xpose.msra.mxu0 0.0
    %2911 = vmatprep.subr.mxu0 0.0
    %2912 = vmatpush1.xpose.msra.mxu0 0.0
    %2913 = vmatprep.subr.mxu0 0.0
    %2914 = vmatpush1.xpose.msra.mxu0 0.0
    %2915 = vmatprep.subr.mxu0 0.0
    %2916 = vmatpush1.xpose.msra.mxu0 0.0
    %2917 = vmatprep.mubr.f32.mxu0 %v2845
    %2918 = vmatmul.mubr.f32.gmra.mrb[0].mxu0 %v1852
    %v2919 = vpop.f32.mrb[0].mxu0
    %v2920 = vadd.f32 0.0, %v2919
    %v2921 = vpop.f32.mrb[0].mxu0
    %2922 = vdwg.mxu0
    %v2924 = vsel %vm1974, %v1855, 0
    %v2927 = vsel %vm1974, %v1927, 0
    %v2930 = vsel %vm1974, %v1929, 0
    %2932 = vmatprep.subr.mxu0 %v2927
    %2933 = vmatpush1.xpose.msra.mxu0 %v1926
    %2934 = vmatprep.subr.mxu0 %v2930
    %2935 = vmatpush1.xpose.msra.mxu0 %v1928
    %2936 = vmatprep.subr.mxu0 0.0
    %2937 = vmatpush1.xpose.msra.mxu0 0.0
    %2938 = vmatprep.subr.mxu0 0.0
    %2939 = vmatpush1.xpose.msra.mxu0 0.0
    %2940 = vmatprep.subr.mxu0 0.0
    %2941 = vmatpush1.xpose.msra.mxu0 0.0
    %2942 = vmatprep.subr.mxu0 0.0
    %2943 = vmatpush1.xpose.msra.mxu0 0.0
    %2944 = vmatprep.subr.mxu0 0.0
    %2945 = vmatpush1.xpose.msra.mxu0 0.0
    %2946 = vmatprep.subr.mxu0 0.0
    %2947 = vmatpush1.xpose.msra.mxu0 0.0
    %2948 = vmatprep.subr.mxu0 0.0
    %2949 = vmatpush1.xpose.msra.mxu0 0.0
    %2950 = vmatprep.subr.mxu0 0.0
    %2951 = vmatpush1.xpose.msra.mxu0 0.0
    %2952 = vmatprep.subr.mxu0 0.0
    %2953 = vmatpush1.xpose.msra.mxu0 0.0
    %2954 = vmatprep.subr.mxu0 0.0
    %2955 = vmatpush1.xpose.msra.mxu0 0.0
    %2956 = vmatprep.subr.mxu0 0.0
    %2957 = vmatpush1.xpose.msra.mxu0 0.0
    %2958 = vmatprep.subr.mxu0 0.0
    %2959 = vmatpush1.xpose.msra.mxu0 0.0
    %2960 = vmatprep.subr.mxu0 0.0
    %2961 = vmatpush1.xpose.msra.mxu0 0.0
    %2962 = vmatprep.subr.mxu0 0.0
    %2963 = vmatpush1.xpose.msra.mxu0 0.0
    %2964 = vmatprep.subr.mxu0 0.0
    %2965 = vmatpush1.xpose.msra.mxu0 0.0
    %2966 = vmatprep.subr.mxu0 0.0
    %2967 = vmatpush1.xpose.msra.mxu0 0.0
    %2968 = vmatprep.subr.mxu0 0.0
    %2969 = vmatpush1.xpose.msra.mxu0 0.0
    %2970 = vmatprep.subr.mxu0 0.0
    %2971 = vmatpush1.xpose.msra.mxu0 0.0
    %2972 = vmatprep.subr.mxu0 0.0
    %2973 = vmatpush1.xpose.msra.mxu0 0.0
    %2974 = vmatprep.subr.mxu0 0.0
    %2975 = vmatpush1.xpose.msra.mxu0 0.0
    %2976 = vmatprep.subr.mxu0 0.0
    %2977 = vmatpush1.xpose.msra.mxu0 0.0
    %2978 = vmatprep.subr.mxu0 0.0
    %2979 = vmatpush1.xpose.msra.mxu0 0.0
    %2980 = vmatprep.subr.mxu0 0.0
    %2981 = vmatpush1.xpose.msra.mxu0 0.0
    %2982 = vmatprep.subr.mxu0 0.0
    %2983 = vmatpush1.xpose.msra.mxu0 0.0
    %2984 = vmatprep.subr.mxu0 0.0
    %2985 = vmatpush1.xpose.msra.mxu0 0.0
    %2986 = vmatprep.subr.mxu0 0.0
    %2987 = vmatpush1.xpose.msra.mxu0 0.0
    %2988 = vmatprep.subr.mxu0 0.0
    %2989 = vmatpush1.xpose.msra.mxu0 0.0
    %2990 = vmatprep.subr.mxu0 0.0
    %2991 = vmatpush1.xpose.msra.mxu0 0.0
    %2992 = vmatprep.subr.mxu0 0.0
    %2993 = vmatpush1.xpose.msra.mxu0 0.0
    %2994 = vmatprep.subr.mxu0 0.0
    %2995 = vmatpush1.xpose.msra.mxu0 0.0
    %2996 = vmatprep.mubr.f32.mxu0 %v2924
    %2997 = vmatmul.mubr.f32.gmra.mrb[0].mxu0 %v1854
    %v2998 = vpop.f32.mrb[0].mxu0
    %v2999 = vadd.f32 0.0, %v2998
    %v3000 = vpop.f32.mrb[0].mxu0
    %3001 = vdwg.mxu0
    %v3003 = vsel %vm1974, %v1857, 0
    %v3006 = vsel %vm1974, %v1931, 0
    %v3009 = vsel %vm1974, %v1933, 0
    %3011 = vmatprep.subr.mxu0 %v3006
    %3012 = vmatpush1.xpose.msra.mxu0 %v1930
    %3013 = vmatprep.subr.mxu0 %v3009
    %3014 = vmatpush1.xpose.msra.mxu0 %v1932
    %3015 = vmatprep.subr.mxu0 0.0
    %3016 = vmatpush1.xpose.msra.mxu0 0.0
    %3017 = vmatprep.subr.mxu0 0.0
    %3018 = vmatpush1.xpose.msra.mxu0 0.0
    %3019 = vmatprep.subr.mxu0 0.0
    %3020 = vmatpush1.xpose.msra.mxu0 0.0
    %3021 = vmatprep.subr.mxu0 0.0
    %3022 = vmatpush1.xpose.msra.mxu0 0.0
    %3023 = vmatprep.subr.mxu0 0.0
    %3024 = vmatpush1.xpose.msra.mxu0 0.0
    %3025 = vmatprep.subr.mxu0 0.0
    %3026 = vmatpush1.xpose.msra.mxu0 0.0
    %3027 = vmatprep.subr.mxu0 0.0
    %3028 = vmatpush1.xpose.msra.mxu0 0.0
    %3029 = vmatprep.subr.mxu0 0.0
    %3030 = vmatpush1.xpose.msra.mxu0 0.0
    %3031 = vmatprep.subr.mxu0 0.0
    %3032 = vmatpush1.xpose.msra.mxu0 0.0
    %3033 = vmatprep.subr.mxu0 0.0
    %3034 = vmatpush1.xpose.msra.mxu0 0.0
    %3035 = vmatprep.subr.mxu0 0.0
    %3036 = vmatpush1.xpose.msra.mxu0 0.0
    %3037 = vmatprep.subr.mxu0 0.0
    %3038 = vmatpush1.xpose.msra.mxu0 0.0
    %3039 = vmatprep.subr.mxu0 0.0
    %3040 = vmatpush1.xpose.msra.mxu0 0.0
    %3041 = vmatprep.subr.mxu0 0.0
    %3042 = vmatpush1.xpose.msra.mxu0 0.0
    %3043 = vmatprep.subr.mxu0 0.0
    %3044 = vmatpush1.xpose.msra.mxu0 0.0
    %3045 = vmatprep.subr.mxu0 0.0
    %3046 = vmatpush1.xpose.msra.mxu0 0.0
    %3047 = vmatprep.subr.mxu0 0.0
    %3048 = vmatpush1.xpose.msra.mxu0 0.0
    %3049 = vmatprep.subr.mxu0 0.0
    %3050 = vmatpush1.xpose.msra.mxu0 0.0
    %3051 = vmatprep.subr.mxu0 0.0
    %3052 = vmatpush1.xpose.msra.mxu0 0.0
    %3053 = vmatprep.subr.mxu0 0.0
    %3054 = vmatpush1.xpose.msra.mxu0 0.0
    %3055 = vmatprep.subr.mxu0 0.0
    %3056 = vmatpush1.xpose.msra.mxu0 0.0
    %3057 = vmatprep.subr.mxu0 0.0
    %3058 = vmatpush1.xpose.msra.mxu0 0.0
    %3059 = vmatprep.subr.mxu0 0.0
    %3060 = vmatpush1.xpose.msra.mxu0 0.0
    %3061 = vmatprep.subr.mxu0 0.0
    %3062 = vmatpush1.xpose.msra.mxu0 0.0
    %3063 = vmatprep.subr.mxu0 0.0
    %3064 = vmatpush1.xpose.msra.mxu0 0.0
    %3065 = vmatprep.subr.mxu0 0.0
    %3066 = vmatpush1.xpose.msra.mxu0 0.0
    %3067 = vmatprep.subr.mxu0 0.0
    %3068 = vmatpush1.xpose.msra.mxu0 0.0
    %3069 = vmatprep.subr.mxu0 0.0
    %3070 = vmatpush1.xpose.msra.mxu0 0.0
    %3071 = vmatprep.subr.mxu0 0.0
    %3072 = vmatpush1.xpose.msra.mxu0 0.0
    %3073 = vmatprep.subr.mxu0 0.0
    %3074 = vmatpush1.xpose.msra.mxu0 0.0
    %3075 = vmatprep.mubr.f32.mxu0 %v3003
    %3076 = vmatmul.mubr.f32.gmra.mrb[0].mxu0 %v1856
    %v3077 = vpop.f32.mrb[0].mxu0
    %v3078 = vadd.f32 0.0, %v3077
    %v3079 = vpop.f32.mrb[0].mxu0
    %3080 = vdwg.mxu0
    %v3082 = vsel %vm1974, %v1859, 0
    %v3085 = vsel %vm1974, %v1935, 0
    %v3088 = vsel %vm1974, %v1937, 0
    %3090 = vmatprep.subr.mxu0 %v3085
    %3091 = vmatpush1.xpose.msra.mxu0 %v1934
    %3092 = vmatprep.subr.mxu0 %v3088
    %3093 = vmatpush1.xpose.msra.mxu0 %v1936
    %3094 = vmatprep.subr.mxu0 0.0
    %3095 = vmatpush1.xpose.msra.mxu0 0.0
    %3096 = vmatprep.subr.mxu0 0.0
    %3097 = vmatpush1.xpose.msra.mxu0 0.0
    %3098 = vmatprep.subr.mxu0 0.0
    %3099 = vmatpush1.xpose.msra.mxu0 0.0
    %3100 = vmatprep.subr.mxu0 0.0
    %3101 = vmatpush1.xpose.msra.mxu0 0.0
    %3102 = vmatprep.subr.mxu0 0.0
    %3103 = vmatpush1.xpose.msra.mxu0 0.0
    %3104 = vmatprep.subr.mxu0 0.0
    %3105 = vmatpush1.xpose.msra.mxu0 0.0
    %3106 = vmatprep.subr.mxu0 0.0
    %3107 = vmatpush1.xpose.msra.mxu0 0.0
    %3108 = vmatprep.subr.mxu0 0.0
    %3109 = vmatpush1.xpose.msra.mxu0 0.0
    %3110 = vmatprep.subr.mxu0 0.0
    %3111 = vmatpush1.xpose.msra.mxu0 0.0
    %3112 = vmatprep.subr.mxu0 0.0
    %3113 = vmatpush1.xpose.msra.mxu0 0.0
    %3114 = vmatprep.subr.mxu0 0.0
    %3115 = vmatpush1.xpose.msra.mxu0 0.0
    %3116 = vmatprep.subr.mxu0 0.0
    %3117 = vmatpush1.xpose.msra.mxu0 0.0
    %3118 = vmatprep.subr.mxu0 0.0
    %3119 = vmatpush1.xpose.msra.mxu0 0.0
    %3120 = vmatprep.subr.mxu0 0.0
    %3121 = vmatpush1.xpose.msra.mxu0 0.0
    %3122 = vmatprep.subr.mxu0 0.0
    %3123 = vmatpush1.xpose.msra.mxu0 0.0
    %3124 = vmatprep.subr.mxu0 0.0
    %3125 = vmatpush1.xpose.msra.mxu0 0.0
    %3126 = vmatprep.subr.mxu0 0.0
    %3127 = vmatpush1.xpose.msra.mxu0 0.0
    %3128 = vmatprep.subr.mxu0 0.0
    %3129 = vmatpush1.xpose.msra.mxu0 0.0
    %3130 = vmatprep.subr.mxu0 0.0
    %3131 = vmatpush1.xpose.msra.mxu0 0.0
    %3132 = vmatprep.subr.mxu0 0.0
    %3133 = vmatpush1.xpose.msra.mxu0 0.0
    %3134 = vmatprep.subr.mxu0 0.0
    %3135 = vmatpush1.xpose.msra.mxu0 0.0
    %3136 = vmatprep.subr.mxu0 0.0
    %3137 = vmatpush1.xpose.msra.mxu0 0.0
    %3138 = vmatprep.subr.mxu0 0.0
    %3139 = vmatpush1.xpose.msra.mxu0 0.0
    %3140 = vmatprep.subr.mxu0 0.0
    %3141 = vmatpush1.xpose.msra.mxu0 0.0
    %3142 = vmatprep.subr.mxu0 0.0
    %3143 = vmatpush1.xpose.msra.mxu0 0.0
    %3144 = vmatprep.subr.mxu0 0.0
    %3145 = vmatpush1.xpose.msra.mxu0 0.0
    %3146 = vmatprep.subr.mxu0 0.0
    %3147 = vmatpush1.xpose.msra.mxu0 0.0
    %3148 = vmatprep.subr.mxu0 0.0
    %3149 = vmatpush1.xpose.msra.mxu0 0.0
    %3150 = vmatprep.subr.mxu0 0.0
    %3151 = vmatpush1.xpose.msra.mxu0 0.0
    %3152 = vmatprep.subr.mxu0 0.0
    %3153 = vmatpush1.xpose.msra.mxu0 0.0
    %3154 = vmatprep.mubr.f32.mxu0 %v3082
    %3155 = vmatmul.mubr.f32.gmra.mrb[0].mxu0 %v1858
    %v3156 = vpop.f32.mrb[0].mxu0
    %v3157 = vadd.f32 0.0, %v3156
    %v3158 = vpop.f32.mrb[0].mxu0
    %3159 = vdwg.mxu0
    %v3161 = vsel %vm1974, %v1861, 0
    %v3164 = vsel %vm1974, %v1939, 0
    %v3167 = vsel %vm1974, %v1941, 0
    %3169 = vmatprep.subr.mxu0 %v3164
    %3170 = vmatpush1.xpose.msra.mxu0 %v1938
    %3171 = vmatprep.subr.mxu0 %v3167
    %3172 = vmatpush1.xpose.msra.mxu0 %v1940
    %3173 = vmatprep.subr.mxu0 0.0
    %3174 = vmatpush1.xpose.msra.mxu0 0.0
    %3175 = vmatprep.subr.mxu0 0.0
    %3176 = vmatpush1.xpose.msra.mxu0 0.0
    %3177 = vmatprep.subr.mxu0 0.0
    %3178 = vmatpush1.xpose.msra.mxu0 0.0
    %3179 = vmatprep.subr.mxu0 0.0
    %3180 = vmatpush1.xpose.msra.mxu0 0.0
    %3181 = vmatprep.subr.mxu0 0.0
    %3182 = vmatpush1.xpose.msra.mxu0 0.0
    %3183 = vmatprep.subr.mxu0 0.0
    %3184 = vmatpush1.xpose.msra.mxu0 0.0
    %3185 = vmatprep.subr.mxu0 0.0
    %3186 = vmatpush1.xpose.msra.mxu0 0.0
    %3187 = vmatprep.subr.mxu0 0.0
    %3188 = vmatpush1.xpose.msra.mxu0 0.0
    %3189 = vmatprep.subr.mxu0 0.0
    %3190 = vmatpush1.xpose.msra.mxu0 0.0
    %3191 = vmatprep.subr.mxu0 0.0
    %3192 = vmatpush1.xpose.msra.mxu0 0.0
    %3193 = vmatprep.subr.mxu0 0.0
    %3194 = vmatpush1.xpose.msra.mxu0 0.0
    %3195 = vmatprep.subr.mxu0 0.0
    %3196 = vmatpush1.xpose.msra.mxu0 0.0
    %3197 = vmatprep.subr.mxu0 0.0
    %3198 = vmatpush1.xpose.msra.mxu0 0.0
    %3199 = vmatprep.subr.mxu0 0.0
    %3200 = vmatpush1.xpose.msra.mxu0 0.0
    %3201 = vmatprep.subr.mxu0 0.0
    %3202 = vmatpush1.xpose.msra.mxu0 0.0
    %3203 = vmatprep.subr.mxu0 0.0
    %3204 = vmatpush1.xpose.msra.mxu0 0.0
    %3205 = vmatprep.subr.mxu0 0.0
    %3206 = vmatpush1.xpose.msra.mxu0 0.0
    %3207 = vmatprep.subr.mxu0 0.0
    %3208 = vmatpush1.xpose.msra.mxu0 0.0
    %3209 = vmatprep.subr.mxu0 0.0
    %3210 = vmatpush1.xpose.msra.mxu0 0.0
    %3211 = vmatprep.subr.mxu0 0.0
    %3212 = vmatpush1.xpose.msra.mxu0 0.0
    %3213 = vmatprep.subr.mxu0 0.0
    %3214 = vmatpush1.xpose.msra.mxu0 0.0
    %3215 = vmatprep.subr.mxu0 0.0
    %3216 = vmatpush1.xpose.msra.mxu0 0.0
    %3217 = vmatprep.subr.mxu0 0.0
    %3218 = vmatpush1.xpose.msra.mxu0 0.0
    %3219 = vmatprep.subr.mxu0 0.0
    %3220 = vmatpush1.xpose.msra.mxu0 0.0
    %3221 = vmatprep.subr.mxu0 0.0
    %3222 = vmatpush1.xpose.msra.mxu0 0.0
    %3223 = vmatprep.subr.mxu0 0.0
    %3224 = vmatpush1.xpose.msra.mxu0 0.0
    %3225 = vmatprep.subr.mxu0 0.0
    %3226 = vmatpush1.xpose.msra.mxu0 0.0
    %3227 = vmatprep.subr.mxu0 0.0
    %3228 = vmatpush1.xpose.msra.mxu0 0.0
    %3229 = vmatprep.subr.mxu0 0.0
    %3230 = vmatpush1.xpose.msra.mxu0 0.0
    %3231 = vmatprep.subr.mxu0 0.0
    %3232 = vmatpush1.xpose.msra.mxu0 0.0
    %3233 = vmatprep.mubr.f32.mxu0 %v3161
    %3234 = vmatmul.mubr.f32.gmra.mrb[0].mxu0 %v1860
    %v3235 = vpop.f32.mrb[0].mxu0
    %v3236 = vadd.f32 0.0, %v3235
    %v3237 = vpop.f32.mrb[0].mxu0
    %3238 = vdwg.mxu0
    %v3240 = vsel %vm1974, %v1863, 0
    %v3243 = vsel %vm1974, %v1943, 0
    %v3246 = vsel %vm1974, %v1945, 0
    %3248 = vmatprep.subr.mxu0 %v3243
    %3249 = vmatpush1.xpose.msra.mxu0 %v1942
    %3250 = vmatprep.subr.mxu0 %v3246
    %3251 = vmatpush1.xpose.msra.mxu0 %v1944
    %3252 = vmatprep.subr.mxu0 0.0
    %3253 = vmatpush1.xpose.msra.mxu0 0.0
    %3254 = vmatprep.subr.mxu0 0.0
    %3255 = vmatpush1.xpose.msra.mxu0 0.0
    %3256 = vmatprep.subr.mxu0 0.0
    %3257 = vmatpush1.xpose.msra.mxu0 0.0
    %3258 = vmatprep.subr.mxu0 0.0
    %3259 = vmatpush1.xpose.msra.mxu0 0.0
    %3260 = vmatprep.subr.mxu0 0.0
    %3261 = vmatpush1.xpose.msra.mxu0 0.0
    %3262 = vmatprep.subr.mxu0 0.0
    %3263 = vmatpush1.xpose.msra.mxu0 0.0
    %3264 = vmatprep.subr.mxu0 0.0
    %3265 = vmatpush1.xpose.msra.mxu0 0.0
    %3266 = vmatprep.subr.mxu0 0.0
    %3267 = vmatpush1.xpose.msra.mxu0 0.0
    %3268 = vmatprep.subr.mxu0 0.0
    %3269 = vmatpush1.xpose.msra.mxu0 0.0
    %3270 = vmatprep.subr.mxu0 0.0
    %3271 = vmatpush1.xpose.msra.mxu0 0.0
    %3272 = vmatprep.subr.mxu0 0.0
    %3273 = vmatpush1.xpose.msra.mxu0 0.0
    %3274 = vmatprep.subr.mxu0 0.0
    %3275 = vmatpush1.xpose.msra.mxu0 0.0
    %3276 = vmatprep.subr.mxu0 0.0
    %3277 = vmatpush1.xpose.msra.mxu0 0.0
    %3278 = vmatprep.subr.mxu0 0.0
    %3279 = vmatpush1.xpose.msra.mxu0 0.0
    %3280 = vmatprep.subr.mxu0 0.0
    %3281 = vmatpush1.xpose.msra.mxu0 0.0
    %3282 = vmatprep.subr.mxu0 0.0
    %3283 = vmatpush1.xpose.msra.mxu0 0.0
    %3284 = vmatprep.subr.mxu0 0.0
    %3285 = vmatpush1.xpose.msra.mxu0 0.0
    %3286 = vmatprep.subr.mxu0 0.0
    %3287 = vmatpush1.xpose.msra.mxu0 0.0
    %3288 = vmatprep.subr.mxu0 0.0
    %3289 = vmatpush1.xpose.msra.mxu0 0.0
    %3290 = vmatprep.subr.mxu0 0.0
    %3291 = vmatpush1.xpose.msra.mxu0 0.0
    %3292 = vmatprep.subr.mxu0 0.0
    %3293 = vmatpush1.xpose.msra.mxu0 0.0
    %3294 = vmatprep.subr.mxu0 0.0
    %3295 = vmatpush1.xpose.msra.mxu0 0.0
    %3296 = vmatprep.subr.mxu0 0.0
    %3297 = vmatpush1.xpose.msra.mxu0 0.0
    %3298 = vmatprep.subr.mxu0 0.0
    %3299 = vmatpush1.xpose.msra.mxu0 0.0
    %3300 = vmatprep.subr.mxu0 0.0
    %3301 = vmatpush1.xpose.msra.mxu0 0.0
    %3302 = vmatprep.subr.mxu0 0.0
    %3303 = vmatpush1.xpose.msra.mxu0 0.0
    %3304 = vmatprep.subr.mxu0 0.0
    %3305 = vmatpush1.xpose.msra.mxu0 0.0
    %3306 = vmatprep.subr.mxu0 0.0
    %3307 = vmatpush1.xpose.msra.mxu0 0.0
    %3308 = vmatprep.subr.mxu0 0.0
    %3309 = vmatpush1.xpose.msra.mxu0 0.0
    %3310 = vmatprep.subr.mxu0 0.0
    %3311 = vmatpush1.xpose.msra.mxu0 0.0
    %3312 = vmatprep.mubr.f32.mxu0 %v3240
    %3313 = vmatmul.mubr.f32.gmra.mrb[0].mxu0 %v1862
    %v3314 = vpop.f32.mrb[0].mxu0
    %v3315 = vadd.f32 0.0, %v3314
    %v3316 = vpop.f32.mrb[0].mxu0
    %3317 = vdwg.mxu0
    %v3319 = vsel %vm1974, %v1865, 0
    %v3322 = vsel %vm1974, %v1947, 0
    %v3325 = vsel %vm1974, %v1949, 0
    %3327 = vmatprep.subr.mxu0 %v3322
    %3328 = vmatpush1.xpose.msra.mxu0 %v1946
    %3329 = vmatprep.subr.mxu0 %v3325
    %3330 = vmatpush1.xpose.msra.mxu0 %v1948
    %3331 = vmatprep.subr.mxu0 0.0
    %3332 = vmatpush1.xpose.msra.mxu0 0.0
    %3333 = vmatprep.subr.mxu0 0.0
    %3334 = vmatpush1.xpose.msra.mxu0 0.0
    %3335 = vmatprep.subr.mxu0 0.0
    %3336 = vmatpush1.xpose.msra.mxu0 0.0
    %3337 = vmatprep.subr.mxu0 0.0
    %3338 = vmatpush1.xpose.msra.mxu0 0.0
    %3339 = vmatprep.subr.mxu0 0.0
    %3340 = vmatpush1.xpose.msra.mxu0 0.0
    %3341 = vmatprep.subr.mxu0 0.0
    %3342 = vmatpush1.xpose.msra.mxu0 0.0
    %3343 = vmatprep.subr.mxu0 0.0
    %3344 = vmatpush1.xpose.msra.mxu0 0.0
    %3345 = vmatprep.subr.mxu0 0.0
    %3346 = vmatpush1.xpose.msra.mxu0 0.0
    %3347 = vmatprep.subr.mxu0 0.0
    %3348 = vmatpush1.xpose.msra.mxu0 0.0
    %3349 = vmatprep.subr.mxu0 0.0
    %3350 = vmatpush1.xpose.msra.mxu0 0.0
    %3351 = vmatprep.subr.mxu0 0.0
    %3352 = vmatpush1.xpose.msra.mxu0 0.0
    %3353 = vmatprep.subr.mxu0 0.0
    %3354 = vmatpush1.xpose.msra.mxu0 0.0
    %3355 = vmatprep.subr.mxu0 0.0
    %3356 = vmatpush1.xpose.msra.mxu0 0.0
    %3357 = vmatprep.subr.mxu0 0.0
    %3358 = vmatpush1.xpose.msra.mxu0 0.0
    %3359 = vmatprep.subr.mxu0 0.0
    %3360 = vmatpush1.xpose.msra.mxu0 0.0
    %3361 = vmatprep.subr.mxu0 0.0
    %3362 = vmatpush1.xpose.msra.mxu0 0.0
    %3363 = vmatprep.subr.mxu0 0.0
    %3364 = vmatpush1.xpose.msra.mxu0 0.0
    %3365 = vmatprep.subr.mxu0 0.0
    %3366 = vmatpush1.xpose.msra.mxu0 0.0
    %3367 = vmatprep.subr.mxu0 0.0
    %3368 = vmatpush1.xpose.msra.mxu0 0.0
    %3369 = vmatprep.subr.mxu0 0.0
    %3370 = vmatpush1.xpose.msra.mxu0 0.0
    %3371 = vmatprep.subr.mxu0 0.0
    %3372 = vmatpush1.xpose.msra.mxu0 0.0
    %3373 = vmatprep.subr.mxu0 0.0
    %3374 = vmatpush1.xpose.msra.mxu0 0.0
    %3375 = vmatprep.subr.mxu0 0.0
    %3376 = vmatpush1.xpose.msra.mxu0 0.0
    %3377 = vmatprep.subr.mxu0 0.0
    %3378 = vmatpush1.xpose.msra.mxu0 0.0
    %3379 = vmatprep.subr.mxu0 0.0
    %3380 = vmatpush1.xpose.msra.mxu0 0.0
    %3381 = vmatprep.subr.mxu0 0.0
    %3382 = vmatpush1.xpose.msra.mxu0 0.0
    %3383 = vmatprep.subr.mxu0 0.0
    %3384 = vmatpush1.xpose.msra.mxu0 0.0
    %3385 = vmatprep.subr.mxu0 0.0
    %3386 = vmatpush1.xpose.msra.mxu0 0.0
    %3387 = vmatprep.subr.mxu0 0.0
    %3388 = vmatpush1.xpose.msra.mxu0 0.0
    %3389 = vmatprep.subr.mxu0 0.0
    %3390 = vmatpush1.xpose.msra.mxu0 0.0
    %3391 = vmatprep.mubr.f32.mxu0 %v3319
    %3392 = vmatmul.mubr.f32.gmra.mrb[0].mxu0 %v1864
    %v3393 = vpop.f32.mrb[0].mxu0
    %v3394 = vadd.f32 0.0, %v3393
    %v3395 = vpop.f32.mrb[0].mxu0
    %3396 = vdwg.mxu0
    %v3398 = vsel %vm1974, %v1867, 0
    %v3401 = vsel %vm1974, %v1951, 0
    %v3404 = vsel %vm1974, %v1953, 0
    %3406 = vmatprep.subr.mxu0 %v3401
    %3407 = vmatpush1.xpose.msra.mxu0 %v1950
    %3408 = vmatprep.subr.mxu0 %v3404
    %3409 = vmatpush1.xpose.msra.mxu0 %v1952
    %3410 = vmatprep.subr.mxu0 0.0
    %3411 = vmatpush1.xpose.msra.mxu0 0.0
    %3412 = vmatprep.subr.mxu0 0.0
    %3413 = vmatpush1.xpose.msra.mxu0 0.0
    %3414 = vmatprep.subr.mxu0 0.0
    %3415 = vmatpush1.xpose.msra.mxu0 0.0
    %3416 = vmatprep.subr.mxu0 0.0
    %3417 = vmatpush1.xpose.msra.mxu0 0.0
    %3418 = vmatprep.subr.mxu0 0.0
    %3419 = vmatpush1.xpose.msra.mxu0 0.0
    %3420 = vmatprep.subr.mxu0 0.0
    %3421 = vmatpush1.xpose.msra.mxu0 0.0
    %3422 = vmatprep.subr.mxu0 0.0
    %3423 = vmatpush1.xpose.msra.mxu0 0.0
    %3424 = vmatprep.subr.mxu0 0.0
    %3425 = vmatpush1.xpose.msra.mxu0 0.0
    %3426 = vmatprep.subr.mxu0 0.0
    %3427 = vmatpush1.xpose.msra.mxu0 0.0
    %3428 = vmatprep.subr.mxu0 0.0
    %3429 = vmatpush1.xpose.msra.mxu0 0.0
    %3430 = vmatprep.subr.mxu0 0.0
    %3431 = vmatpush1.xpose.msra.mxu0 0.0
    %3432 = vmatprep.subr.mxu0 0.0
    %3433 = vmatpush1.xpose.msra.mxu0 0.0
    %3434 = vmatprep.subr.mxu0 0.0
    %3435 = vmatpush1.xpose.msra.mxu0 0.0
    %3436 = vmatprep.subr.mxu0 0.0
    %3437 = vmatpush1.xpose.msra.mxu0 0.0
    %3438 = vmatprep.subr.mxu0 0.0
    %3439 = vmatpush1.xpose.msra.mxu0 0.0
    %3440 = vmatprep.subr.mxu0 0.0
    %3441 = vmatpush1.xpose.msra.mxu0 0.0
    %3442 = vmatprep.subr.mxu0 0.0
    %3443 = vmatpush1.xpose.msra.mxu0 0.0
    %3444 = vmatprep.subr.mxu0 0.0
    %3445 = vmatpush1.xpose.msra.mxu0 0.0
    %3446 = vmatprep.subr.mxu0 0.0
    %3447 = vmatpush1.xpose.msra.mxu0 0.0
    %3448 = vmatprep.subr.mxu0 0.0
    %3449 = vmatpush1.xpose.msra.mxu0 0.0
    %3450 = vmatprep.subr.mxu0 0.0
    %3451 = vmatpush1.xpose.msra.mxu0 0.0
    %3452 = vmatprep.subr.mxu0 0.0
    %3453 = vmatpush1.xpose.msra.mxu0 0.0
    %3454 = vmatprep.subr.mxu0 0.0
    %3455 = vmatpush1.xpose.msra.mxu0 0.0
    %3456 = vmatprep.subr.mxu0 0.0
    %3457 = vmatpush1.xpose.msra.mxu0 0.0
    %3458 = vmatprep.subr.mxu0 0.0
    %3459 = vmatpush1.xpose.msra.mxu0 0.0
    %3460 = vmatprep.subr.mxu0 0.0
    %3461 = vmatpush1.xpose.msra.mxu0 0.0
    %3462 = vmatprep.subr.mxu0 0.0
    %3463 = vmatpush1.xpose.msra.mxu0 0.0
    %3464 = vmatprep.subr.mxu0 0.0
    %3465 = vmatpush1.xpose.msra.mxu0 0.0
    %3466 = vmatprep.subr.mxu0 0.0
    %3467 = vmatpush1.xpose.msra.mxu0 0.0
    %3468 = vmatprep.subr.mxu0 0.0
    %3469 = vmatpush1.xpose.msra.mxu0 0.0
    %3470 = vmatprep.mubr.f32.mxu0 %v3398
    %3471 = vmatmul.mubr.f32.gmra.mrb[0].mxu0 %v1866
    %v3472 = vpop.f32.mrb[0].mxu0
    %v3473 = vadd.f32 0.0, %v3472
    %v3474 = vpop.f32.mrb[0].mxu0
    %3475 = vdwg.mxu0
    %v3477 = vsel %vm1974, %v1869, 0
    %v3480 = vsel %vm1974, %v1955, 0
    %v3483 = vsel %vm1974, %v1957, 0
    %3485 = vmatprep.subr.mxu0 %v3480
    %3486 = vmatpush1.xpose.msra.mxu0 %v1954
    %3487 = vmatprep.subr.mxu0 %v3483
    %3488 = vmatpush1.xpose.msra.mxu0 %v1956
    %3489 = vmatprep.subr.mxu0 0.0
    %3490 = vmatpush1.xpose.msra.mxu0 0.0
    %3491 = vmatprep.subr.mxu0 0.0
    %3492 = vmatpush1.xpose.msra.mxu0 0.0
    %3493 = vmatprep.subr.mxu0 0.0
    %3494 = vmatpush1.xpose.msra.mxu0 0.0
    %3495 = vmatprep.subr.mxu0 0.0
    %3496 = vmatpush1.xpose.msra.mxu0 0.0
    %3497 = vmatprep.subr.mxu0 0.0
    %3498 = vmatpush1.xpose.msra.mxu0 0.0
    %3499 = vmatprep.subr.mxu0 0.0
    %3500 = vmatpush1.xpose.msra.mxu0 0.0
    %3501 = vmatprep.subr.mxu0 0.0
    %3502 = vmatpush1.xpose.msra.mxu0 0.0
    %3503 = vmatprep.subr.mxu0 0.0
    %3504 = vmatpush1.xpose.msra.mxu0 0.0
    %3505 = vmatprep.subr.mxu0 0.0
    %3506 = vmatpush1.xpose.msra.mxu0 0.0
    %3507 = vmatprep.subr.mxu0 0.0
    %3508 = vmatpush1.xpose.msra.mxu0 0.0
    %3509 = vmatprep.subr.mxu0 0.0
    %3510 = vmatpush1.xpose.msra.mxu0 0.0
    %3511 = vmatprep.subr.mxu0 0.0
    %3512 = vmatpush1.xpose.msra.mxu0 0.0
    %3513 = vmatprep.subr.mxu0 0.0
    %3514 = vmatpush1.xpose.msra.mxu0 0.0
    %3515 = vmatprep.subr.mxu0 0.0
    %3516 = vmatpush1.xpose.msra.mxu0 0.0
    %3517 = vmatprep.subr.mxu0 0.0
    %3518 = vmatpush1.xpose.msra.mxu0 0.0
    %3519 = vmatprep.subr.mxu0 0.0
    %3520 = vmatpush1.xpose.msra.mxu0 0.0
    %3521 = vmatprep.subr.mxu0 0.0
    %3522 = vmatpush1.xpose.msra.mxu0 0.0
    %3523 = vmatprep.subr.mxu0 0.0
    %3524 = vmatpush1.xpose.msra.mxu0 0.0
    %3525 = vmatprep.subr.mxu0 0.0
    %3526 = vmatpush1.xpose.msra.mxu0 0.0
    %3527 = vmatprep.subr.mxu0 0.0
    %3528 = vmatpush1.xpose.msra.mxu0 0.0
    %3529 = vmatprep.subr.mxu0 0.0
    %3530 = vmatpush1.xpose.msra.mxu0 0.0
    %3531 = vmatprep.subr.mxu0 0.0
    %3532 = vmatpush1.xpose.msra.mxu0 0.0
    %3533 = vmatprep.subr.mxu0 0.0
    %3534 = vmatpush1.xpose.msra.mxu0 0.0
    %3535 = vmatprep.subr.mxu0 0.0
    %3536 = vmatpush1.xpose.msra.mxu0 0.0
    %3537 = vmatprep.subr.mxu0 0.0
    %3538 = vmatpush1.xpose.msra.mxu0 0.0
    %3539 = vmatprep.subr.mxu0 0.0
    %3540 = vmatpush1.xpose.msra.mxu0 0.0
    %3541 = vmatprep.subr.mxu0 0.0
    %3542 = vmatpush1.xpose.msra.mxu0 0.0
    %3543 = vmatprep.subr.mxu0 0.0
    %3544 = vmatpush1.xpose.msra.mxu0 0.0
    %3545 = vmatprep.subr.mxu0 0.0
    %3546 = vmatpush1.xpose.msra.mxu0 0.0
    %3547 = vmatprep.subr.mxu0 0.0
    %3548 = vmatpush1.xpose.msra.mxu0 0.0
    %3549 = vmatprep.mubr.f32.mxu0 %v3477
    %3550 = vmatmul.mubr.f32.gmra.mrb[0].mxu0 %v1868
    %v3551 = vpop.f32.mrb[0].mxu0
    %v3552 = vadd.f32 0.0, %v3551
    %v3553 = vpop.f32.mrb[0].mxu0
    %3554 = vdwg.mxu0
    %v3556 = vsel %vm1974, %v1871, 0
    %v3559 = vsel %vm1974, %v1959, 0
    %v3562 = vsel %vm1974, %v1961, 0
    %3564 = vmatprep.subr.mxu0 %v3559
    %3565 = vmatpush1.xpose.msra.mxu0 %v1958
    %3566 = vmatprep.subr.mxu0 %v3562
    %3567 = vmatpush1.xpose.msra.mxu0 %v1960
    %3568 = vmatprep.subr.mxu0 0.0
    %3569 = vmatpush1.xpose.msra.mxu0 0.0
    %3570 = vmatprep.subr.mxu0 0.0
    %3571 = vmatpush1.xpose.msra.mxu0 0.0
    %3572 = vmatprep.subr.mxu0 0.0
    %3573 = vmatpush1.xpose.msra.mxu0 0.0
    %3574 = vmatprep.subr.mxu0 0.0
    %3575 = vmatpush1.xpose.msra.mxu0 0.0
    %3576 = vmatprep.subr.mxu0 0.0
    %3577 = vmatpush1.xpose.msra.mxu0 0.0
    %3578 = vmatprep.subr.mxu0 0.0
    %3579 = vmatpush1.xpose.msra.mxu0 0.0
    %3580 = vmatprep.subr.mxu0 0.0
    %3581 = vmatpush1.xpose.msra.mxu0 0.0
    %3582 = vmatprep.subr.mxu0 0.0
    %3583 = vmatpush1.xpose.msra.mxu0 0.0
    %3584 = vmatprep.subr.mxu0 0.0
    %3585 = vmatpush1.xpose.msra.mxu0 0.0
    %3586 = vmatprep.subr.mxu0 0.0
    %3587 = vmatpush1.xpose.msra.mxu0 0.0
    %3588 = vmatprep.subr.mxu0 0.0
    %3589 = vmatpush1.xpose.msra.mxu0 0.0
    %3590 = vmatprep.subr.mxu0 0.0
    %3591 = vmatpush1.xpose.msra.mxu0 0.0
    %3592 = vmatprep.subr.mxu0 0.0
    %3593 = vmatpush1.xpose.msra.mxu0 0.0
    %3594 = vmatprep.subr.mxu0 0.0
    %3595 = vmatpush1.xpose.msra.mxu0 0.0
    %3596 = vmatprep.subr.mxu0 0.0
    %3597 = vmatpush1.xpose.msra.mxu0 0.0
    %3598 = vmatprep.subr.mxu0 0.0
    %3599 = vmatpush1.xpose.msra.mxu0 0.0
    %3600 = vmatprep.subr.mxu0 0.0
    %3601 = vmatpush1.xpose.msra.mxu0 0.0
    %3602 = vmatprep.subr.mxu0 0.0
    %3603 = vmatpush1.xpose.msra.mxu0 0.0
    %3604 = vmatprep.subr.mxu0 0.0
    %3605 = vmatpush1.xpose.msra.mxu0 0.0
    %3606 = vmatprep.subr.mxu0 0.0
    %3607 = vmatpush1.xpose.msra.mxu0 0.0
    %3608 = vmatprep.subr.mxu0 0.0
    %3609 = vmatpush1.xpose.msra.mxu0 0.0
    %3610 = vmatprep.subr.mxu0 0.0
    %3611 = vmatpush1.xpose.msra.mxu0 0.0
    %3612 = vmatprep.subr.mxu0 0.0
    %3613 = vmatpush1.xpose.msra.mxu0 0.0
    %3614 = vmatprep.subr.mxu0 0.0
    %3615 = vmatpush1.xpose.msra.mxu0 0.0
    %3616 = vmatprep.subr.mxu0 0.0
    %3617 = vmatpush1.xpose.msra.mxu0 0.0
    %3618 = vmatprep.subr.mxu0 0.0
    %3619 = vmatpush1.xpose.msra.mxu0 0.0
    %3620 = vmatprep.subr.mxu0 0.0
    %3621 = vmatpush1.xpose.msra.mxu0 0.0
    %3622 = vmatprep.subr.mxu0 0.0
    %3623 = vmatpush1.xpose.msra.mxu0 0.0
    %3624 = vmatprep.subr.mxu0 0.0
    %3625 = vmatpush1.xpose.msra.mxu0 0.0
    %3626 = vmatprep.subr.mxu0 0.0
    %3627 = vmatpush1.xpose.msra.mxu0 0.0
    %3628 = vmatprep.mubr.f32.mxu0 %v3556
    %3629 = vmatmul.mubr.f32.gmra.mrb[0].mxu0 %v1870
    %v3630 = vpop.f32.mrb[0].mxu0
    %v3631 = vadd.f32 0.0, %v3630
    %v3632 = vpop.f32.mrb[0].mxu0
    %3633 = vdwg.mxu0
    %v3635 = vsel %vm1974, %v1873, 0
    %v3638 = vsel %vm1974, %v1963, 0
    %v3641 = vsel %vm1974, %v1965, 0
    %3643 = vmatprep.subr.mxu0 %v3638
    %3644 = vmatpush1.xpose.msra.mxu0 %v1962
    %3645 = vmatprep.subr.mxu0 %v3641
    %3646 = vmatpush1.xpose.msra.mxu0 %v1964
    %3647 = vmatprep.subr.mxu0 0.0
    %3648 = vmatpush1.xpose.msra.mxu0 0.0
    %3649 = vmatprep.subr.mxu0 0.0
    %3650 = vmatpush1.xpose.msra.mxu0 0.0
    %3651 = vmatprep.subr.mxu0 0.0
    %3652 = vmatpush1.xpose.msra.mxu0 0.0
    %3653 = vmatprep.subr.mxu0 0.0
    %3654 = vmatpush1.xpose.msra.mxu0 0.0
    %3655 = vmatprep.subr.mxu0 0.0
    %3656 = vmatpush1.xpose.msra.mxu0 0.0
    %3657 = vmatprep.subr.mxu0 0.0
    %3658 = vmatpush1.xpose.msra.mxu0 0.0
    %3659 = vmatprep.subr.mxu0 0.0
    %3660 = vmatpush1.xpose.msra.mxu0 0.0
    %3661 = vmatprep.subr.mxu0 0.0
    %3662 = vmatpush1.xpose.msra.mxu0 0.0
    %3663 = vmatprep.subr.mxu0 0.0
    %3664 = vmatpush1.xpose.msra.mxu0 0.0
    %3665 = vmatprep.subr.mxu0 0.0
    %3666 = vmatpush1.xpose.msra.mxu0 0.0
    %3667 = vmatprep.subr.mxu0 0.0
    %3668 = vmatpush1.xpose.msra.mxu0 0.0
    %3669 = vmatprep.subr.mxu0 0.0
    %3670 = vmatpush1.xpose.msra.mxu0 0.0
    %3671 = vmatprep.subr.mxu0 0.0
    %3672 = vmatpush1.xpose.msra.mxu0 0.0
    %3673 = vmatprep.subr.mxu0 0.0
    %3674 = vmatpush1.xpose.msra.mxu0 0.0
    %3675 = vmatprep.subr.mxu0 0.0
    %3676 = vmatpush1.xpose.msra.mxu0 0.0
    %3677 = vmatprep.subr.mxu0 0.0
    %3678 = vmatpush1.xpose.msra.mxu0 0.0
    %3679 = vmatprep.subr.mxu0 0.0
    %3680 = vmatpush1.xpose.msra.mxu0 0.0
    %3681 = vmatprep.subr.mxu0 0.0
    %3682 = vmatpush1.xpose.msra.mxu0 0.0
    %3683 = vmatprep.subr.mxu0 0.0
    %3684 = vmatpush1.xpose.msra.mxu0 0.0
    %3685 = vmatprep.subr.mxu0 0.0
    %3686 = vmatpush1.xpose.msra.mxu0 0.0
    %3687 = vmatprep.subr.mxu0 0.0
    %3688 = vmatpush1.xpose.msra.mxu0 0.0
    %3689 = vmatprep.subr.mxu0 0.0
    %3690 = vmatpush1.xpose.msra.mxu0 0.0
    %3691 = vmatprep.subr.mxu0 0.0
    %3692 = vmatpush1.xpose.msra.mxu0 0.0
    %3693 = vmatprep.subr.mxu0 0.0
    %3694 = vmatpush1.xpose.msra.mxu0 0.0
    %3695 = vmatprep.subr.mxu0 0.0
    %3696 = vmatpush1.xpose.msra.mxu0 0.0
    %3697 = vmatprep.subr.mxu0 0.0
    %3698 = vmatpush1.xpose.msra.mxu0 0.0
    %3699 = vmatprep.subr.mxu0 0.0
    %3700 = vmatpush1.xpose.msra.mxu0 0.0
    %3701 = vmatprep.subr.mxu0 0.0
    %3702 = vmatpush1.xpose.msra.mxu0 0.0
    %3703 = vmatprep.subr.mxu0 0.0
    %3704 = vmatpush1.xpose.msra.mxu0 0.0
    %3705 = vmatprep.subr.mxu0 0.0
    %3706 = vmatpush1.xpose.msra.mxu0 0.0
    %3707 = vmatprep.mubr.f32.mxu0 %v3635
    %3708 = vmatmul.mubr.f32.gmra.mrb[0].mxu0 %v1872
    %v3709 = vpop.f32.mrb[0].mxu0
    %v3710 = vadd.f32 0.0, %v3709
    %v3711 = vpop.f32.mrb[0].mxu0
    %3712 = vdwg.mxu0
    %v3714 = vsel %vm1974, %v1875, 0
    %v3717 = vsel %vm1974, %v1967, 0
    %v3720 = vsel %vm1974, %v1969, 0
    %3722 = vmatprep.subr.mxu0 %v3717
    %3723 = vmatpush1.xpose.msra.mxu0 %v1966
    %3724 = vmatprep.subr.mxu0 %v3720
    %3725 = vmatpush1.xpose.msra.mxu0 %v1968
    %3726 = vmatprep.subr.mxu0 0.0
    %3727 = vmatpush1.xpose.msra.mxu0 0.0
    %3728 = vmatprep.subr.mxu0 0.0
    %3729 = vmatpush1.xpose.msra.mxu0 0.0
    %3730 = vmatprep.subr.mxu0 0.0
    %3731 = vmatpush1.xpose.msra.mxu0 0.0
    %3732 = vmatprep.subr.mxu0 0.0
    %3733 = vmatpush1.xpose.msra.mxu0 0.0
    %3734 = vmatprep.subr.mxu0 0.0
    %3735 = vmatpush1.xpose.msra.mxu0 0.0
    %3736 = vmatprep.subr.mxu0 0.0
    %3737 = vmatpush1.xpose.msra.mxu0 0.0
    %3738 = vmatprep.subr.mxu0 0.0
    %3739 = vmatpush1.xpose.msra.mxu0 0.0
    %3740 = vmatprep.subr.mxu0 0.0
    %3741 = vmatpush1.xpose.msra.mxu0 0.0
    %3742 = vmatprep.subr.mxu0 0.0
    %3743 = vmatpush1.xpose.msra.mxu0 0.0
    %3744 = vmatprep.subr.mxu0 0.0
    %3745 = vmatpush1.xpose.msra.mxu0 0.0
    %3746 = vmatprep.subr.mxu0 0.0
    %3747 = vmatpush1.xpose.msra.mxu0 0.0
    %3748 = vmatprep.subr.mxu0 0.0
    %3749 = vmatpush1.xpose.msra.mxu0 0.0
    %3750 = vmatprep.subr.mxu0 0.0
    %3751 = vmatpush1.xpose.msra.mxu0 0.0
    %3752 = vmatprep.subr.mxu0 0.0
    %3753 = vmatpush1.xpose.msra.mxu0 0.0
    %3754 = vmatprep.subr.mxu0 0.0
    %3755 = vmatpush1.xpose.msra.mxu0 0.0
    %3756 = vmatprep.subr.mxu0 0.0
    %3757 = vmatpush1.xpose.msra.mxu0 0.0
    %3758 = vmatprep.subr.mxu0 0.0
    %3759 = vmatpush1.xpose.msra.mxu0 0.0
    %3760 = vmatprep.subr.mxu0 0.0
    %3761 = vmatpush1.xpose.msra.mxu0 0.0
    %3762 = vmatprep.subr.mxu0 0.0
    %3763 = vmatpush1.xpose.msra.mxu0 0.0
    %3764 = vmatprep.subr.mxu0 0.0
    %3765 = vmatpush1.xpose.msra.mxu0 0.0
    %3766 = vmatprep.subr.mxu0 0.0
    %3767 = vmatpush1.xpose.msra.mxu0 0.0
    %3768 = vmatprep.subr.mxu0 0.0
    %3769 = vmatpush1.xpose.msra.mxu0 0.0
    %3770 = vmatprep.subr.mxu0 0.0
    %3771 = vmatpush1.xpose.msra.mxu0 0.0
    %3772 = vmatprep.subr.mxu0 0.0
    %3773 = vmatpush1.xpose.msra.mxu0 0.0
    %3774 = vmatprep.subr.mxu0 0.0
    %3775 = vmatpush1.xpose.msra.mxu0 0.0
    %3776 = vmatprep.subr.mxu0 0.0
    %3777 = vmatpush1.xpose.msra.mxu0 0.0
    %3778 = vmatprep.subr.mxu0 0.0
    %3779 = vmatpush1.xpose.msra.mxu0 0.0
    %3780 = vmatprep.subr.mxu0 0.0
    %3781 = vmatpush1.xpose.msra.mxu0 0.0
    %3782 = vmatprep.subr.mxu0 0.0
    %3783 = vmatpush1.xpose.msra.mxu0 0.0
    %3784 = vmatprep.subr.mxu0 0.0
    %3785 = vmatpush1.xpose.msra.mxu0 0.0
    %3786 = vmatprep.mubr.f32.mxu0 %v3714
    %3787 = vmatmul.mubr.f32.gmra.mrb[0].mxu0 %v1874
    %v3788 = vpop.f32.mrb[0].mxu0
    %v3789 = vadd.f32 0.0, %v3788
    %v3790 = vpop.f32.mrb[0].mxu0
    %3791 = vdwg.mxu0
    %v3793 = vsel %vm1974, %v1877, 0
    %v3796 = vsel %vm1974, %v1971, 0
    %v3799 = vsel %vm1974, %v1973, 0
    %3801 = vmatprep.subr.mxu0 %v3796
    %3802 = vmatpush1.xpose.msra.mxu0 %v1970
    %3803 = vmatprep.subr.mxu0 %v3799
    %3804 = vmatpush1.xpose.msra.mxu0 %v1972
    %3805 = vmatprep.subr.mxu0 0.0
    %3806 = vmatpush1.xpose.msra.mxu0 0.0
    %3807 = vmatprep.subr.mxu0 0.0
    %3808 = vmatpush1.xpose.msra.mxu0 0.0
    %3809 = vmatprep.subr.mxu0 0.0
    %3810 = vmatpush1.xpose.msra.mxu0 0.0
    %3811 = vmatprep.subr.mxu0 0.0
    %3812 = vmatpush1.xpose.msra.mxu0 0.0
    %3813 = vmatprep.subr.mxu0 0.0
    %3814 = vmatpush1.xpose.msra.mxu0 0.0
    %3815 = vmatprep.subr.mxu0 0.0
    %3816 = vmatpush1.xpose.msra.mxu0 0.0
    %3817 = vmatprep.subr.mxu0 0.0
    %3818 = vmatpush1.xpose.msra.mxu0 0.0
    %3819 = vmatprep.subr.mxu0 0.0
    %3820 = vmatpush1.xpose.msra.mxu0 0.0
    %3821 = vmatprep.subr.mxu0 0.0
    %3822 = vmatpush1.xpose.msra.mxu0 0.0
    %3823 = vmatprep.subr.mxu0 0.0
    %3824 = vmatpush1.xpose.msra.mxu0 0.0
    %3825 = vmatprep.subr.mxu0 0.0
    %3826 = vmatpush1.xpose.msra.mxu0 0.0
    %3827 = vmatprep.subr.mxu0 0.0
    %3828 = vmatpush1.xpose.msra.mxu0 0.0
    %3829 = vmatprep.subr.mxu0 0.0
    %3830 = vmatpush1.xpose.msra.mxu0 0.0
    %3831 = vmatprep.subr.mxu0 0.0
    %3832 = vmatpush1.xpose.msra.mxu0 0.0
    %3833 = vmatprep.subr.mxu0 0.0
    %3834 = vmatpush1.xpose.msra.mxu0 0.0
    %3835 = vmatprep.subr.mxu0 0.0
    %3836 = vmatpush1.xpose.msra.mxu0 0.0
    %3837 = vmatprep.subr.mxu0 0.0
    %3838 = vmatpush1.xpose.msra.mxu0 0.0
    %3839 = vmatprep.subr.mxu0 0.0
    %3840 = vmatpush1.xpose.msra.mxu0 0.0
    %3841 = vmatprep.subr.mxu0 0.0
    %3842 = vmatpush1.xpose.msra.mxu0 0.0
    %3843 = vmatprep.subr.mxu0 0.0
    %3844 = vmatpush1.xpose.msra.mxu0 0.0
    %3845 = vmatprep.subr.mxu0 0.0
    %3846 = vmatpush1.xpose.msra.mxu0 0.0
    %3847 = vmatprep.subr.mxu0 0.0
    %3848 = vmatpush1.xpose.msra.mxu0 0.0
    %3849 = vmatprep.subr.mxu0 0.0
    %3850 = vmatpush1.xpose.msra.mxu0 0.0
    %3851 = vmatprep.subr.mxu0 0.0
    %3852 = vmatpush1.xpose.msra.mxu0 0.0
    %3853 = vmatprep.subr.mxu0 0.0
    %3854 = vmatpush1.xpose.msra.mxu0 0.0
    %3855 = vmatprep.subr.mxu0 0.0
    %3856 = vmatpush1.xpose.msra.mxu0 0.0
    %3857 = vmatprep.subr.mxu0 0.0
    %3858 = vmatpush1.xpose.msra.mxu0 0.0
    %3859 = vmatprep.subr.mxu0 0.0
    %3860 = vmatpush1.xpose.msra.mxu0 0.0
    %3861 = vmatprep.subr.mxu0 0.0
    %3862 = vmatpush1.xpose.msra.mxu0 0.0
    %3863 = vmatprep.subr.mxu0 0.0
    %3864 = vmatpush1.xpose.msra.mxu0 0.0
    %3865 = vmatprep.mubr.f32.mxu0 %v3793
    %3866 = vmatmul.mubr.f32.gmra.mrb[0].mxu0 %v1876
    %v3867 = vpop.f32.mrb[0].mxu0
    %v3868 = vadd.f32 0.0, %v3867
    %v3869 = vpop.f32.mrb[0].mxu0
    %3870 = vdwg.mxu0
    %vm3871 = vcmask 80896
    %v3872 = vsel %vm3871, %v2051, 0.0
    %v3873 = vsel %vm3871, %v2130, 0.0
    %v3874 = vadd.f32 %v3872, %v3873
    %v3875 = vsel %vm3871, %v2209, 0.0
    %v3876 = vadd.f32 %v3874, %v3875
    %v3877 = vsel %vm3871, %v2288, 0.0
    %v3878 = vadd.f32 %v3876, %v3877
    %v3879 = vsel %vm3871, %v2367, 0.0
    %v3880 = vadd.f32 %v3878, %v3879
    %v3881 = vsel %vm3871, %v2446, 0.0
    %v3882 = vadd.f32 %v3880, %v3881
    %v3883 = vsel %vm3871, %v2525, 0.0
    %v3884 = vadd.f32 %v3882, %v3883
    %v3885 = vsel %vm3871, %v2604, 0.0
    %v3886 = vadd.f32 %v3884, %v3885
    %v3887 = vsel %vm3871, %v2683, 0.0
    %v3888 = vadd.f32 %v3886, %v3887
    %v3889 = vsel %vm3871, %v2762, 0.0
    %v3890 = vadd.f32 %v3888, %v3889
    %v3891 = vsel %vm3871, %v2841, 0.0
    %v3892 = vadd.f32 %v3890, %v3891
    %v3893 = vsel %vm3871, %v2920, 0.0
    %v3894 = vadd.f32 %v3892, %v3893
    %v3895 = vsel %vm3871, %v2999, 0.0
    %v3896 = vadd.f32 %v3894, %v3895
    %v3897 = vsel %vm3871, %v3078, 0.0
    %v3898 = vadd.f32 %v3896, %v3897
    %v3899 = vsel %vm3871, %v3157, 0.0
    %v3900 = vadd.f32 %v3898, %v3899
    %v3901 = vsel %vm3871, %v3236, 0.0
    %v3902 = vadd.f32 %v3900, %v3901
    %v3903 = vsel %vm3871, %v3315, 0.0
    %v3904 = vadd.f32 %v3902, %v3903
    %v3905 = vsel %vm3871, %v3394, 0.0
    %v3906 = vadd.f32 %v3904, %v3905
    %v3907 = vsel %vm3871, %v3473, 0.0
    %v3908 = vadd.f32 %v3906, %v3907
    %v3909 = vsel %vm3871, %v3552, 0.0
    %v3910 = vadd.f32 %v3908, %v3909
    %v3911 = vsel %vm3871, %v3631, 0.0
    %v3912 = vadd.f32 %v3910, %v3911
    %v3913 = vsel %vm3871, %v3710, 0.0
    %v3914 = vadd.f32 %v3912, %v3913
    %v3915 = vsel %vm3871, %v3789, 0.0
    %v3916 = vadd.f32 %v3914, %v3915
    %v3917 = vsel %vm3871, %v3868, 0.0
    %v3918 = vadd.f32 %v3916, %v3917
    %v3919 = vld [vmem:[%s4] sm:$0x1]
    %v3921 = vlaneseq
    %v3922 = vshrl.u32 %v3921, 7
    %v3923 = vsub.s32 0, %v3922
    %v3924 = vrot.slane %v3919, %v3923
    %v3926 = vadd.f32 %v3918, %v3924
    %v3927 = vsel %vm3871, %v3926, -inf
    %3928 = vmax.xlane.f32.xlu0 %v3927
    %v3929 = vpop.xlane.xlu0 %3928
    %v3930 = vsub.f32 %v3926, %v3929
    %v3931 = vmul.f32 %v3930, 1.442695
    %v3932 = vpow.pop %v3931
    %v3933 = vsel %vm3871, %v3932, 0.0
    %3934 = vadd.xlane.f32.xlu0 %v3933
    %v3935 = vpop.xlane.xlu0 %3934
    %v3936 = vlog2.pop %v3935
    %v3937 = vmul.f32 %v3936, 0.6931472
    %v3938 = vsub.f32 %v3930, %v3937
    %3939 = vst.msk [vmem:[#allocation2] sm:$0xff] %vm3871, %v3938
    // Predicated region
    $region22: #{tpu_custom_call.1} parent=1 // pred_check
      _
    $region23: #{tpu_custom_call.1} parent=1 // pred_check_branch
      %3941 = sbr.rel (0) target = $region25
    $region24: #{tpu_custom_call.1} parent=1 // pred_region
      %s3943 = ssub.s32 128, 128
      %3944 = vsyncadd [#allocation3], %s3943
      %s3946 = sshll.u32 [#allocation2], 4
      %s3947 = int_to_ptr.vmem [resolvable:$true] %s3946
      %3949 = dma.vmem_to_hbm [thread:$0]  %s3947, 128, %s5, [#allocation3]
    $region25: #{tpu_custom_call.1} parent=1 // pred_fallthru
      _
    // Predicated region
    $region26: #{tpu_custom_call.1} parent=1 // pred_check
      _
    $region27: #{tpu_custom_call.1} parent=1 // pred_check_branch
      %3951 = sbr.rel (0) target = $region29
    $region28: #{tpu_custom_call.1} parent=1 // pred_region
      %3952 = dma.done [#allocation3], 128
    $region29: #{tpu_custom_call.1} parent=1 // pred_fallthru
      _
    %3953 = vsyncpa [#allocation3], 1

</llo_original>
